<compile_context>
chip_gen: v7x
topology: tpu7x:2x2x1
jax: 0.10.0
libtpu: 0.0.40
codegen_flags: <defaults>
</compile_context>

<pallas_src>
import jax
import jax.numpy as jnp
from jax.experimental import pallas as pl
from jax.experimental.pallas import tpu as pltpu

EMB = 100   # embedding_dim in the reference module
HID = 128   # hidden_dim in the reference module


def _lstm_kernel(x_ref, wih_ref, whh_ref, b_ref,      # inputs (one batch tile)
                 y_ref, hN_ref, cN_ref,                # outputs
                 gx_sc, y_sc):                         # VMEM scratch slabs
    bt, S, E = x_ref.shape                             # static tile dims

    # ---- Phase 1: hoisted input projection, ONE fused MXU matmul --------------
    # gates_x[t, b, :] = x[b, t, :] @ W_ih^T + (b_ih + b_hh), stored time-major.
    x_sbe = pltpu.einshape("bse->sbe", x_ref[...])            # (S, bt, E)   XLU
    x2d = x_sbe.reshape(S * bt, E).astype(jnp.bfloat16)       # f32-aligned reshape, then cast
    gx = jnp.dot(x2d, wih_ref[...],
                 preferred_element_type=jnp.float32)          # (S*bt, 4H) f32 acc
    gx_sc[...] = (gx + b_ref[...]).reshape(S, bt, 4 * HID)    # contiguous store

    # ---- Phase 2: time recurrence, fully VMEM/vreg resident, unrolled ---------
    def step(t, carry):
        h, c = carry                                          # (bt, HID) f32 each
        gates = gx_sc[t] + jnp.dot(h.astype(jnp.bfloat16), whh_ref[...],
                                   preferred_element_type=jnp.float32)   # (bt, 4H)
        i_g = jax.nn.sigmoid(gates[:, 0 * HID:1 * HID])
        f_g = jax.nn.sigmoid(gates[:, 1 * HID:2 * HID])
        g_g = jnp.tanh(gates[:, 2 * HID:3 * HID])
        o_g = jax.nn.sigmoid(gates[:, 3 * HID:4 * HID])
        c_new = f_g * c + i_g * g_g
        h_new = o_g * jnp.tanh(c_new)
        y_sc[t] = h_new                                       # contiguous time-major store
        return (h_new, c_new)

    h0 = jnp.zeros((bt, HID), jnp.float32)
    c0 = jnp.zeros((bt, HID), jnp.float32)
    h_fin, c_fin = jax.lax.fori_loop(0, S, step, (h0, c0), unroll=True)

    # ---- Phase 3: single lane-dense write-back ---------------------------------
    hN_ref[...] = h_fin.astype(hN_ref.dtype)
    cN_ref[...] = c_fin.astype(cN_ref.dtype)
    y_ref[...] = pltpu.einshape("sbh->bsh", y_sc[...]).astype(y_ref.dtype)


def _pick_bt(b_pad):
    """Batch tile: multiple of 8, <=64, preferring >=2 parallel tiles (v7x: 2 TCs)."""
    for cand in (64, 56, 48, 40, 32, 24, 16, 8):
        if b_pad % cand == 0 and b_pad // cand >= 2:
            return cand
    return b_pad            # single tile (b_pad is already a multiple of 8)


def lstm_forward(x_bsE, w_ih, w_hh, b_ih, b_hh):
    """x_bsE: (batch, seq, EMB) float32, batch_first like the PyTorch module.
    Returns (output (B, S, HID), (h_n (1, B, HID), c_n (1, B, HID)))."""
    B, S, E = x_bsE.shape
    assert E == EMB

    # Pad batch up to a multiple of 8 (min 8) so sublanes / MXU rows are filled and
    # no remainder tile is dropped; padded rows are sliced off on return.
    B_pad = max(8, -(-B // 8) * 8)
    bt = _pick_bt(B_pad)

    x = x_bsE.astype(jnp.float32)
    if B_pad != B:
        x = jnp.pad(x, ((0, B_pad - B), (0, 0), (0, 0)))

    # bf16 MXU operands (f32 accumulation in-kernel); fused bias stays f32.
    wih_t = jnp.transpose(w_ih).astype(jnp.bfloat16)           # (E, 4H)
    whh_t = jnp.transpose(w_hh).astype(jnp.bfloat16)           # (H, 4H)
    bias = (b_ih + b_hh).reshape(1, 4 * HID).astype(jnp.float32)

    grid = (B_pad // bt,)      # independent batch tiles -> "parallel"

    y, h_n, c_n = pl.pallas_call(
        _lstm_kernel,
        out_shape=(
            jax.ShapeDtypeStruct((B_pad, S, HID), jnp.float32),
            jax.ShapeDtypeStruct((B_pad, HID), jnp.float32),
            jax.ShapeDtypeStruct((B_pad, HID), jnp.float32),
        ),
        grid_spec=pltpu.PrefetchScalarGridSpec(
            num_scalar_prefetch=0,
            grid=grid,
            in_specs=[
                pl.BlockSpec((bt, S, EMB), lambda i: (i, 0, 0)),     # x tile (batch_first)
                pl.BlockSpec((EMB, 4 * HID), lambda i: (0, 0)),      # W_ih^T (bf16)
                pl.BlockSpec((HID, 4 * HID), lambda i: (0, 0)),      # W_hh^T (bf16)
                pl.BlockSpec((1, 4 * HID), lambda i: (0, 0)),        # fused bias (f32)
            ],
            out_specs=[
                pl.BlockSpec((bt, S, HID), lambda i: (i, 0, 0)),     # y (batch_first)
                pl.BlockSpec((bt, HID), lambda i: (i, 0)),           # h_n
                pl.BlockSpec((bt, HID), lambda i: (i, 0)),           # c_n
            ],
            scratch_shapes=[
                pltpu.VMEM((S, bt, 4 * HID), jnp.float32),           # gates_x slab (time-major)
                pltpu.VMEM((S, bt, HID), jnp.float32),               # y staging slab
            ],
        ),
        compiler_params=pltpu.CompilerParams(
            dimension_semantics=("parallel",),   # batch tiles are independent (2 TCs on v7x)
        ),
    )(x, wih_t, whh_t, bias)

    return y[:B], (h_n[None, :B], c_n[None, :B])


def _reference_lstm(x_bsE, w_ih, w_hh, b_ih, b_hh):
    """Pure-JAX f32 reference matching torch.nn.LSTM semantics (gate order i, f, g, o)."""
    B, S, _ = x_bsE.shape
    bias = b_ih + b_hh

    def step(carry, x_t):
        h, c = carry
        gates = x_t @ w_ih.T + h @ w_hh.T + bias
        i, f, g, o = jnp.split(gates, 4, axis=-1)
        i, f, o = jax.nn.sigmoid(i), jax.nn.sigmoid(f), jax.nn.sigmoid(o)
        g = jnp.tanh(g)
        c = f * c + i * g
        h = o * jnp.tanh(c)
        return (h, c), h

    h0 = jnp.zeros((B, HID), jnp.float32)
    c0 = jnp.zeros((B, HID), jnp.float32)
    (h_n, c_n), ys = jax.lax.scan(step, (h0, c0),
                                  jnp.transpose(x_bsE, (1, 0, 2)))
    return jnp.transpose(ys, (1, 0, 2)), (h_n[None], c_n[None])


if __name__ == "__main__":
    key = jax.random.PRNGKey(0)
    k_x, k_wih, k_whh, k_bih, k_bhh = jax.random.split(key, 5)

    B, S = 2, 8                                   # small batch / sequence length
    # Deterministic parameter init, PyTorch-style U(-1/sqrt(H), 1/sqrt(H))
    bound = 1.0 / (HID ** 0.5)
    w_ih = jax.random.uniform(k_wih, (4 * HID, EMB), jnp.float32, -bound, bound)
    w_hh = jax.random.uniform(k_whh, (4 * HID, HID), jnp.float32, -bound, bound)
    b_ih = jax.random.uniform(k_bih, (4 * HID,), jnp.float32, -bound, bound)
    b_hh = jax.random.uniform(k_bhh, (4 * HID,), jnp.float32, -bound, bound)

    # "tokens" fed to forward: float embeddings of size EMB (what nn.LSTM consumes).
    x = jax.random.normal(k_x, (B, S, EMB), jnp.float32)

    out, (h_n, c_n) = lstm_forward(x, w_ih, w_hh, b_ih, b_hh)
    jax.block_until_ready((out, h_n, c_n))

    ref_out, (ref_h, ref_c) = _reference_lstm(x, w_ih, w_hh, b_ih, b_hh)
    assert out.shape == (B, S, HID) and h_n.shape == (1, B, HID) and c_n.shape == (1, B, HID)
    # Tolerance loosened vs the f32 reference because matmul operands are bf16
    # (accumulation and all gate math stay f32).
    assert jnp.allclose(out, ref_out, atol=3e-2, rtol=3e-2)
    assert jnp.allclose(h_n, ref_h, atol=3e-2, rtol=3e-2)
    assert jnp.allclose(c_n, ref_c, atol=3e-2, rtol=3e-2)

    # TODO(synk): build_vocab / text_to_tokens / tokens_to_string are Python-string
    # preprocessing (nltk), not tensor compute; they have no Pallas equivalent.
    print("KERNEL_OK")
</pallas_src>

<mosaic_0001>
module attributes {stable_mosaic.version = 11 : i64} {
  func.func @_lstm_kernel(%arg0: i32, %arg1: memref<8x8x100xf32, #tpu.memory_space<vmem>>, %arg2: memref<100x512xbf16, #tpu.memory_space<vmem>>, %arg3: memref<128x512xbf16, #tpu.memory_space<vmem>>, %arg4: memref<1x512xf32, #tpu.memory_space<vmem>>, %arg5: memref<8x8x128xf32, #tpu.memory_space<vmem>>, %arg6: memref<8x128xf32, #tpu.memory_space<vmem>>, %arg7: memref<8x128xf32, #tpu.memory_space<vmem>>, %arg8: memref<8x8x512xf32, #tpu.memory_space<vmem>>, %arg9: memref<8x8x128xf32, #tpu.memory_space<vmem>>) attributes {dimension_semantics = [#tpu.dimension_semantics<parallel>], iteration_bounds = array<i64: 1>, scalar_prefetch = 0 : i64, scratch_operands = 2 : i64, tpu.core_type = #tpu.core_type<tc>, window_params = [{transform_indices = @transform_0, window_bounds = array<i64: 8, 8, 100>}, {pipeline_mode = #tpu.pipeline_mode<synchronous>, transform_indices = @transform_1, window_bounds = array<i64: 100, 512>}, {pipeline_mode = #tpu.pipeline_mode<synchronous>, transform_indices = @transform_2, window_bounds = array<i64: 128, 512>}, {pipeline_mode = #tpu.pipeline_mode<synchronous>, transform_indices = @transform_3, window_bounds = array<i64: 1, 512>}, {transform_indices = @transform_4, window_bounds = array<i64: 8, 8, 128>}, {transform_indices = @transform_5, window_bounds = array<i64: 8, 128>}, {transform_indices = @transform_6, window_bounds = array<i64: 8, 128>}]} {
    %c0 = arith.constant 0 : index
    %c0_0 = arith.constant 0 : index
    %c0_1 = arith.constant 0 : index
    %0 = vector.load %arg1[%c0, %c0_0, %c0_1] : memref<8x8x100xf32, #tpu.memory_space<vmem>>, vector<8x8x100xf32>
    %1 = tpu.transpose %0, [1, 0, 2] : vector<8x8x100xf32> -> vector<8x8x100xf32>
    %2 = vector.shape_cast %1 : vector<8x8x100xf32> to vector<64x100xf32>
    %3 = arith.truncf %2 : vector<64x100xf32> to vector<64x100xbf16>
    %c0_2 = arith.constant 0 : index
    %c0_3 = arith.constant 0 : index
    %4 = vector.load %arg2[%c0_2, %c0_3] : memref<100x512xbf16, #tpu.memory_space<vmem>>, vector<100x512xbf16>
    %cst = arith.constant dense<0.000000e+00> : vector<64x512xf32>
    %5 = tpu.matmul %3, %4, %cst {dimension_numbers = #tpu.dot_dimension_numbers<[1], [0], [0], [1], [0, 0, 1, 1], [], []>} : vector<64x100xbf16>, vector<100x512xbf16>, vector<64x512xf32> -> vector<64x512xf32>
    %c0_4 = arith.constant 0 : index
    %c0_5 = arith.constant 0 : index
    %6 = vector.load %arg4[%c0_4, %c0_5] : memref<1x512xf32, #tpu.memory_space<vmem>>, vector<1x512xf32>
    %7 = vector.broadcast %6 : vector<1x512xf32> to vector<64x512xf32>
    %8 = arith.addf %5, %7 : vector<64x512xf32>
    %9 = vector.shape_cast %8 : vector<64x512xf32> to vector<8x8x512xf32>
    %c0_6 = arith.constant 0 : index
    %c0_7 = arith.constant 0 : index
    %c0_8 = arith.constant 0 : index
    %10 = vector.load %arg8[%c0_6, %c0_7, %c0_8] : memref<8x8x512xf32, #tpu.memory_space<vmem>>, vector<8x8x512xf32>
    tpu.vector_store %arg8[%c0_6, %c0_7, %c0_8], %9 {strides = array<i32>} : memref<8x8x512xf32, #tpu.memory_space<vmem>>, vector<8x8x512xf32>,
    %cst_9 = arith.constant 0.000000e+00 : f32
    %11 = vector.broadcast %cst_9 : f32 to vector<8x128xf32>
    %cst_10 = arith.constant 0.000000e+00 : f32
    %12 = vector.broadcast %cst_10 : f32 to vector<8x128xf32>
    %c0_i32 = arith.constant 0 : i32
    %13 = arith.index_cast %c0_i32 : i32 to index
    %c0_11 = arith.constant 0 : index
    %c0_12 = arith.constant 0 : index
    %14 = vector.load %arg8[%13, %c0_11, %c0_12] : memref<8x8x512xf32, #tpu.memory_space<vmem>>, vector<1x8x512xf32>
    %15 = vector.shape_cast %14 : vector<1x8x512xf32> to vector<8x512xf32>
    %16 = arith.truncf %11 : vector<8x128xf32> to vector<8x128xbf16>
    %c0_13 = arith.constant 0 : index
    %c0_14 = arith.constant 0 : index
    %17 = vector.load %arg3[%c0_13, %c0_14] : memref<128x512xbf16, #tpu.memory_space<vmem>>, vector<128x512xbf16>
    %cst_15 = arith.constant dense<0.000000e+00> : vector<8x512xf32>
    %18 = tpu.matmul %16, %17, %cst_15 {dimension_numbers = #tpu.dot_dimension_numbers<[1], [0], [0], [1], [0, 0, 1, 1], [], []>} : vector<8x128xbf16>, vector<128x512xbf16>, vector<8x512xf32> -> vector<8x512xf32>
    %19 = arith.addf %15, %18 : vector<8x512xf32>
    %20 = vector.extract_strided_slice %19 {offsets = [0, 0], sizes = [8, 128], strides = [1, 1]} : vector<8x512xf32> to vector<8x128xf32>
    %21 = arith.negf %20 : vector<8x128xf32>
    %22 = math.exp %21 : vector<8x128xf32>
    %cst_16 = arith.constant 1.000000e+00 : f32
    %23 = vector.broadcast %cst_16 : f32 to vector<8x128xf32>
    %24 = arith.addf %23, %22 : vector<8x128xf32>
    %25 = arith.divf %23, %24 : vector<8x128xf32>
    %26 = vector.extract_strided_slice %19 {offsets = [0, 128], sizes = [8, 128], strides = [1, 1]} : vector<8x512xf32> to vector<8x128xf32>
    %27 = arith.negf %26 : vector<8x128xf32>
    %28 = math.exp %27 : vector<8x128xf32>
    %cst_17 = arith.constant 1.000000e+00 : f32
    %29 = vector.broadcast %cst_17 : f32 to vector<8x128xf32>
    %30 = arith.addf %29, %28 : vector<8x128xf32>
    %31 = arith.divf %29, %30 : vector<8x128xf32>
    %32 = vector.extract_strided_slice %19 {offsets = [0, 256], sizes = [8, 128], strides = [1, 1]} : vector<8x512xf32> to vector<8x128xf32>
    %33 = math.tanh %32 : vector<8x128xf32>
    %34 = vector.extract_strided_slice %19 {offsets = [0, 384], sizes = [8, 128], strides = [1, 1]} : vector<8x512xf32> to vector<8x128xf32>
    %35 = arith.negf %34 : vector<8x128xf32>
    %36 = math.exp %35 : vector<8x128xf32>
    %cst_18 = arith.constant 1.000000e+00 : f32
    %37 = vector.broadcast %cst_18 : f32 to vector<8x128xf32>
    %38 = arith.addf %37, %36 : vector<8x128xf32>
    %39 = arith.divf %37, %38 : vector<8x128xf32>
    %40 = arith.mulf %31, %12 : vector<8x128xf32>
    %41 = arith.mulf %25, %33 : vector<8x128xf32>
    %42 = arith.addf %40, %41 : vector<8x128xf32>
    %43 = math.tanh %42 : vector<8x128xf32>
    %44 = arith.mulf %39, %43 : vector<8x128xf32>
    %45 = arith.index_cast %c0_i32 : i32 to index
    %c0_19 = arith.constant 0 : index
    %c0_20 = arith.constant 0 : index
    %46 = vector.load %arg9[%45, %c0_19, %c0_20] : memref<8x8x128xf32, #tpu.memory_space<vmem>>, vector<1x8x128xf32>
    %47 = vector.shape_cast %46 : vector<1x8x128xf32> to vector<8x128xf32>
    %48 = vector.shape_cast %44 : vector<8x128xf32> to vector<1x8x128xf32>
    tpu.vector_store %arg9[%45, %c0_19, %c0_20], %48 {strides = array<i32>} : memref<8x8x128xf32, #tpu.memory_space<vmem>>, vector<1x8x128xf32>,
    %c1_i32 = arith.constant 1 : i32
    %49 = arith.index_cast %c1_i32 : i32 to index
    %c0_21 = arith.constant 0 : index
    %c0_22 = arith.constant 0 : index
    %50 = vector.load %arg8[%49, %c0_21, %c0_22] : memref<8x8x512xf32, #tpu.memory_space<vmem>>, vector<1x8x512xf32>
    %51 = vector.shape_cast %50 : vector<1x8x512xf32> to vector<8x512xf32>
    %52 = arith.truncf %44 : vector<8x128xf32> to vector<8x128xbf16>
    %c0_23 = arith.constant 0 : index
    %c0_24 = arith.constant 0 : index
    %53 = vector.load %arg3[%c0_23, %c0_24] : memref<128x512xbf16, #tpu.memory_space<vmem>>, vector<128x512xbf16>
    %cst_25 = arith.constant dense<0.000000e+00> : vector<8x512xf32>
    %54 = tpu.matmul %52, %53, %cst_25 {dimension_numbers = #tpu.dot_dimension_numbers<[1], [0], [0], [1], [0, 0, 1, 1], [], []>} : vector<8x128xbf16>, vector<128x512xbf16>, vector<8x512xf32> -> vector<8x512xf32>
    %55 = arith.addf %51, %54 : vector<8x512xf32>
    %56 = vector.extract_strided_slice %55 {offsets = [0, 0], sizes = [8, 128], strides = [1, 1]} : vector<8x512xf32> to vector<8x128xf32>
    %57 = arith.negf %56 : vector<8x128xf32>
    %58 = math.exp %57 : vector<8x128xf32>
    %cst_26 = arith.constant 1.000000e+00 : f32
    %59 = vector.broadcast %cst_26 : f32 to vector<8x128xf32>
    %60 = arith.addf %59, %58 : vector<8x128xf32>
    %61 = arith.divf %59, %60 : vector<8x128xf32>
    %62 = vector.extract_strided_slice %55 {offsets = [0, 128], sizes = [8, 128], strides = [1, 1]} : vector<8x512xf32> to vector<8x128xf32>
    %63 = arith.negf %62 : vector<8x128xf32>
    %64 = math.exp %63 : vector<8x128xf32>
    %cst_27 = arith.constant 1.000000e+00 : f32
    %65 = vector.broadcast %cst_27 : f32 to vector<8x128xf32>
    %66 = arith.addf %65, %64 : vector<8x128xf32>
    %67 = arith.divf %65, %66 : vector<8x128xf32>
    %68 = vector.extract_strided_slice %55 {offsets = [0, 256], sizes = [8, 128], strides = [1, 1]} : vector<8x512xf32> to vector<8x128xf32>
    %69 = math.tanh %68 : vector<8x128xf32>
    %70 = vector.extract_strided_slice %55 {offsets = [0, 384], sizes = [8, 128], strides = [1, 1]} : vector<8x512xf32> to vector<8x128xf32>
    %71 = arith.negf %70 : vector<8x128xf32>
    %72 = math.exp %71 : vector<8x128xf32>
    %cst_28 = arith.constant 1.000000e+00 : f32
    %73 = vector.broadcast %cst_28 : f32 to vector<8x128xf32>
    %74 = arith.addf %73, %72 : vector<8x128xf32>
    %75 = arith.divf %73, %74 : vector<8x128xf32>
    %76 = arith.mulf %67, %42 : vector<8x128xf32>
    %77 = arith.mulf %61, %69 : vector<8x128xf32>
    %78 = arith.addf %76, %77 : vector<8x128xf32>
    %79 = math.tanh %78 : vector<8x128xf32>
    %80 = arith.mulf %75, %79 : vector<8x128xf32>
    %81 = arith.index_cast %c1_i32 : i32 to index
    %c0_29 = arith.constant 0 : index
    %c0_30 = arith.constant 0 : index
    %82 = vector.load %arg9[%81, %c0_29, %c0_30] : memref<8x8x128xf32, #tpu.memory_space<vmem>>, vector<1x8x128xf32>
    %83 = vector.shape_cast %82 : vector<1x8x128xf32> to vector<8x128xf32>
    %84 = vector.shape_cast %80 : vector<8x128xf32> to vector<1x8x128xf32>
    tpu.vector_store %arg9[%81, %c0_29, %c0_30], %84 {strides = array<i32>} : memref<8x8x128xf32, #tpu.memory_space<vmem>>, vector<1x8x128xf32>,
    %c2_i32 = arith.constant 2 : i32
    %85 = arith.index_cast %c2_i32 : i32 to index
    %c0_31 = arith.constant 0 : index
    %c0_32 = arith.constant 0 : index
    %86 = vector.load %arg8[%85, %c0_31, %c0_32] : memref<8x8x512xf32, #tpu.memory_space<vmem>>, vector<1x8x512xf32>
    %87 = vector.shape_cast %86 : vector<1x8x512xf32> to vector<8x512xf32>
    %88 = arith.truncf %80 : vector<8x128xf32> to vector<8x128xbf16>
    %c0_33 = arith.constant 0 : index
    %c0_34 = arith.constant 0 : index
    %89 = vector.load %arg3[%c0_33, %c0_34] : memref<128x512xbf16, #tpu.memory_space<vmem>>, vector<128x512xbf16>
    %cst_35 = arith.constant dense<0.000000e+00> : vector<8x512xf32>
    %90 = tpu.matmul %88, %89, %cst_35 {dimension_numbers = #tpu.dot_dimension_numbers<[1], [0], [0], [1], [0, 0, 1, 1], [], []>} : vector<8x128xbf16>, vector<128x512xbf16>, vector<8x512xf32> -> vector<8x512xf32>
    %91 = arith.addf %87, %90 : vector<8x512xf32>
    %92 = vector.extract_strided_slice %91 {offsets = [0, 0], sizes = [8, 128], strides = [1, 1]} : vector<8x512xf32> to vector<8x128xf32>
    %93 = arith.negf %92 : vector<8x128xf32>
    %94 = math.exp %93 : vector<8x128xf32>
    %cst_36 = arith.constant 1.000000e+00 : f32
    %95 = vector.broadcast %cst_36 : f32 to vector<8x128xf32>
    %96 = arith.addf %95, %94 : vector<8x128xf32>
    %97 = arith.divf %95, %96 : vector<8x128xf32>
    %98 = vector.extract_strided_slice %91 {offsets = [0, 128], sizes = [8, 128], strides = [1, 1]} : vector<8x512xf32> to vector<8x128xf32>
    %99 = arith.negf %98 : vector<8x128xf32>
    %100 = math.exp %99 : vector<8x128xf32>
    %cst_37 = arith.constant 1.000000e+00 : f32
    %101 = vector.broadcast %cst_37 : f32 to vector<8x128xf32>
    %102 = arith.addf %101, %100 : vector<8x128xf32>
    %103 = arith.divf %101, %102 : vector<8x128xf32>
    %104 = vector.extract_strided_slice %91 {offsets = [0, 256], sizes = [8, 128], strides = [1, 1]} : vector<8x512xf32> to vector<8x128xf32>
    %105 = math.tanh %104 : vector<8x128xf32>
    %106 = vector.extract_strided_slice %91 {offsets = [0, 384], sizes = [8, 128], strides = [1, 1]} : vector<8x512xf32> to vector<8x128xf32>
    %107 = arith.negf %106 : vector<8x128xf32>
    %108 = math.exp %107 : vector<8x128xf32>
    %cst_38 = arith.constant 1.000000e+00 : f32
    %109 = vector.broadcast %cst_38 : f32 to vector<8x128xf32>
    %110 = arith.addf %109, %108 : vector<8x128xf32>
    %111 = arith.divf %109, %110 : vector<8x128xf32>
    %112 = arith.mulf %103, %78 : vector<8x128xf32>
    %113 = arith.mulf %97, %105 : vector<8x128xf32>
    %114 = arith.addf %112, %113 : vector<8x128xf32>
    %115 = math.tanh %114 : vector<8x128xf32>
    %116 = arith.mulf %111, %115 : vector<8x128xf32>
    %117 = arith.index_cast %c2_i32 : i32 to index
    %c0_39 = arith.constant 0 : index
    %c0_40 = arith.constant 0 : index
    %118 = vector.load %arg9[%117, %c0_39, %c0_40] : memref<8x8x128xf32, #tpu.memory_space<vmem>>, vector<1x8x128xf32>
    %119 = vector.shape_cast %118 : vector<1x8x128xf32> to vector<8x128xf32>
    %120 = vector.shape_cast %116 : vector<8x128xf32> to vector<1x8x128xf32>
    tpu.vector_store %arg9[%117, %c0_39, %c0_40], %120 {strides = array<i32>} : memref<8x8x128xf32, #tpu.memory_space<vmem>>, vector<1x8x128xf32>,
    %c3_i32 = arith.constant 3 : i32
    %121 = arith.index_cast %c3_i32 : i32 to index
    %c0_41 = arith.constant 0 : index
    %c0_42 = arith.constant 0 : index
    %122 = vector.load %arg8[%121, %c0_41, %c0_42] : memref<8x8x512xf32, #tpu.memory_space<vmem>>, vector<1x8x512xf32>
    %123 = vector.shape_cast %122 : vector<1x8x512xf32> to vector<8x512xf32>
    %124 = arith.truncf %116 : vector<8x128xf32> to vector<8x128xbf16>
    %c0_43 = arith.constant 0 : index
    %c0_44 = arith.constant 0 : index
    %125 = vector.load %arg3[%c0_43, %c0_44] : memref<128x512xbf16, #tpu.memory_space<vmem>>, vector<128x512xbf16>
    %cst_45 = arith.constant dense<0.000000e+00> : vector<8x512xf32>
    %126 = tpu.matmul %124, %125, %cst_45 {dimension_numbers = #tpu.dot_dimension_numbers<[1], [0], [0], [1], [0, 0, 1, 1], [], []>} : vector<8x128xbf16>, vector<128x512xbf16>, vector<8x512xf32> -> vector<8x512xf32>
    %127 = arith.addf %123, %126 : vector<8x512xf32>
    %128 = vector.extract_strided_slice %127 {offsets = [0, 0], sizes = [8, 128], strides = [1, 1]} : vector<8x512xf32> to vector<8x128xf32>
    %129 = arith.negf %128 : vector<8x128xf32>
    %130 = math.exp %129 : vector<8x128xf32>
    %cst_46 = arith.constant 1.000000e+00 : f32
    %131 = vector.broadcast %cst_46 : f32 to vector<8x128xf32>
    %132 = arith.addf %131, %130 : vector<8x128xf32>
    %133 = arith.divf %131, %132 : vector<8x128xf32>
    %134 = vector.extract_strided_slice %127 {offsets = [0, 128], sizes = [8, 128], strides = [1, 1]} : vector<8x512xf32> to vector<8x128xf32>
    %135 = arith.negf %134 : vector<8x128xf32>
    %136 = math.exp %135 : vector<8x128xf32>
    %cst_47 = arith.constant 1.000000e+00 : f32
    %137 = vector.broadcast %cst_47 : f32 to vector<8x128xf32>
    %138 = arith.addf %137, %136 : vector<8x128xf32>
    %139 = arith.divf %137, %138 : vector<8x128xf32>
    %140 = vector.extract_strided_slice %127 {offsets = [0, 256], sizes = [8, 128], strides = [1, 1]} : vector<8x512xf32> to vector<8x128xf32>
    %141 = math.tanh %140 : vector<8x128xf32>
    %142 = vector.extract_strided_slice %127 {offsets = [0, 384], sizes = [8, 128], strides = [1, 1]} : vector<8x512xf32> to vector<8x128xf32>
    %143 = arith.negf %142 : vector<8x128xf32>
    %144 = math.exp %143 : vector<8x128xf32>
    %cst_48 = arith.constant 1.000000e+00 : f32
    %145 = vector.broadcast %cst_48 : f32 to vector<8x128xf32>
    %146 = arith.addf %145, %144 : vector<8x128xf32>
    %147 = arith.divf %145, %146 : vector<8x128xf32>
    %148 = arith.mulf %139, %114 : vector<8x128xf32>
    %149 = arith.mulf %133, %141 : vector<8x128xf32>
    %150 = arith.addf %148, %149 : vector<8x128xf32>
    %151 = math.tanh %150 : vector<8x128xf32>
    %152 = arith.mulf %147, %151 : vector<8x128xf32>
    %153 = arith.index_cast %c3_i32 : i32 to index
    %c0_49 = arith.constant 0 : index
    %c0_50 = arith.constant 0 : index
    %154 = vector.load %arg9[%153, %c0_49, %c0_50] : memref<8x8x128xf32, #tpu.memory_space<vmem>>, vector<1x8x128xf32>
    %155 = vector.shape_cast %154 : vector<1x8x128xf32> to vector<8x128xf32>
    %156 = vector.shape_cast %152 : vector<8x128xf32> to vector<1x8x128xf32>
    tpu.vector_store %arg9[%153, %c0_49, %c0_50], %156 {strides = array<i32>} : memref<8x8x128xf32, #tpu.memory_space<vmem>>, vector<1x8x128xf32>,
    %c4_i32 = arith.constant 4 : i32
    %157 = arith.index_cast %c4_i32 : i32 to index
    %c0_51 = arith.constant 0 : index
    %c0_52 = arith.constant 0 : index
    %158 = vector.load %arg8[%157, %c0_51, %c0_52] : memref<8x8x512xf32, #tpu.memory_space<vmem>>, vector<1x8x512xf32>
    %159 = vector.shape_cast %158 : vector<1x8x512xf32> to vector<8x512xf32>
    %160 = arith.truncf %152 : vector<8x128xf32> to vector<8x128xbf16>
    %c0_53 = arith.constant 0 : index
    %c0_54 = arith.constant 0 : index
    %161 = vector.load %arg3[%c0_53, %c0_54] : memref<128x512xbf16, #tpu.memory_space<vmem>>, vector<128x512xbf16>
    %cst_55 = arith.constant dense<0.000000e+00> : vector<8x512xf32>
    %162 = tpu.matmul %160, %161, %cst_55 {dimension_numbers = #tpu.dot_dimension_numbers<[1], [0], [0], [1], [0, 0, 1, 1], [], []>} : vector<8x128xbf16>, vector<128x512xbf16>, vector<8x512xf32> -> vector<8x512xf32>
    %163 = arith.addf %159, %162 : vector<8x512xf32>
    %164 = vector.extract_strided_slice %163 {offsets = [0, 0], sizes = [8, 128], strides = [1, 1]} : vector<8x512xf32> to vector<8x128xf32>
    %165 = arith.negf %164 : vector<8x128xf32>
    %166 = math.exp %165 : vector<8x128xf32>
    %cst_56 = arith.constant 1.000000e+00 : f32
    %167 = vector.broadcast %cst_56 : f32 to vector<8x128xf32>
    %168 = arith.addf %167, %166 : vector<8x128xf32>
    %169 = arith.divf %167, %168 : vector<8x128xf32>
    %170 = vector.extract_strided_slice %163 {offsets = [0, 128], sizes = [8, 128], strides = [1, 1]} : vector<8x512xf32> to vector<8x128xf32>
    %171 = arith.negf %170 : vector<8x128xf32>
    %172 = math.exp %171 : vector<8x128xf32>
    %cst_57 = arith.constant 1.000000e+00 : f32
    %173 = vector.broadcast %cst_57 : f32 to vector<8x128xf32>
    %174 = arith.addf %173, %172 : vector<8x128xf32>
    %175 = arith.divf %173, %174 : vector<8x128xf32>
    %176 = vector.extract_strided_slice %163 {offsets = [0, 256], sizes = [8, 128], strides = [1, 1]} : vector<8x512xf32> to vector<8x128xf32>
    %177 = math.tanh %176 : vector<8x128xf32>
    %178 = vector.extract_strided_slice %163 {offsets = [0, 384], sizes = [8, 128], strides = [1, 1]} : vector<8x512xf32> to vector<8x128xf32>
    %179 = arith.negf %178 : vector<8x128xf32>
    %180 = math.exp %179 : vector<8x128xf32>
    %cst_58 = arith.constant 1.000000e+00 : f32
    %181 = vector.broadcast %cst_58 : f32 to vector<8x128xf32>
    %182 = arith.addf %181, %180 : vector<8x128xf32>
    %183 = arith.divf %181, %182 : vector<8x128xf32>
    %184 = arith.mulf %175, %150 : vector<8x128xf32>
    %185 = arith.mulf %169, %177 : vector<8x128xf32>
    %186 = arith.addf %184, %185 : vector<8x128xf32>
    %187 = math.tanh %186 : vector<8x128xf32>
    %188 = arith.mulf %183, %187 : vector<8x128xf32>
    %189 = arith.index_cast %c4_i32 : i32 to index
    %c0_59 = arith.constant 0 : index
    %c0_60 = arith.constant 0 : index
    %190 = vector.load %arg9[%189, %c0_59, %c0_60] : memref<8x8x128xf32, #tpu.memory_space<vmem>>, vector<1x8x128xf32>
    %191 = vector.shape_cast %190 : vector<1x8x128xf32> to vector<8x128xf32>
    %192 = vector.shape_cast %188 : vector<8x128xf32> to vector<1x8x128xf32>
    tpu.vector_store %arg9[%189, %c0_59, %c0_60], %192 {strides = array<i32>} : memref<8x8x128xf32, #tpu.memory_space<vmem>>, vector<1x8x128xf32>,
    %c5_i32 = arith.constant 5 : i32
    %193 = arith.index_cast %c5_i32 : i32 to index
    %c0_61 = arith.constant 0 : index
    %c0_62 = arith.constant 0 : index
    %194 = vector.load %arg8[%193, %c0_61, %c0_62] : memref<8x8x512xf32, #tpu.memory_space<vmem>>, vector<1x8x512xf32>
    %195 = vector.shape_cast %194 : vector<1x8x512xf32> to vector<8x512xf32>
    %196 = arith.truncf %188 : vector<8x128xf32> to vector<8x128xbf16>
    %c0_63 = arith.constant 0 : index
    %c0_64 = arith.constant 0 : index
    %197 = vector.load %arg3[%c0_63, %c0_64] : memref<128x512xbf16, #tpu.memory_space<vmem>>, vector<128x512xbf16>
    %cst_65 = arith.constant dense<0.000000e+00> : vector<8x512xf32>
    %198 = tpu.matmul %196, %197, %cst_65 {dimension_numbers = #tpu.dot_dimension_numbers<[1], [0], [0], [1], [0, 0, 1, 1], [], []>} : vector<8x128xbf16>, vector<128x512xbf16>, vector<8x512xf32> -> vector<8x512xf32>
    %199 = arith.addf %195, %198 : vector<8x512xf32>
    %200 = vector.extract_strided_slice %199 {offsets = [0, 0], sizes = [8, 128], strides = [1, 1]} : vector<8x512xf32> to vector<8x128xf32>
    %201 = arith.negf %200 : vector<8x128xf32>
    %202 = math.exp %201 : vector<8x128xf32>
    %cst_66 = arith.constant 1.000000e+00 : f32
    %203 = vector.broadcast %cst_66 : f32 to vector<8x128xf32>
    %204 = arith.addf %203, %202 : vector<8x128xf32>
    %205 = arith.divf %203, %204 : vector<8x128xf32>
    %206 = vector.extract_strided_slice %199 {offsets = [0, 128], sizes = [8, 128], strides = [1, 1]} : vector<8x512xf32> to vector<8x128xf32>
    %207 = arith.negf %206 : vector<8x128xf32>
    %208 = math.exp %207 : vector<8x128xf32>
    %cst_67 = arith.constant 1.000000e+00 : f32
    %209 = vector.broadcast %cst_67 : f32 to vector<8x128xf32>
    %210 = arith.addf %209, %208 : vector<8x128xf32>
    %211 = arith.divf %209, %210 : vector<8x128xf32>
    %212 = vector.extract_strided_slice %199 {offsets = [0, 256], sizes = [8, 128], strides = [1, 1]} : vector<8x512xf32> to vector<8x128xf32>
    %213 = math.tanh %212 : vector<8x128xf32>
    %214 = vector.extract_strided_slice %199 {offsets = [0, 384], sizes = [8, 128], strides = [1, 1]} : vector<8x512xf32> to vector<8x128xf32>
    %215 = arith.negf %214 : vector<8x128xf32>
    %216 = math.exp %215 : vector<8x128xf32>
    %cst_68 = arith.constant 1.000000e+00 : f32
    %217 = vector.broadcast %cst_68 : f32 to vector<8x128xf32>
    %218 = arith.addf %217, %216 : vector<8x128xf32>
    %219 = arith.divf %217, %218 : vector<8x128xf32>
    %220 = arith.mulf %211, %186 : vector<8x128xf32>
    %221 = arith.mulf %205, %213 : vector<8x128xf32>
    %222 = arith.addf %220, %221 : vector<8x128xf32>
    %223 = math.tanh %222 : vector<8x128xf32>
    %224 = arith.mulf %219, %223 : vector<8x128xf32>
    %225 = arith.index_cast %c5_i32 : i32 to index
    %c0_69 = arith.constant 0 : index
    %c0_70 = arith.constant 0 : index
    %226 = vector.load %arg9[%225, %c0_69, %c0_70] : memref<8x8x128xf32, #tpu.memory_space<vmem>>, vector<1x8x128xf32>
    %227 = vector.shape_cast %226 : vector<1x8x128xf32> to vector<8x128xf32>
    %228 = vector.shape_cast %224 : vector<8x128xf32> to vector<1x8x128xf32>
    tpu.vector_store %arg9[%225, %c0_69, %c0_70], %228 {strides = array<i32>} : memref<8x8x128xf32, #tpu.memory_space<vmem>>, vector<1x8x128xf32>,
    %c6_i32 = arith.constant 6 : i32
    %229 = arith.index_cast %c6_i32 : i32 to index
    %c0_71 = arith.constant 0 : index
    %c0_72 = arith.constant 0 : index
    %230 = vector.load %arg8[%229, %c0_71, %c0_72] : memref<8x8x512xf32, #tpu.memory_space<vmem>>, vector<1x8x512xf32>
    %231 = vector.shape_cast %230 : vector<1x8x512xf32> to vector<8x512xf32>
    %232 = arith.truncf %224 : vector<8x128xf32> to vector<8x128xbf16>
    %c0_73 = arith.constant 0 : index
    %c0_74 = arith.constant 0 : index
    %233 = vector.load %arg3[%c0_73, %c0_74] : memref<128x512xbf16, #tpu.memory_space<vmem>>, vector<128x512xbf16>
    %cst_75 = arith.constant dense<0.000000e+00> : vector<8x512xf32>
    %234 = tpu.matmul %232, %233, %cst_75 {dimension_numbers = #tpu.dot_dimension_numbers<[1], [0], [0], [1], [0, 0, 1, 1], [], []>} : vector<8x128xbf16>, vector<128x512xbf16>, vector<8x512xf32> -> vector<8x512xf32>
    %235 = arith.addf %231, %234 : vector<8x512xf32>
    %236 = vector.extract_strided_slice %235 {offsets = [0, 0], sizes = [8, 128], strides = [1, 1]} : vector<8x512xf32> to vector<8x128xf32>
    %237 = arith.negf %236 : vector<8x128xf32>
    %238 = math.exp %237 : vector<8x128xf32>
    %cst_76 = arith.constant 1.000000e+00 : f32
    %239 = vector.broadcast %cst_76 : f32 to vector<8x128xf32>
    %240 = arith.addf %239, %238 : vector<8x128xf32>
    %241 = arith.divf %239, %240 : vector<8x128xf32>
    %242 = vector.extract_strided_slice %235 {offsets = [0, 128], sizes = [8, 128], strides = [1, 1]} : vector<8x512xf32> to vector<8x128xf32>
    %243 = arith.negf %242 : vector<8x128xf32>
    %244 = math.exp %243 : vector<8x128xf32>
    %cst_77 = arith.constant 1.000000e+00 : f32
    %245 = vector.broadcast %cst_77 : f32 to vector<8x128xf32>
    %246 = arith.addf %245, %244 : vector<8x128xf32>
    %247 = arith.divf %245, %246 : vector<8x128xf32>
    %248 = vector.extract_strided_slice %235 {offsets = [0, 256], sizes = [8, 128], strides = [1, 1]} : vector<8x512xf32> to vector<8x128xf32>
    %249 = math.tanh %248 : vector<8x128xf32>
    %250 = vector.extract_strided_slice %235 {offsets = [0, 384], sizes = [8, 128], strides = [1, 1]} : vector<8x512xf32> to vector<8x128xf32>
    %251 = arith.negf %250 : vector<8x128xf32>
    %252 = math.exp %251 : vector<8x128xf32>
    %cst_78 = arith.constant 1.000000e+00 : f32
    %253 = vector.broadcast %cst_78 : f32 to vector<8x128xf32>
    %254 = arith.addf %253, %252 : vector<8x128xf32>
    %255 = arith.divf %253, %254 : vector<8x128xf32>
    %256 = arith.mulf %247, %222 : vector<8x128xf32>
    %257 = arith.mulf %241, %249 : vector<8x128xf32>
    %258 = arith.addf %256, %257 : vector<8x128xf32>
    %259 = math.tanh %258 : vector<8x128xf32>
    %260 = arith.mulf %255, %259 : vector<8x128xf32>
    %261 = arith.index_cast %c6_i32 : i32 to index
    %c0_79 = arith.constant 0 : index
    %c0_80 = arith.constant 0 : index
    %262 = vector.load %arg9[%261, %c0_79, %c0_80] : memref<8x8x128xf32, #tpu.memory_space<vmem>>, vector<1x8x128xf32>
    %263 = vector.shape_cast %262 : vector<1x8x128xf32> to vector<8x128xf32>
    %264 = vector.shape_cast %260 : vector<8x128xf32> to vector<1x8x128xf32>
    tpu.vector_store %arg9[%261, %c0_79, %c0_80], %264 {strides = array<i32>} : memref<8x8x128xf32, #tpu.memory_space<vmem>>, vector<1x8x128xf32>,
    %c7_i32 = arith.constant 7 : i32
    %265 = arith.index_cast %c7_i32 : i32 to index
    %c0_81 = arith.constant 0 : index
    %c0_82 = arith.constant 0 : index
    %266 = vector.load %arg8[%265, %c0_81, %c0_82] : memref<8x8x512xf32, #tpu.memory_space<vmem>>, vector<1x8x512xf32>
    %267 = vector.shape_cast %266 : vector<1x8x512xf32> to vector<8x512xf32>
    %268 = arith.truncf %260 : vector<8x128xf32> to vector<8x128xbf16>
    %c0_83 = arith.constant 0 : index
    %c0_84 = arith.constant 0 : index
    %269 = vector.load %arg3[%c0_83, %c0_84] : memref<128x512xbf16, #tpu.memory_space<vmem>>, vector<128x512xbf16>
    %cst_85 = arith.constant dense<0.000000e+00> : vector<8x512xf32>
    %270 = tpu.matmul %268, %269, %cst_85 {dimension_numbers = #tpu.dot_dimension_numbers<[1], [0], [0], [1], [0, 0, 1, 1], [], []>} : vector<8x128xbf16>, vector<128x512xbf16>, vector<8x512xf32> -> vector<8x512xf32>
    %271 = arith.addf %267, %270 : vector<8x512xf32>
    %272 = vector.extract_strided_slice %271 {offsets = [0, 0], sizes = [8, 128], strides = [1, 1]} : vector<8x512xf32> to vector<8x128xf32>
    %273 = arith.negf %272 : vector<8x128xf32>
    %274 = math.exp %273 : vector<8x128xf32>
    %cst_86 = arith.constant 1.000000e+00 : f32
    %275 = vector.broadcast %cst_86 : f32 to vector<8x128xf32>
    %276 = arith.addf %275, %274 : vector<8x128xf32>
    %277 = arith.divf %275, %276 : vector<8x128xf32>
    %278 = vector.extract_strided_slice %271 {offsets = [0, 128], sizes = [8, 128], strides = [1, 1]} : vector<8x512xf32> to vector<8x128xf32>
    %279 = arith.negf %278 : vector<8x128xf32>
    %280 = math.exp %279 : vector<8x128xf32>
    %cst_87 = arith.constant 1.000000e+00 : f32
    %281 = vector.broadcast %cst_87 : f32 to vector<8x128xf32>
    %282 = arith.addf %281, %280 : vector<8x128xf32>
    %283 = arith.divf %281, %282 : vector<8x128xf32>
    %284 = vector.extract_strided_slice %271 {offsets = [0, 256], sizes = [8, 128], strides = [1, 1]} : vector<8x512xf32> to vector<8x128xf32>
    %285 = math.tanh %284 : vector<8x128xf32>
    %286 = vector.extract_strided_slice %271 {offsets = [0, 384], sizes = [8, 128], strides = [1, 1]} : vector<8x512xf32> to vector<8x128xf32>
    %287 = arith.negf %286 : vector<8x128xf32>
    %288 = math.exp %287 : vector<8x128xf32>
    %cst_88 = arith.constant 1.000000e+00 : f32
    %289 = vector.broadcast %cst_88 : f32 to vector<8x128xf32>
    %290 = arith.addf %289, %288 : vector<8x128xf32>
    %291 = arith.divf %289, %290 : vector<8x128xf32>
    %292 = arith.mulf %283, %258 : vector<8x128xf32>
    %293 = arith.mulf %277, %285 : vector<8x128xf32>
    %294 = arith.addf %292, %293 : vector<8x128xf32>
    %295 = math.tanh %294 : vector<8x128xf32>
    %296 = arith.mulf %291, %295 : vector<8x128xf32>
    %297 = arith.index_cast %c7_i32 : i32 to index
    %c0_89 = arith.constant 0 : index
    %c0_90 = arith.constant 0 : index
    %298 = vector.load %arg9[%297, %c0_89, %c0_90] : memref<8x8x128xf32, #tpu.memory_space<vmem>>, vector<1x8x128xf32>
    %299 = vector.shape_cast %298 : vector<1x8x128xf32> to vector<8x128xf32>
    %300 = vector.shape_cast %296 : vector<8x128xf32> to vector<1x8x128xf32>
    tpu.vector_store %arg9[%297, %c0_89, %c0_90], %300 {strides = array<i32>} : memref<8x8x128xf32, #tpu.memory_space<vmem>>, vector<1x8x128xf32>,
    %c8_i32 = arith.constant 8 : i32
    %c0_91 = arith.constant 0 : index
    %c0_92 = arith.constant 0 : index
    %301 = vector.load %arg6[%c0_91, %c0_92] : memref<8x128xf32, #tpu.memory_space<vmem>>, vector<8x128xf32>
    tpu.vector_store %arg6[%c0_91, %c0_92], %296 {strides = array<i32>} : memref<8x128xf32, #tpu.memory_space<vmem>>, vector<8x128xf32>,
    %c0_93 = arith.constant 0 : index
    %c0_94 = arith.constant 0 : index
    %302 = vector.load %arg7[%c0_93, %c0_94] : memref<8x128xf32, #tpu.memory_space<vmem>>, vector<8x128xf32>
    tpu.vector_store %arg7[%c0_93, %c0_94], %294 {strides = array<i32>} : memref<8x128xf32, #tpu.memory_space<vmem>>, vector<8x128xf32>,
    %c0_95 = arith.constant 0 : index
    %c0_96 = arith.constant 0 : index
    %c0_97 = arith.constant 0 : index
    %303 = vector.load %arg9[%c0_95, %c0_96, %c0_97] : memref<8x8x128xf32, #tpu.memory_space<vmem>>, vector<8x8x128xf32>
    %304 = tpu.transpose %303, [1, 0, 2] : vector<8x8x128xf32> -> vector<8x8x128xf32>
    %c0_98 = arith.constant 0 : index
    %c0_99 = arith.constant 0 : index
    %c0_100 = arith.constant 0 : index
    %305 = vector.load %arg5[%c0_98, %c0_99, %c0_100] : memref<8x8x128xf32, #tpu.memory_space<vmem>>, vector<8x8x128xf32>
    tpu.vector_store %arg5[%c0_98, %c0_99, %c0_100], %304 {strides = array<i32>} : memref<8x8x128xf32, #tpu.memory_space<vmem>>, vector<8x8x128xf32>,
    return
  }
  func.func @transform_0(%arg0: i32) -> (i32, i32, i32) {
    %c0_i32 = arith.constant 0 : i32
    %c0_i32_0 = arith.constant 0 : i32
    %c0_i32_1 = arith.constant 0 : i32
    return %arg0, %c0_i32, %c0_i32_0 : i32, i32, i32
  }
  func.func @transform_1(%arg0: i32) -> (i32, i32) {
    %c0_i32 = arith.constant 0 : i32
    %c0_i32_0 = arith.constant 0 : i32
    %c0_i32_1 = arith.constant 0 : i32
    return %c0_i32, %c0_i32_0 : i32, i32
  }
  func.func @transform_2(%arg0: i32) -> (i32, i32) {
    %c0_i32 = arith.constant 0 : i32
    %c0_i32_0 = arith.constant 0 : i32
    %c0_i32_1 = arith.constant 0 : i32
    return %c0_i32, %c0_i32_0 : i32, i32
  }
  func.func @transform_3(%arg0: i32) -> (i32, i32) {
    %c0_i32 = arith.constant 0 : i32
    %c0_i32_0 = arith.constant 0 : i32
    %c0_i32_1 = arith.constant 0 : i32
    return %c0_i32, %c0_i32_0 : i32, i32
  }
  func.func @transform_4(%arg0: i32) -> (i32, i32, i32) {
    %c0_i32 = arith.constant 0 : i32
    %c0_i32_0 = arith.constant 0 : i32
    %c0_i32_1 = arith.constant 0 : i32
    return %arg0, %c0_i32, %c0_i32_0 : i32, i32, i32
  }
  func.func @transform_5(%arg0: i32) -> (i32, i32) {
    %c0_i32 = arith.constant 0 : i32
    %c0_i32_0 = arith.constant 0 : i32
    return %arg0, %c0_i32 : i32, i32
  }
  func.func @transform_6(%arg0: i32) -> (i32, i32) {
    %c0_i32 = arith.constant 0 : i32
    %c0_i32_0 = arith.constant 0 : i32
    return %arg0, %c0_i32 : i32, i32
  }
}

</mosaic_0001>

<llo_original>
// kernel: tpu_custom_call.1
$region0: #{tpu_custom_call.1}
  #allocation0 [shape = 'u32[]', space=smem, size = 0x4, offset = 0x4, fixed_abs, tag = 'smem constant byte address 0x4 - core index']
  #allocation1 [shape = 'u32[144,128]{1,0:T(1,128)}', space=vmem, size = 0x12000, scoped, tag = 'internal scratch']
  #allocation2 [shape = 'f32[8,8,512]{2,1,0:T(8,128)}', space=vmem, size = 0x20000, scoped, tag = 'scratch operand']
  #allocation3 [shape = 'f32[8,8,128]{2,1,0:T(8,128)}', space=vmem, size = 0x8000, scoped, tag = 'scratch operand']
  %s0 = inlined_call_operand.hbm [shape: f32[8,8,100], index: 0, kind: input, shape index: {}]
  %s1 = inlined_call_operand.hbm [shape: bf16[100,512], index: 1, kind: input, shape index: {}]
  %s2 = inlined_call_operand.hbm [shape: bf16[128,512], index: 2, kind: input, shape index: {}]
  %s3 = inlined_call_operand.vmem [shape: f32[1,512], index: 3, kind: input, shape index: {}]
  %s4 = inlined_call_operand.hbm [shape: f32[8,8,128], index: 4, kind: output, shape index: {0}]
  %s5 = inlined_call_operand.hbm [shape: f32[8,128], index: 5, kind: output, shape index: {1}]
  %s6 = inlined_call_operand.hbm [shape: f32[8,128], index: 6, kind: output, shape index: {2}]
  %7 = xla_tuple %s4, %s5, %s6
  %s8 = sld [smem:[#allocation0]]
  $region54: #{tpu_custom_call.1} parent=0
    _
  %s10 = ssub.s32 1, %s8
  %s11 = scalar_select 0, %s10, %s8
  $region1: #{tpu_custom_call.1} parent=0
    #allocation4 [shape = 'u8[32768]{0}', space=vmem, size = 0x8000, scoped, tag = 'input window, operand 0, single buffered']
    #allocation5 [shape = 's32[1]{0}', space=sflag, size = 0x4, scoped, tag = 'scoped memory for tpu_custom_call.1']
    #allocation6 [shape = 's32[1]{0}', space=sflag, size = 0x4, scoped, tag = 'scoped memory for tpu_custom_call.1']
    #allocation7 [shape = 'u8[106496]{0}', space=vmem, size = 0x1a000, scoped, tag = 'input window, operand 1, single buffered']
    #allocation8 [shape = 's32[1]{0}', space=sflag, size = 0x4, scoped, tag = 'scoped memory for tpu_custom_call.1']
    #allocation9 [shape = 'u8[131072]{0}', space=vmem, size = 0x20000, scoped, tag = 'input window, operand 2, single buffered']
    #allocation10 [shape = 'u8[32768]{0}', space=vmem, size = 0x8000, scoped, tag = 'output window, operand 0, single buffered']
    #allocation11 [shape = 'u8[4096]{0}', space=vmem, size = 0x1000, scoped, tag = 'output window, operand 1, single buffered']
    #allocation12 [shape = 's32[1]{0}', space=sflag, size = 0x4, scoped, tag = 'scoped memory for tpu_custom_call.1']
    #allocation13 [shape = 'u8[4096]{0}', space=vmem, size = 0x1000, scoped, tag = 'output window, operand 2, single buffered']
    %12 = vsyncpa [#allocation5], 0
    %13 = vsyncpa [#allocation8], 0
    %14 = vsyncpa [#allocation6], 0
    %15 = vsyncpa [#allocation12], 0
    // Predicated region
    $region2: #{tpu_custom_call.1} parent=1 // pred_check
      _
    $region3: #{tpu_custom_call.1} parent=1 // pred_check_branch
      %17 = sbr.rel (0) target = $region5
    $region4: #{tpu_custom_call.1} parent=1 // pred_region
      %s19 = ssub.s32 1024, 1024
      %20 = vsyncadd [#allocation5], %s19
      %s21 = sshll.u32 [#allocation4], 4
      %s22 = int_to_ptr.vmem [resolvable:$true] %s21
      %27 = dma.hbm_to_vmem [thread:$0]  %s0, 1024, %s22, [#allocation5], 128, 128, 8
    $region5: #{tpu_custom_call.1} parent=1 // pred_fallthru
      _
    // Predicated region
    $region6: #{tpu_custom_call.1} parent=1 // pred_check
      _
    $region7: #{tpu_custom_call.1} parent=1 // pred_check_branch
      %29 = sbr.rel (0) target = $region9
    $region8: #{tpu_custom_call.1} parent=1 // pred_region
      %s31 = ssub.s32 3328, 3328
      %32 = vsyncadd [#allocation8], %s31
      %s33 = sshll.u32 [#allocation7], 4
      %s34 = int_to_ptr.vmem [resolvable:$true] %s33
      %39 = dma.hbm_to_vmem [thread:$0]  %s1, 3328, %s34, [#allocation8], 256, 256, 16
    $region9: #{tpu_custom_call.1} parent=1 // pred_fallthru
      _
    // Predicated region
    $region10: #{tpu_custom_call.1} parent=1 // pred_check
      _
    $region11: #{tpu_custom_call.1} parent=1 // pred_check_branch
      %41 = sbr.rel (0) target = $region13
    $region12: #{tpu_custom_call.1} parent=1 // pred_region
      %s43 = ssub.s32 4096, 4096
      %44 = vsyncadd [#allocation8], %s43
      %s45 = sshll.u32 [#allocation9], 4
      %s46 = int_to_ptr.vmem [resolvable:$true] %s45
      %51 = dma.hbm_to_vmem [thread:$0]  %s2, 4096, %s46, [#allocation8], 256, 256, 16
    $region13: #{tpu_custom_call.1} parent=1 // pred_fallthru
      _
    // Predicated region
    $region14: #{tpu_custom_call.1} parent=1 // pred_check
      _
    $region15: #{tpu_custom_call.1} parent=1 // pred_check_branch
      %53 = sbr.rel (0) target = $region17
    $region16: #{tpu_custom_call.1} parent=1 // pred_region
      _
    $region17: #{tpu_custom_call.1} parent=1 // pred_fallthru
      _
    // Predicated region
    $region18: #{tpu_custom_call.1} parent=1 // pred_check
      _
    $region19: #{tpu_custom_call.1} parent=1 // pred_check_branch
      %55 = sbr.rel (0) target = $region21
    $region20: #{tpu_custom_call.1} parent=1 // pred_region
      %56 = dma.done [#allocation5], 1024
    $region21: #{tpu_custom_call.1} parent=1 // pred_fallthru
      _
    // Predicated region
    $region22: #{tpu_custom_call.1} parent=1 // pred_check
      _
    $region23: #{tpu_custom_call.1} parent=1 // pred_check_branch
      %58 = sbr.rel (0) target = $region25
    $region24: #{tpu_custom_call.1} parent=1 // pred_region
      %59 = dma.done [#allocation8], 3328
    $region25: #{tpu_custom_call.1} parent=1 // pred_fallthru
      _
    // Predicated region
    $region26: #{tpu_custom_call.1} parent=1 // pred_check
      _
    $region27: #{tpu_custom_call.1} parent=1 // pred_check_branch
      %61 = sbr.rel (0) target = $region29
    $region28: #{tpu_custom_call.1} parent=1 // pred_region
      %62 = dma.done [#allocation8], 4096
    $region29: #{tpu_custom_call.1} parent=1 // pred_fallthru
      _
    %v64 = vld [vmem:[#allocation4] sm:$0xff]
    %v65 = vld [vmem:[#allocation4 + $0x8] sm:$0xff]
    %v66 = vld [vmem:[#allocation4 + $0x10] sm:$0xff]
    %v67 = vld [vmem:[#allocation4 + $0x18] sm:$0xff]
    %v68 = vld [vmem:[#allocation4 + $0x20] sm:$0xff]
    %v69 = vld [vmem:[#allocation4 + $0x28] sm:$0xff]
    %v70 = vld [vmem:[#allocation4 + $0x30] sm:$0xff]
    %v71 = vld [vmem:[#allocation4 + $0x38] sm:$0xff]
    %v72 = vcombine.low %v64, %v66
    %v73 = vcombine.high %v64, %v66
    %v75 = vunpack.c.l.s4 1983009808
    %v76 = vunpack.c.0.s8 %v75
    %v77 = vlaneseq
    %v78 = vshrl.u32 %v77, 7
    %v79 = vsub.s32 %v76, %v78
    %v80 = vrot.slane %v72, %v79
    %v82 = vunpack.c.l.s4 1983009808
    %v83 = vunpack.c.0.s8 %v82
    %v84 = vlaneseq
    %v85 = vshrl.u32 %v84, 7
    %v86 = vsub.s32 %v83, %v85
    %v87 = vrot.slane %v73, %v86
    %v88 = vcombine.low %v65, %v67
    %v89 = vcombine.high %v65, %v67
    %v91 = vunpack.c.l.s4 1983009808
    %v92 = vunpack.c.0.s8 %v91
    %v93 = vlaneseq
    %v94 = vshrl.u32 %v93, 7
    %v95 = vsub.s32 %v92, %v94
    %v96 = vrot.slane %v88, %v95
    %v98 = vunpack.c.l.s4 1983009808
    %v99 = vunpack.c.0.s8 %v98
    %v100 = vlaneseq
    %v101 = vshrl.u32 %v100, 7
    %v102 = vsub.s32 %v99, %v101
    %v103 = vrot.slane %v89, %v102
    %v104 = vcombine.low %v68, %v70
    %v105 = vcombine.high %v68, %v70
    %v107 = vunpack.c.l.s4 1983009808
    %v108 = vunpack.c.0.s8 %v107
    %v109 = vlaneseq
    %v110 = vshrl.u32 %v109, 7
    %v111 = vsub.s32 %v108, %v110
    %v112 = vrot.slane %v104, %v111
    %v114 = vunpack.c.l.s4 1983009808
    %v115 = vunpack.c.0.s8 %v114
    %v116 = vlaneseq
    %v117 = vshrl.u32 %v116, 7
    %v118 = vsub.s32 %v115, %v117
    %v119 = vrot.slane %v105, %v118
    %v120 = vcombine.low %v69, %v71
    %v121 = vcombine.high %v69, %v71
    %v123 = vunpack.c.l.s4 1983009808
    %v124 = vunpack.c.0.s8 %v123
    %v125 = vlaneseq
    %v126 = vshrl.u32 %v125, 7
    %v127 = vsub.s32 %v124, %v126
    %v128 = vrot.slane %v120, %v127
    %v130 = vunpack.c.l.s4 1983009808
    %v131 = vunpack.c.0.s8 %v130
    %v132 = vlaneseq
    %v133 = vshrl.u32 %v132, 7
    %v134 = vsub.s32 %v131, %v133
    %v135 = vrot.slane %v121, %v134
    %v136 = vcombine.low %v80, %v96
    %v137 = vcombine.high %v80, %v96
    %v139 = vunpack.c.l.s4 1934713408
    %v140 = vunpack.c.0.s8 %v139
    %v141 = vlaneseq
    %v142 = vshrl.u32 %v141, 7
    %v143 = vsub.s32 %v140, %v142
    %v144 = vrot.slane %v136, %v143
    %v146 = vunpack.c.l.s4 1934713408
    %v147 = vunpack.c.0.s8 %v146
    %v148 = vlaneseq
    %v149 = vshrl.u32 %v148, 7
    %v150 = vsub.s32 %v147, %v149
    %v151 = vrot.slane %v137, %v150
    %v152 = vcombine.low %v87, %v103
    %v153 = vcombine.high %v87, %v103
    %v155 = vunpack.c.l.s4 1934713408
    %v156 = vunpack.c.0.s8 %v155
    %v157 = vlaneseq
    %v158 = vshrl.u32 %v157, 7
    %v159 = vsub.s32 %v156, %v158
    %v160 = vrot.slane %v152, %v159
    %v162 = vunpack.c.l.s4 1934713408
    %v163 = vunpack.c.0.s8 %v162
    %v164 = vlaneseq
    %v165 = vshrl.u32 %v164, 7
    %v166 = vsub.s32 %v163, %v165
    %v167 = vrot.slane %v153, %v166
    %v168 = vcombine.low %v112, %v128
    %v169 = vcombine.high %v112, %v128
    %v171 = vunpack.c.l.s4 1934713408
    %v172 = vunpack.c.0.s8 %v171
    %v173 = vlaneseq
    %v174 = vshrl.u32 %v173, 7
    %v175 = vsub.s32 %v172, %v174
    %v176 = vrot.slane %v168, %v175
    %v178 = vunpack.c.l.s4 1934713408
    %v179 = vunpack.c.0.s8 %v178
    %v180 = vlaneseq
    %v181 = vshrl.u32 %v180, 7
    %v182 = vsub.s32 %v179, %v181
    %v183 = vrot.slane %v169, %v182
    %v184 = vcombine.low %v119, %v135
    %v185 = vcombine.high %v119, %v135
    %v187 = vunpack.c.l.s4 1934713408
    %v188 = vunpack.c.0.s8 %v187
    %v189 = vlaneseq
    %v190 = vshrl.u32 %v189, 7
    %v191 = vsub.s32 %v188, %v190
    %v192 = vrot.slane %v184, %v191
    %v194 = vunpack.c.l.s4 1934713408
    %v195 = vunpack.c.0.s8 %v194
    %v196 = vlaneseq
    %v197 = vshrl.u32 %v196, 7
    %v198 = vsub.s32 %v195, %v197
    %v199 = vrot.slane %v185, %v198
    %v200 = vcombine.low %v144, %v176
    %v201 = vcombine.high %v144, %v176
    %v202 = vcombine.low %v151, %v183
    %v203 = vcombine.high %v151, %v183
    %v204 = vcombine.low %v160, %v192
    %v205 = vcombine.high %v160, %v192
    %v206 = vcombine.low %v167, %v199
    %v207 = vcombine.high %v167, %v199
    %v208 = vpack.c.bf16 %v201, %v200
    %v209 = vpack.c.bf16 %v203, %v202
    %v210 = vpack.c.bf16 %v205, %v204
    %v211 = vpack.c.bf16 %v207, %v206
    %v212 = vld [vmem:[#allocation7] sm:$0xff]
    %v213 = vld [vmem:[#allocation7 + $0x8] sm:$0xff]
    %v214 = vld [vmem:[#allocation7 + $0x10] sm:$0xff]
    %v215 = vld [vmem:[#allocation7 + $0x18] sm:$0xff]
    %v216 = vld [vmem:[#allocation7 + $0x20] sm:$0xff]
    %v217 = vld [vmem:[#allocation7 + $0x28] sm:$0xff]
    %v218 = vld [vmem:[#allocation7 + $0x30] sm:$0xff]
    %v219 = vld [vmem:[#allocation7 + $0x38] sm:$0xff]
    %v220 = vld [vmem:[#allocation7 + $0x40] sm:$0xff]
    %v221 = vld [vmem:[#allocation7 + $0x48] sm:$0xff]
    %v222 = vld [vmem:[#allocation7 + $0x50] sm:$0xff]
    %v223 = vld [vmem:[#allocation7 + $0x58] sm:$0xff]
    %v224 = vld [vmem:[#allocation7 + $0x60] sm:$0xff]
    %v225 = vld [vmem:[#allocation7 + $0x68] sm:$0xff]
    %v226 = vld [vmem:[#allocation7 + $0x70] sm:$0xff]
    %v227 = vld [vmem:[#allocation7 + $0x78] sm:$0xff]
    %v228 = vld [vmem:[#allocation7 + $0x80] sm:$0xff]
    %v229 = vld [vmem:[#allocation7 + $0x88] sm:$0xff]
    %v230 = vld [vmem:[#allocation7 + $0x90] sm:$0xff]
    %v231 = vld [vmem:[#allocation7 + $0x98] sm:$0xff]
    %v232 = vld [vmem:[#allocation7 + $0xa0] sm:$0xff]
    %v233 = vld [vmem:[#allocation7 + $0xa8] sm:$0xff]
    %v234 = vld [vmem:[#allocation7 + $0xb0] sm:$0xff]
    %v235 = vld [vmem:[#allocation7 + $0xb8] sm:$0xff]
    %v236 = vld [vmem:[#allocation7 + $0xc0] sm:$0x33]
    %v237 = vld [vmem:[#allocation7 + $0xc8] sm:$0x33]
    %v238 = vld [vmem:[%s3] sm:$0xf]
    %v240 = vlaneseq
    %v241 = vshrl.u32 %v240, 7
    %v242 = vsub.s32 0, %v241
    %v243 = vrot.slane %v238, %v242
    %v244 = vlaneseq
    %v245 = vshrl.u32 %v244, 7
    %v246 = vsub.s32 1, %v245
    %v247 = vrot.slane %v238, %v246
    %v248 = vlaneseq
    %v249 = vshrl.u32 %v248, 7
    %v250 = vsub.s32 2, %v249
    %v251 = vrot.slane %v238, %v250
    %v252 = vlaneseq
    %v253 = vshrl.u32 %v252, 7
    %v254 = vsub.s32 3, %v253
    %v255 = vrot.slane %v238, %v254
    %v286 = vunpack.c.l.b16 %v212
    %v287 = vunpack.c.h.b16 %v212
    %v288 = vunpack.c.l.b16 %v213
    %v289 = vunpack.c.h.b16 %v213
    %v290 = vunpack.c.l.b16 %v214
    %v291 = vunpack.c.h.b16 %v214
    %v292 = vunpack.c.l.b16 %v215
    %v293 = vunpack.c.h.b16 %v215
    %v294 = vunpack.c.l.b16 %v216
    %v295 = vunpack.c.h.b16 %v216
    %v296 = vunpack.c.l.b16 %v217
    %v297 = vunpack.c.h.b16 %v217
    %v298 = vunpack.c.l.b16 %v218
    %v299 = vunpack.c.h.b16 %v218
    %v300 = vunpack.c.l.b16 %v219
    %v301 = vunpack.c.h.b16 %v219
    %v302 = vunpack.c.l.b16 %v220
    %v303 = vunpack.c.h.b16 %v220
    %v304 = vunpack.c.l.b16 %v221
    %v305 = vunpack.c.h.b16 %v221
    %v306 = vunpack.c.l.b16 %v222
    %v307 = vunpack.c.h.b16 %v222
    %v308 = vunpack.c.l.b16 %v223
    %v309 = vunpack.c.h.b16 %v223
    %v310 = vunpack.c.l.b16 %v224
    %v311 = vunpack.c.h.b16 %v224
    %v312 = vunpack.c.l.b16 %v225
    %v313 = vunpack.c.h.b16 %v225
    %v314 = vunpack.c.l.b16 %v226
    %v315 = vunpack.c.h.b16 %v226
    %v316 = vunpack.c.l.b16 %v227
    %v317 = vunpack.c.h.b16 %v227
    %v318 = vunpack.c.l.b16 %v228
    %v319 = vunpack.c.h.b16 %v228
    %v320 = vunpack.c.l.b16 %v229
    %v321 = vunpack.c.h.b16 %v229
    %v322 = vunpack.c.l.b16 %v230
    %v323 = vunpack.c.h.b16 %v230
    %v324 = vunpack.c.l.b16 %v231
    %v325 = vunpack.c.h.b16 %v231
    %v326 = vunpack.c.l.b16 %v232
    %v327 = vunpack.c.h.b16 %v232
    %v328 = vunpack.c.l.b16 %v233
    %v329 = vunpack.c.h.b16 %v233
    %v330 = vunpack.c.l.b16 %v234
    %v331 = vunpack.c.h.b16 %v234
    %v332 = vunpack.c.l.b16 %v235
    %v333 = vunpack.c.h.b16 %v235
    %v334 = vunpack.c.l.b16 %v236
    %v335 = vunpack.c.h.b16 %v236
    %v336 = vunpack.c.l.b16 %v237
    %v337 = vunpack.c.h.b16 %v237
    %v338 = vpack.c.b16 %v290, %v286
    %v339 = vpack.c.b16 %v291, %v287
    %v340 = vpack.c.b16 %v292, %v288
    %v341 = vpack.c.b16 %v293, %v289
    %v342 = vpack.c.b16 %v298, %v294
    %v343 = vpack.c.b16 %v299, %v295
    %v344 = vpack.c.b16 %v300, %v296
    %v345 = vpack.c.b16 %v301, %v297
    %v346 = vpack.c.b16 %v306, %v302
    %v347 = vpack.c.b16 %v307, %v303
    %v348 = vpack.c.b16 %v308, %v304
    %v349 = vpack.c.b16 %v309, %v305
    %v350 = vpack.c.b16 %v314, %v310
    %v351 = vpack.c.b16 %v315, %v311
    %v352 = vpack.c.b16 %v316, %v312
    %v353 = vpack.c.b16 %v317, %v313
    %v354 = vpack.c.b16 %v322, %v318
    %v355 = vpack.c.b16 %v323, %v319
    %v356 = vpack.c.b16 %v324, %v320
    %v357 = vpack.c.b16 %v325, %v321
    %v358 = vpack.c.b16 %v330, %v326
    %v359 = vpack.c.b16 %v331, %v327
    %v360 = vpack.c.b16 %v332, %v328
    %v361 = vpack.c.b16 %v333, %v329
    %v362 = vpack.c.b16 %v334, %v334
    %v363 = vpack.c.b16 %v335, %v335
    %v364 = vpack.c.b16 %v336, %v336
    %v365 = vpack.c.b16 %v337, %v337
    %vm390 = vcmask 818176
    %v392 = vsel %vm390, %v208, 0
    %v395 = vsel %vm390, %v209, 0
    %v398 = vsel %vm390, %v210, 0
    %v401 = vsel %vm390, %v211, 0
    %vm403 = vcmask 1041408
    %v405 = vsel %vm403, %v362, 0
    %v408 = vsel %vm403, %v363, 0
    %v411 = vsel %vm403, %v364, 0
    %v414 = vsel %vm403, %v365, 0
    %416 = vmatprep.subr.bf16.mxu0 %v339
    %417 = vmatpush1.bf16.msra.mxu0 %v338
    %418 = vmatprep.subr.bf16.mxu0 %v343
    %419 = vmatpush1.bf16.msra.mxu0 %v342
    %420 = vmatprep.subr.bf16.mxu0 %v347
    %421 = vmatpush1.bf16.msra.mxu0 %v346
    %422 = vmatprep.subr.bf16.mxu0 %v351
    %423 = vmatpush1.bf16.msra.mxu0 %v350
    %424 = vmatprep.subr.bf16.mxu0 %v355
    %425 = vmatpush1.bf16.msra.mxu0 %v354
    %426 = vmatprep.subr.bf16.mxu0 %v359
    %427 = vmatpush1.bf16.msra.mxu0 %v358
    %428 = vmatprep.subr.bf16.mxu0 %v408
    %429 = vmatpush1.bf16.msra.mxu0 %v405
    %430 = vmatprep.subr.bf16.mxu0 0
    %431 = vmatpush1.bf16.msra.mxu0 0
    %432 = vmatprep.subr.bf16.mxu0 0
    %433 = vmatpush1.bf16.msra.mxu0 0
    %434 = vmatprep.subr.bf16.mxu0 0
    %435 = vmatpush1.bf16.msra.mxu0 0
    %436 = vmatprep.subr.bf16.mxu0 0
    %437 = vmatpush1.bf16.msra.mxu0 0
    %438 = vmatprep.subr.bf16.mxu0 0
    %439 = vmatpush1.bf16.msra.mxu0 0
    %440 = vmatprep.subr.bf16.mxu0 0
    %441 = vmatpush1.bf16.msra.mxu0 0
    %442 = vmatprep.subr.bf16.mxu0 0
    %443 = vmatpush1.bf16.msra.mxu0 0
    %444 = vmatprep.subr.bf16.mxu0 0
    %445 = vmatpush1.bf16.msra.mxu0 0
    %446 = vmatprep.subr.bf16.mxu0 0
    %447 = vmatpush1.bf16.msra.mxu0 0
    %448 = vmatprep.mubr.bf16.mxu0 0
    %449 = vmatmul.mubr.bf16.gmra.mrb[0].mxu0 %v392
    %v450 = vpop.f32.mrb[0].mxu0
    %v451 = vadd.f32 %v243, %v450
    %v452 = vpop.f32.mrb[0].mxu0
    %v453 = vadd.f32 %v247, %v452
    %v454 = vpop.f32.mrb[0].mxu0
    %v455 = vadd.f32 %v243, %v454
    %v456 = vpop.f32.mrb[0].mxu0
    %v457 = vadd.f32 %v247, %v456
    %458 = vmatprep.mubr.bf16.mxu0 0
    %459 = vmatmul.mubr.bf16.gmra.mrb[0].mxu0 %v395
    %v460 = vpop.f32.mrb[0].mxu0
    %v461 = vadd.f32 %v243, %v460
    %v462 = vpop.f32.mrb[0].mxu0
    %v463 = vadd.f32 %v247, %v462
    %v464 = vpop.f32.mrb[0].mxu0
    %v465 = vadd.f32 %v243, %v464
    %v466 = vpop.f32.mrb[0].mxu0
    %v467 = vadd.f32 %v247, %v466
    %468 = vmatprep.mubr.bf16.mxu0 0
    %469 = vmatmul.mubr.bf16.gmra.mrb[0].mxu0 %v398
    %v470 = vpop.f32.mrb[0].mxu0
    %v471 = vadd.f32 %v243, %v470
    %v472 = vpop.f32.mrb[0].mxu0
    %v473 = vadd.f32 %v247, %v472
    %v474 = vpop.f32.mrb[0].mxu0
    %v475 = vadd.f32 %v243, %v474
    %v476 = vpop.f32.mrb[0].mxu0
    %v477 = vadd.f32 %v247, %v476
    %478 = vmatprep.mubr.bf16.mxu0 0
    %479 = vmatmul.mubr.bf16.gmra.mrb[0].mxu0 %v401
    %v480 = vpop.f32.mrb[0].mxu0
    %v481 = vadd.f32 %v243, %v480
    %v482 = vpop.f32.mrb[0].mxu0
    %v483 = vadd.f32 %v247, %v482
    %v484 = vpop.f32.mrb[0].mxu0
    %v485 = vadd.f32 %v243, %v484
    %v486 = vpop.f32.mrb[0].mxu0
    %v487 = vadd.f32 %v247, %v486
    %488 = vdwg.mxu0
    %489 = vmatprep.subr.bf16.mxu0 %v341
    %490 = vmatpush1.bf16.msra.mxu0 %v340
    %491 = vmatprep.subr.bf16.mxu0 %v345
    %492 = vmatpush1.bf16.msra.mxu0 %v344
    %493 = vmatprep.subr.bf16.mxu0 %v349
    %494 = vmatpush1.bf16.msra.mxu0 %v348
    %495 = vmatprep.subr.bf16.mxu0 %v353
    %496 = vmatpush1.bf16.msra.mxu0 %v352
    %497 = vmatprep.subr.bf16.mxu0 %v357
    %498 = vmatpush1.bf16.msra.mxu0 %v356
    %499 = vmatprep.subr.bf16.mxu0 %v361
    %500 = vmatpush1.bf16.msra.mxu0 %v360
    %501 = vmatprep.subr.bf16.mxu0 %v414
    %502 = vmatpush1.bf16.msra.mxu0 %v411
    %503 = vmatprep.subr.bf16.mxu0 0
    %504 = vmatpush1.bf16.msra.mxu0 0
    %505 = vmatprep.subr.bf16.mxu0 0
    %506 = vmatpush1.bf16.msra.mxu0 0
    %507 = vmatprep.subr.bf16.mxu0 0
    %508 = vmatpush1.bf16.msra.mxu0 0
    %509 = vmatprep.subr.bf16.mxu0 0
    %510 = vmatpush1.bf16.msra.mxu0 0
    %511 = vmatprep.subr.bf16.mxu0 0
    %512 = vmatpush1.bf16.msra.mxu0 0
    %513 = vmatprep.subr.bf16.mxu0 0
    %514 = vmatpush1.bf16.msra.mxu0 0
    %515 = vmatprep.subr.bf16.mxu0 0
    %516 = vmatpush1.bf16.msra.mxu0 0
    %517 = vmatprep.subr.bf16.mxu0 0
    %518 = vmatpush1.bf16.msra.mxu0 0
    %519 = vmatprep.subr.bf16.mxu0 0
    %520 = vmatpush1.bf16.msra.mxu0 0
    %521 = vmatprep.mubr.bf16.mxu0 0
    %522 = vmatmul.mubr.bf16.gmra.mrb[0].mxu0 %v392
    %v523 = vpop.f32.mrb[0].mxu0
    %v524 = vadd.f32 %v251, %v523
    %v525 = vpop.f32.mrb[0].mxu0
    %v526 = vadd.f32 %v255, %v525
    %v527 = vpop.f32.mrb[0].mxu0
    %v528 = vadd.f32 %v251, %v527
    %v529 = vpop.f32.mrb[0].mxu0
    %v530 = vadd.f32 %v255, %v529
    %531 = vmatprep.mubr.bf16.mxu0 0
    %532 = vmatmul.mubr.bf16.gmra.mrb[0].mxu0 %v395
    %v533 = vpop.f32.mrb[0].mxu0
    %v534 = vadd.f32 %v251, %v533
    %v535 = vpop.f32.mrb[0].mxu0
    %v536 = vadd.f32 %v255, %v535
    %v537 = vpop.f32.mrb[0].mxu0
    %v538 = vadd.f32 %v251, %v537
    %v539 = vpop.f32.mrb[0].mxu0
    %v540 = vadd.f32 %v255, %v539
    %541 = vmatprep.mubr.bf16.mxu0 0
    %542 = vmatmul.mubr.bf16.gmra.mrb[0].mxu0 %v398
    %v543 = vpop.f32.mrb[0].mxu0
    %v544 = vadd.f32 %v251, %v543
    %v545 = vpop.f32.mrb[0].mxu0
    %v546 = vadd.f32 %v255, %v545
    %v547 = vpop.f32.mrb[0].mxu0
    %v548 = vadd.f32 %v251, %v547
    %v549 = vpop.f32.mrb[0].mxu0
    %v550 = vadd.f32 %v255, %v549
    %551 = vmatprep.mubr.bf16.mxu0 0
    %552 = vmatmul.mubr.bf16.gmra.mrb[0].mxu0 %v401
    %v553 = vpop.f32.mrb[0].mxu0
    %v554 = vadd.f32 %v251, %v553
    %v555 = vpop.f32.mrb[0].mxu0
    %v556 = vadd.f32 %v255, %v555
    %v557 = vpop.f32.mrb[0].mxu0
    %v558 = vadd.f32 %v251, %v557
    %v559 = vpop.f32.mrb[0].mxu0
    %v560 = vadd.f32 %v255, %v559
    %561 = vdwg.mxu0
    %562 = vst [vmem:[#allocation2] sm:$0xff] %v451
    %563 = vst [vmem:[#allocation2 + $0x8] sm:$0xff] %v453
    %564 = vst [vmem:[#allocation2 + $0x10] sm:$0xff] %v524
    %565 = vst [vmem:[#allocation2 + $0x18] sm:$0xff] %v526
    %566 = vst [vmem:[#allocation2 + $0x20] sm:$0xff] %v455
    %567 = vst [vmem:[#allocation2 + $0x28] sm:$0xff] %v457
    %568 = vst [vmem:[#allocation2 + $0x30] sm:$0xff] %v528
    %569 = vst [vmem:[#allocation2 + $0x38] sm:$0xff] %v530
    %570 = vst [vmem:[#allocation2 + $0x40] sm:$0xff] %v461
    %571 = vst [vmem:[#allocation2 + $0x48] sm:$0xff] %v463
    %572 = vst [vmem:[#allocation2 + $0x50] sm:$0xff] %v534
    %573 = vst [vmem:[#allocation2 + $0x58] sm:$0xff] %v536
    %574 = vst [vmem:[#allocation2 + $0x60] sm:$0xff] %v465
    %575 = vst [vmem:[#allocation2 + $0x68] sm:$0xff] %v467
    %576 = vst [vmem:[#allocation2 + $0x70] sm:$0xff] %v538
    %577 = vst [vmem:[#allocation2 + $0x78] sm:$0xff] %v540
    %578 = vst [vmem:[#allocation2 + $0x80] sm:$0xff] %v471
    %579 = vst [vmem:[#allocation2 + $0x88] sm:$0xff] %v473
    %580 = vst [vmem:[#allocation2 + $0x90] sm:$0xff] %v544
    %581 = vst [vmem:[#allocation2 + $0x98] sm:$0xff] %v546
    %582 = vst [vmem:[#allocation2 + $0xa0] sm:$0xff] %v475
    %583 = vst [vmem:[#allocation2 + $0xa8] sm:$0xff] %v477
    %584 = vst [vmem:[#allocation2 + $0xb0] sm:$0xff] %v548
    %585 = vst [vmem:[#allocation2 + $0xb8] sm:$0xff] %v550
    %586 = vst [vmem:[#allocation2 + $0xc0] sm:$0xff] %v481
    %587 = vst [vmem:[#allocation2 + $0xc8] sm:$0xff] %v483
    %588 = vst [vmem:[#allocation2 + $0xd0] sm:$0xff] %v554
    %589 = vst [vmem:[#allocation2 + $0xd8] sm:$0xff] %v556
    %590 = vst [vmem:[#allocation2 + $0xe0] sm:$0xff] %v485
    %591 = vst [vmem:[#allocation2 + $0xe8] sm:$0xff] %v487
    %592 = vst [vmem:[#allocation2 + $0xf0] sm:$0xff] %v558
    %593 = vst [vmem:[#allocation2 + $0xf8] sm:$0xff] %v560
    %v594 = vld [vmem:[#allocation2] sm:$0xff]
    %v595 = vld [vmem:[#allocation2 + $0x8] sm:$0xff]
    %v596 = vld [vmem:[#allocation2 + $0x10] sm:$0xff]
    %v597 = vld [vmem:[#allocation2 + $0x18] sm:$0xff]
    %v598 = vld [vmem:[#allocation9] sm:$0xff]
    %v599 = vld [vmem:[#allocation9 + $0x8] sm:$0xff]
    %v600 = vld [vmem:[#allocation9 + $0x10] sm:$0xff]
    %v601 = vld [vmem:[#allocation9 + $0x18] sm:$0xff]
    %v602 = vld [vmem:[#allocation9 + $0x20] sm:$0xff]
    %v603 = vld [vmem:[#allocation9 + $0x28] sm:$0xff]
    %v604 = vld [vmem:[#allocation9 + $0x30] sm:$0xff]
    %v605 = vld [vmem:[#allocation9 + $0x38] sm:$0xff]
    %v606 = vld [vmem:[#allocation9 + $0x40] sm:$0xff]
    %v607 = vld [vmem:[#allocation9 + $0x48] sm:$0xff]
    %v608 = vld [vmem:[#allocation9 + $0x50] sm:$0xff]
    %v609 = vld [vmem:[#allocation9 + $0x58] sm:$0xff]
    %v610 = vld [vmem:[#allocation9 + $0x60] sm:$0xff]
    %v611 = vld [vmem:[#allocation9 + $0x68] sm:$0xff]
    %v612 = vld [vmem:[#allocation9 + $0x70] sm:$0xff]
    %v613 = vld [vmem:[#allocation9 + $0x78] sm:$0xff]
    %v614 = vld [vmem:[#allocation9 + $0x80] sm:$0xff]
    %v615 = vld [vmem:[#allocation9 + $0x88] sm:$0xff]
    %v616 = vld [vmem:[#allocation9 + $0x90] sm:$0xff]
    %v617 = vld [vmem:[#allocation9 + $0x98] sm:$0xff]
    %v618 = vld [vmem:[#allocation9 + $0xa0] sm:$0xff]
    %v619 = vld [vmem:[#allocation9 + $0xa8] sm:$0xff]
    %v620 = vld [vmem:[#allocation9 + $0xb0] sm:$0xff]
    %v621 = vld [vmem:[#allocation9 + $0xb8] sm:$0xff]
    %v622 = vld [vmem:[#allocation9 + $0xc0] sm:$0xff]
    %v623 = vld [vmem:[#allocation9 + $0xc8] sm:$0xff]
    %v624 = vld [vmem:[#allocation9 + $0xd0] sm:$0xff]
    %v625 = vld [vmem:[#allocation9 + $0xd8] sm:$0xff]
    %v626 = vld [vmem:[#allocation9 + $0xe0] sm:$0xff]
    %v627 = vld [vmem:[#allocation9 + $0xe8] sm:$0xff]
    %v628 = vld [vmem:[#allocation9 + $0xf0] sm:$0xff]
    %v629 = vld [vmem:[#allocation9 + $0xf8] sm:$0xff]
    %v662 = vunpack.c.l.b16 %v598
    %v663 = vunpack.c.h.b16 %v598
    %v664 = vunpack.c.l.b16 %v599
    %v665 = vunpack.c.h.b16 %v599
    %v666 = vunpack.c.l.b16 %v600
    %v667 = vunpack.c.h.b16 %v600
    %v668 = vunpack.c.l.b16 %v601
    %v669 = vunpack.c.h.b16 %v601
    %v670 = vunpack.c.l.b16 %v602
    %v671 = vunpack.c.h.b16 %v602
    %v672 = vunpack.c.l.b16 %v603
    %v673 = vunpack.c.h.b16 %v603
    %v674 = vunpack.c.l.b16 %v604
    %v675 = vunpack.c.h.b16 %v604
    %v676 = vunpack.c.l.b16 %v605
    %v677 = vunpack.c.h.b16 %v605
    %v678 = vunpack.c.l.b16 %v606
    %v679 = vunpack.c.h.b16 %v606
    %v680 = vunpack.c.l.b16 %v607
    %v681 = vunpack.c.h.b16 %v607
    %v682 = vunpack.c.l.b16 %v608
    %v683 = vunpack.c.h.b16 %v608
    %v684 = vunpack.c.l.b16 %v609
    %v685 = vunpack.c.h.b16 %v609
    %v686 = vunpack.c.l.b16 %v610
    %v687 = vunpack.c.h.b16 %v610
    %v688 = vunpack.c.l.b16 %v611
    %v689 = vunpack.c.h.b16 %v611
    %v690 = vunpack.c.l.b16 %v612
    %v691 = vunpack.c.h.b16 %v612
    %v692 = vunpack.c.l.b16 %v613
    %v693 = vunpack.c.h.b16 %v613
    %v694 = vunpack.c.l.b16 %v614
    %v695 = vunpack.c.h.b16 %v614
    %v696 = vunpack.c.l.b16 %v615
    %v697 = vunpack.c.h.b16 %v615
    %v698 = vunpack.c.l.b16 %v616
    %v699 = vunpack.c.h.b16 %v616
    %v700 = vunpack.c.l.b16 %v617
    %v701 = vunpack.c.h.b16 %v617
    %v702 = vunpack.c.l.b16 %v618
    %v703 = vunpack.c.h.b16 %v618
    %v704 = vunpack.c.l.b16 %v619
    %v705 = vunpack.c.h.b16 %v619
    %v706 = vunpack.c.l.b16 %v620
    %v707 = vunpack.c.h.b16 %v620
    %v708 = vunpack.c.l.b16 %v621
    %v709 = vunpack.c.h.b16 %v621
    %v710 = vunpack.c.l.b16 %v622
    %v711 = vunpack.c.h.b16 %v622
    %v712 = vunpack.c.l.b16 %v623
    %v713 = vunpack.c.h.b16 %v623
    %v714 = vunpack.c.l.b16 %v624
    %v715 = vunpack.c.h.b16 %v624
    %v716 = vunpack.c.l.b16 %v625
    %v717 = vunpack.c.h.b16 %v625
    %v718 = vunpack.c.l.b16 %v626
    %v719 = vunpack.c.h.b16 %v626
    %v720 = vunpack.c.l.b16 %v627
    %v721 = vunpack.c.h.b16 %v627
    %v722 = vunpack.c.l.b16 %v628
    %v723 = vunpack.c.h.b16 %v628
    %v724 = vunpack.c.l.b16 %v629
    %v725 = vunpack.c.h.b16 %v629
    %v726 = vpack.c.b16 %v666, %v662
    %v727 = vpack.c.b16 %v667, %v663
    %v728 = vpack.c.b16 %v668, %v664
    %v729 = vpack.c.b16 %v669, %v665
    %v730 = vpack.c.b16 %v674, %v670
    %v731 = vpack.c.b16 %v675, %v671
    %v732 = vpack.c.b16 %v676, %v672
    %v733 = vpack.c.b16 %v677, %v673
    %v734 = vpack.c.b16 %v682, %v678
    %v735 = vpack.c.b16 %v683, %v679
    %v736 = vpack.c.b16 %v684, %v680
    %v737 = vpack.c.b16 %v685, %v681
    %v738 = vpack.c.b16 %v690, %v686
    %v739 = vpack.c.b16 %v691, %v687
    %v740 = vpack.c.b16 %v692, %v688
    %v741 = vpack.c.b16 %v693, %v689
    %v742 = vpack.c.b16 %v698, %v694
    %v743 = vpack.c.b16 %v699, %v695
    %v744 = vpack.c.b16 %v700, %v696
    %v745 = vpack.c.b16 %v701, %v697
    %v746 = vpack.c.b16 %v706, %v702
    %v747 = vpack.c.b16 %v707, %v703
    %v748 = vpack.c.b16 %v708, %v704
    %v749 = vpack.c.b16 %v709, %v705
    %v750 = vpack.c.b16 %v714, %v710
    %v751 = vpack.c.b16 %v715, %v711
    %v752 = vpack.c.b16 %v716, %v712
    %v753 = vpack.c.b16 %v717, %v713
    %v754 = vpack.c.b16 %v722, %v718
    %v755 = vpack.c.b16 %v723, %v719
    %v756 = vpack.c.b16 %v724, %v720
    %v757 = vpack.c.b16 %v725, %v721
    %790 = vmatprep.subr.bf16.mxu0 %v727
    %791 = vmatpush1.bf16.msra.mxu0 %v726
    %792 = vmatprep.subr.bf16.mxu0 %v731
    %793 = vmatpush1.bf16.msra.mxu0 %v730
    %794 = vmatprep.subr.bf16.mxu0 %v735
    %795 = vmatpush1.bf16.msra.mxu0 %v734
    %796 = vmatprep.subr.bf16.mxu0 %v739
    %797 = vmatpush1.bf16.msra.mxu0 %v738
    %798 = vmatprep.subr.bf16.mxu0 %v743
    %799 = vmatpush1.bf16.msra.mxu0 %v742
    %800 = vmatprep.subr.bf16.mxu0 %v747
    %801 = vmatpush1.bf16.msra.mxu0 %v746
    %802 = vmatprep.subr.bf16.mxu0 %v751
    %803 = vmatpush1.bf16.msra.mxu0 %v750
    %804 = vmatprep.subr.bf16.mxu0 %v755
    %805 = vmatpush1.bf16.msra.mxu0 %v754
    %806 = vmatprep.subr.bf16.mxu0 0
    %807 = vmatpush1.bf16.msra.mxu0 0
    %808 = vmatprep.subr.bf16.mxu0 0
    %809 = vmatpush1.bf16.msra.mxu0 0
    %810 = vmatprep.subr.bf16.mxu0 0
    %811 = vmatpush1.bf16.msra.mxu0 0
    %812 = vmatprep.subr.bf16.mxu0 0
    %813 = vmatpush1.bf16.msra.mxu0 0
    %814 = vmatprep.subr.bf16.mxu0 0
    %815 = vmatpush1.bf16.msra.mxu0 0
    %816 = vmatprep.subr.bf16.mxu0 0
    %817 = vmatpush1.bf16.msra.mxu0 0
    %818 = vmatprep.subr.bf16.mxu0 0
    %819 = vmatpush1.bf16.msra.mxu0 0
    %820 = vmatprep.subr.bf16.mxu0 0
    %821 = vmatpush1.bf16.msra.mxu0 0
    %822 = vmatprep.mubr.bf16.mxu0 0
    %823 = vmatmul.mubr.bf16.gmra.mrb[0].mxu0 0
    %v824 = vpop.f32.mrb[0].mxu0
    %v825 = vadd.f32 0.0, %v824
    %v826 = vpop.f32.mrb[0].mxu0
    %v827 = vadd.f32 0.0, %v826
    %v828 = vpop.f32.mrb[0].mxu0
    %v829 = vpop.f32.mrb[0].mxu0
    %830 = vdwg.mxu0
    %831 = vmatprep.subr.bf16.mxu0 %v729
    %832 = vmatpush1.bf16.msra.mxu0 %v728
    %833 = vmatprep.subr.bf16.mxu0 %v733
    %834 = vmatpush1.bf16.msra.mxu0 %v732
    %835 = vmatprep.subr.bf16.mxu0 %v737
    %836 = vmatpush1.bf16.msra.mxu0 %v736
    %837 = vmatprep.subr.bf16.mxu0 %v741
    %838 = vmatpush1.bf16.msra.mxu0 %v740
    %839 = vmatprep.subr.bf16.mxu0 %v745
    %840 = vmatpush1.bf16.msra.mxu0 %v744
    %841 = vmatprep.subr.bf16.mxu0 %v749
    %842 = vmatpush1.bf16.msra.mxu0 %v748
    %843 = vmatprep.subr.bf16.mxu0 %v753
    %844 = vmatpush1.bf16.msra.mxu0 %v752
    %845 = vmatprep.subr.bf16.mxu0 %v757
    %846 = vmatpush1.bf16.msra.mxu0 %v756
    %847 = vmatprep.subr.bf16.mxu0 0
    %848 = vmatpush1.bf16.msra.mxu0 0
    %849 = vmatprep.subr.bf16.mxu0 0
    %850 = vmatpush1.bf16.msra.mxu0 0
    %851 = vmatprep.subr.bf16.mxu0 0
    %852 = vmatpush1.bf16.msra.mxu0 0
    %853 = vmatprep.subr.bf16.mxu0 0
    %854 = vmatpush1.bf16.msra.mxu0 0
    %855 = vmatprep.subr.bf16.mxu0 0
    %856 = vmatpush1.bf16.msra.mxu0 0
    %857 = vmatprep.subr.bf16.mxu0 0
    %858 = vmatpush1.bf16.msra.mxu0 0
    %859 = vmatprep.subr.bf16.mxu0 0
    %860 = vmatpush1.bf16.msra.mxu0 0
    %861 = vmatprep.subr.bf16.mxu0 0
    %862 = vmatpush1.bf16.msra.mxu0 0
    %863 = vmatprep.mubr.bf16.mxu0 0
    %864 = vmatmul.mubr.bf16.gmra.mrb[0].mxu0 0
    %v865 = vpop.f32.mrb[0].mxu0
    %v866 = vadd.f32 0.0, %v865
    %v867 = vpop.f32.mrb[0].mxu0
    %v868 = vadd.f32 0.0, %v867
    %v869 = vpop.f32.mrb[0].mxu0
    %v870 = vpop.f32.mrb[0].mxu0
    %871 = vdwg.mxu0
    %v872 = vadd.f32 %v594, %v825
    %v873 = vadd.f32 %v595, %v827
    %v874 = vadd.f32 %v596, %v866
    %v875 = vadd.f32 %v597, %v868
    %v876 = vxor.u32 %v872, 2147483648
    %v877 = vmul.f32 %v876, 1.442695
    %v878 = vpow.pop %v877
    %v879 = vadd.f32 %v878, 1.0
    %v880 = vrcp.pop %v879
    %v881 = vmul.f32 1.0, %v880
    %v882 = vxor.u32 %v873, 2147483648
    %v883 = vmul.f32 %v882, 1.442695
    %v884 = vpow.pop %v883
    %v885 = vadd.f32 %v884, 1.0
    %v886 = vrcp.pop %v885
    %v887 = vmul.f32 1.0, %v886
    %v888 = vtanh.pop %v874
    %v889 = vxor.u32 %v875, 2147483648
    %v890 = vmul.f32 %v889, 1.442695
    %v891 = vpow.pop %v890
    %v892 = vadd.f32 %v891, 1.0
    %v893 = vrcp.pop %v892
    %v894 = vmul.f32 1.0, %v893
    %v895 = vmul.f32 %v887, 0.0
    %v896 = vmul.f32 %v881, %v888
    %v897 = vadd.f32 %v895, %v896
    %v898 = vtanh.pop %v897
    %v899 = vmul.f32 %v894, %v898
    %900 = vst [vmem:[#allocation3] sm:$0xff] %v899
    %s901 = scalar_lea.vmem [#allocation2], 32
    %v902 = vld [vmem:[%s901] sm:$0xff]
    %v903 = vld [vmem:[%s901 + $0x8] sm:$0xff]
    %v904 = vld [vmem:[%s901 + $0x10] sm:$0xff]
    %v905 = vld [vmem:[%s901 + $0x18] sm:$0xff]
    %v906 = vpack.c.bf16 %v899, %v899
    %v907 = vld [vmem:[#allocation9] sm:$0xff]
    %v908 = vld [vmem:[#allocation9 + $0x8] sm:$0xff]
    %v909 = vld [vmem:[#allocation9 + $0x10] sm:$0xff]
    %v910 = vld [vmem:[#allocation9 + $0x18] sm:$0xff]
    %v911 = vld [vmem:[#allocation9 + $0x20] sm:$0xff]
    %v912 = vld [vmem:[#allocation9 + $0x28] sm:$0xff]
    %v913 = vld [vmem:[#allocation9 + $0x30] sm:$0xff]
    %v914 = vld [vmem:[#allocation9 + $0x38] sm:$0xff]
    %v915 = vld [vmem:[#allocation9 + $0x40] sm:$0xff]
    %v916 = vld [vmem:[#allocation9 + $0x48] sm:$0xff]
    %v917 = vld [vmem:[#allocation9 + $0x50] sm:$0xff]
    %v918 = vld [vmem:[#allocation9 + $0x58] sm:$0xff]
    %v919 = vld [vmem:[#allocation9 + $0x60] sm:$0xff]
    %v920 = vld [vmem:[#allocation9 + $0x68] sm:$0xff]
    %v921 = vld [vmem:[#allocation9 + $0x70] sm:$0xff]
    %v922 = vld [vmem:[#allocation9 + $0x78] sm:$0xff]
    %v923 = vld [vmem:[#allocation9 + $0x80] sm:$0xff]
    %v924 = vld [vmem:[#allocation9 + $0x88] sm:$0xff]
    %v925 = vld [vmem:[#allocation9 + $0x90] sm:$0xff]
    %v926 = vld [vmem:[#allocation9 + $0x98] sm:$0xff]
    %v927 = vld [vmem:[#allocation9 + $0xa0] sm:$0xff]
    %v928 = vld [vmem:[#allocation9 + $0xa8] sm:$0xff]
    %v929 = vld [vmem:[#allocation9 + $0xb0] sm:$0xff]
    %v930 = vld [vmem:[#allocation9 + $0xb8] sm:$0xff]
    %v931 = vld [vmem:[#allocation9 + $0xc0] sm:$0xff]
    %v932 = vld [vmem:[#allocation9 + $0xc8] sm:$0xff]
    %v933 = vld [vmem:[#allocation9 + $0xd0] sm:$0xff]
    %v934 = vld [vmem:[#allocation9 + $0xd8] sm:$0xff]
    %v935 = vld [vmem:[#allocation9 + $0xe0] sm:$0xff]
    %v936 = vld [vmem:[#allocation9 + $0xe8] sm:$0xff]
    %v937 = vld [vmem:[#allocation9 + $0xf0] sm:$0xff]
    %v938 = vld [vmem:[#allocation9 + $0xf8] sm:$0xff]
    %v971 = vunpack.c.l.b16 %v907
    %v972 = vunpack.c.h.b16 %v907
    %v973 = vunpack.c.l.b16 %v908
    %v974 = vunpack.c.h.b16 %v908
    %v975 = vunpack.c.l.b16 %v909
    %v976 = vunpack.c.h.b16 %v909
    %v977 = vunpack.c.l.b16 %v910
    %v978 = vunpack.c.h.b16 %v910
    %v979 = vunpack.c.l.b16 %v911
    %v980 = vunpack.c.h.b16 %v911
    %v981 = vunpack.c.l.b16 %v912
    %v982 = vunpack.c.h.b16 %v912
    %v983 = vunpack.c.l.b16 %v913
    %v984 = vunpack.c.h.b16 %v913
    %v985 = vunpack.c.l.b16 %v914
    %v986 = vunpack.c.h.b16 %v914
    %v987 = vunpack.c.l.b16 %v915
    %v988 = vunpack.c.h.b16 %v915
    %v989 = vunpack.c.l.b16 %v916
    %v990 = vunpack.c.h.b16 %v916
    %v991 = vunpack.c.l.b16 %v917
    %v992 = vunpack.c.h.b16 %v917
    %v993 = vunpack.c.l.b16 %v918
    %v994 = vunpack.c.h.b16 %v918
    %v995 = vunpack.c.l.b16 %v919
    %v996 = vunpack.c.h.b16 %v919
    %v997 = vunpack.c.l.b16 %v920
    %v998 = vunpack.c.h.b16 %v920
    %v999 = vunpack.c.l.b16 %v921
    %v1000 = vunpack.c.h.b16 %v921
    %v1001 = vunpack.c.l.b16 %v922
    %v1002 = vunpack.c.h.b16 %v922
    %v1003 = vunpack.c.l.b16 %v923
    %v1004 = vunpack.c.h.b16 %v923
    %v1005 = vunpack.c.l.b16 %v924
    %v1006 = vunpack.c.h.b16 %v924
    %v1007 = vunpack.c.l.b16 %v925
    %v1008 = vunpack.c.h.b16 %v925
    %v1009 = vunpack.c.l.b16 %v926
    %v1010 = vunpack.c.h.b16 %v926
    %v1011 = vunpack.c.l.b16 %v927
    %v1012 = vunpack.c.h.b16 %v927
    %v1013 = vunpack.c.l.b16 %v928
    %v1014 = vunpack.c.h.b16 %v928
    %v1015 = vunpack.c.l.b16 %v929
    %v1016 = vunpack.c.h.b16 %v929
    %v1017 = vunpack.c.l.b16 %v930
    %v1018 = vunpack.c.h.b16 %v930
    %v1019 = vunpack.c.l.b16 %v931
    %v1020 = vunpack.c.h.b16 %v931
    %v1021 = vunpack.c.l.b16 %v932
    %v1022 = vunpack.c.h.b16 %v932
    %v1023 = vunpack.c.l.b16 %v933
    %v1024 = vunpack.c.h.b16 %v933
    %v1025 = vunpack.c.l.b16 %v934
    %v1026 = vunpack.c.h.b16 %v934
    %v1027 = vunpack.c.l.b16 %v935
    %v1028 = vunpack.c.h.b16 %v935
    %v1029 = vunpack.c.l.b16 %v936
    %v1030 = vunpack.c.h.b16 %v936
    %v1031 = vunpack.c.l.b16 %v937
    %v1032 = vunpack.c.h.b16 %v937
    %v1033 = vunpack.c.l.b16 %v938
    %v1034 = vunpack.c.h.b16 %v938
    %v1035 = vpack.c.b16 %v975, %v971
    %v1036 = vpack.c.b16 %v976, %v972
    %v1037 = vpack.c.b16 %v977, %v973
    %v1038 = vpack.c.b16 %v978, %v974
    %v1039 = vpack.c.b16 %v983, %v979
    %v1040 = vpack.c.b16 %v984, %v980
    %v1041 = vpack.c.b16 %v985, %v981
    %v1042 = vpack.c.b16 %v986, %v982
    %v1043 = vpack.c.b16 %v991, %v987
    %v1044 = vpack.c.b16 %v992, %v988
    %v1045 = vpack.c.b16 %v993, %v989
    %v1046 = vpack.c.b16 %v994, %v990
    %v1047 = vpack.c.b16 %v999, %v995
    %v1048 = vpack.c.b16 %v1000, %v996
    %v1049 = vpack.c.b16 %v1001, %v997
    %v1050 = vpack.c.b16 %v1002, %v998
    %v1051 = vpack.c.b16 %v1007, %v1003
    %v1052 = vpack.c.b16 %v1008, %v1004
    %v1053 = vpack.c.b16 %v1009, %v1005
    %v1054 = vpack.c.b16 %v1010, %v1006
    %v1055 = vpack.c.b16 %v1015, %v1011
    %v1056 = vpack.c.b16 %v1016, %v1012
    %v1057 = vpack.c.b16 %v1017, %v1013
    %v1058 = vpack.c.b16 %v1018, %v1014
    %v1059 = vpack.c.b16 %v1023, %v1019
    %v1060 = vpack.c.b16 %v1024, %v1020
    %v1061 = vpack.c.b16 %v1025, %v1021
    %v1062 = vpack.c.b16 %v1026, %v1022
    %v1063 = vpack.c.b16 %v1031, %v1027
    %v1064 = vpack.c.b16 %v1032, %v1028
    %v1065 = vpack.c.b16 %v1033, %v1029
    %v1066 = vpack.c.b16 %v1034, %v1030
    %1099 = vmatprep.subr.bf16.mxu0 %v1036
    %1100 = vmatpush1.bf16.msra.mxu0 %v1035
    %1101 = vmatprep.subr.bf16.mxu0 %v1040
    %1102 = vmatpush1.bf16.msra.mxu0 %v1039
    %1103 = vmatprep.subr.bf16.mxu0 %v1044
    %1104 = vmatpush1.bf16.msra.mxu0 %v1043
    %1105 = vmatprep.subr.bf16.mxu0 %v1048
    %1106 = vmatpush1.bf16.msra.mxu0 %v1047
    %1107 = vmatprep.subr.bf16.mxu0 %v1052
    %1108 = vmatpush1.bf16.msra.mxu0 %v1051
    %1109 = vmatprep.subr.bf16.mxu0 %v1056
    %1110 = vmatpush1.bf16.msra.mxu0 %v1055
    %1111 = vmatprep.subr.bf16.mxu0 %v1060
    %1112 = vmatpush1.bf16.msra.mxu0 %v1059
    %1113 = vmatprep.subr.bf16.mxu0 %v1064
    %1114 = vmatpush1.bf16.msra.mxu0 %v1063
    %1115 = vmatprep.subr.bf16.mxu0 0
    %1116 = vmatpush1.bf16.msra.mxu0 0
    %1117 = vmatprep.subr.bf16.mxu0 0
    %1118 = vmatpush1.bf16.msra.mxu0 0
    %1119 = vmatprep.subr.bf16.mxu0 0
    %1120 = vmatpush1.bf16.msra.mxu0 0
    %1121 = vmatprep.subr.bf16.mxu0 0
    %1122 = vmatpush1.bf16.msra.mxu0 0
    %1123 = vmatprep.subr.bf16.mxu0 0
    %1124 = vmatpush1.bf16.msra.mxu0 0
    %1125 = vmatprep.subr.bf16.mxu0 0
    %1126 = vmatpush1.bf16.msra.mxu0 0
    %1127 = vmatprep.subr.bf16.mxu0 0
    %1128 = vmatpush1.bf16.msra.mxu0 0
    %1129 = vmatprep.subr.bf16.mxu0 0
    %1130 = vmatpush1.bf16.msra.mxu0 0
    %1131 = vmatprep.mubr.bf16.mxu0 0
    %1132 = vmatmul.mubr.bf16.gmra.mrb[0].mxu0 %v906
    %v1133 = vpop.f32.mrb[0].mxu0
    %v1134 = vadd.f32 0.0, %v1133
    %v1135 = vpop.f32.mrb[0].mxu0
    %v1136 = vadd.f32 0.0, %v1135
    %v1137 = vpop.f32.mrb[0].mxu0
    %v1138 = vpop.f32.mrb[0].mxu0
    %1139 = vdwg.mxu0
    %1140 = vmatprep.subr.bf16.mxu0 %v1038
    %1141 = vmatpush1.bf16.msra.mxu0 %v1037
    %1142 = vmatprep.subr.bf16.mxu0 %v1042
    %1143 = vmatpush1.bf16.msra.mxu0 %v1041
    %1144 = vmatprep.subr.bf16.mxu0 %v1046
    %1145 = vmatpush1.bf16.msra.mxu0 %v1045
    %1146 = vmatprep.subr.bf16.mxu0 %v1050
    %1147 = vmatpush1.bf16.msra.mxu0 %v1049
    %1148 = vmatprep.subr.bf16.mxu0 %v1054
    %1149 = vmatpush1.bf16.msra.mxu0 %v1053
    %1150 = vmatprep.subr.bf16.mxu0 %v1058
    %1151 = vmatpush1.bf16.msra.mxu0 %v1057
    %1152 = vmatprep.subr.bf16.mxu0 %v1062
    %1153 = vmatpush1.bf16.msra.mxu0 %v1061
    %1154 = vmatprep.subr.bf16.mxu0 %v1066
    %1155 = vmatpush1.bf16.msra.mxu0 %v1065
    %1156 = vmatprep.subr.bf16.mxu0 0
    %1157 = vmatpush1.bf16.msra.mxu0 0
    %1158 = vmatprep.subr.bf16.mxu0 0
    %1159 = vmatpush1.bf16.msra.mxu0 0
    %1160 = vmatprep.subr.bf16.mxu0 0
    %1161 = vmatpush1.bf16.msra.mxu0 0
    %1162 = vmatprep.subr.bf16.mxu0 0
    %1163 = vmatpush1.bf16.msra.mxu0 0
    %1164 = vmatprep.subr.bf16.mxu0 0
    %1165 = vmatpush1.bf16.msra.mxu0 0
    %1166 = vmatprep.subr.bf16.mxu0 0
    %1167 = vmatpush1.bf16.msra.mxu0 0
    %1168 = vmatprep.subr.bf16.mxu0 0
    %1169 = vmatpush1.bf16.msra.mxu0 0
    %1170 = vmatprep.subr.bf16.mxu0 0
    %1171 = vmatpush1.bf16.msra.mxu0 0
    %1172 = vmatprep.mubr.bf16.mxu0 0
    %1173 = vmatmul.mubr.bf16.gmra.mrb[0].mxu0 %v906
    %v1174 = vpop.f32.mrb[0].mxu0
    %v1175 = vadd.f32 0.0, %v1174
    %v1176 = vpop.f32.mrb[0].mxu0
    %v1177 = vadd.f32 0.0, %v1176
    %v1178 = vpop.f32.mrb[0].mxu0
    %v1179 = vpop.f32.mrb[0].mxu0
    %1180 = vdwg.mxu0
    %v1181 = vadd.f32 %v902, %v1134
    %v1182 = vadd.f32 %v903, %v1136
    %v1183 = vadd.f32 %v904, %v1175
    %v1184 = vadd.f32 %v905, %v1177
    %v1185 = vxor.u32 %v1181, 2147483648
    %v1186 = vmul.f32 %v1185, 1.442695
    %v1187 = vpow.pop %v1186
    %v1188 = vadd.f32 %v1187, 1.0
    %v1189 = vrcp.pop %v1188
    %v1190 = vmul.f32 1.0, %v1189
    %v1191 = vxor.u32 %v1182, 2147483648
    %v1192 = vmul.f32 %v1191, 1.442695
    %v1193 = vpow.pop %v1192
    %v1194 = vadd.f32 %v1193, 1.0
    %v1195 = vrcp.pop %v1194
    %v1196 = vmul.f32 1.0, %v1195
    %v1197 = vtanh.pop %v1183
    %v1198 = vxor.u32 %v1184, 2147483648
    %v1199 = vmul.f32 %v1198, 1.442695
    %v1200 = vpow.pop %v1199
    %v1201 = vadd.f32 %v1200, 1.0
    %v1202 = vrcp.pop %v1201
    %v1203 = vmul.f32 1.0, %v1202
    %v1204 = vmul.f32 %v1196, %v897
    %v1205 = vmul.f32 %v1190, %v1197
    %v1206 = vadd.f32 %v1204, %v1205
    %v1207 = vtanh.pop %v1206
    %v1208 = vmul.f32 %v1203, %v1207
    %s1209 = scalar_lea.vmem [#allocation3], 8
    %1210 = vst [vmem:[%s1209] sm:$0xff] %v1208
    %s1211 = scalar_lea.vmem [#allocation2], 64
    %v1212 = vld [vmem:[%s1211] sm:$0xff]
    %v1213 = vld [vmem:[%s1211 + $0x8] sm:$0xff]
    %v1214 = vld [vmem:[%s1211 + $0x10] sm:$0xff]
    %v1215 = vld [vmem:[%s1211 + $0x18] sm:$0xff]
    %v1216 = vpack.c.bf16 %v1208, %v1208
    %v1217 = vld [vmem:[#allocation9] sm:$0xff]
    %v1218 = vld [vmem:[#allocation9 + $0x8] sm:$0xff]
    %v1219 = vld [vmem:[#allocation9 + $0x10] sm:$0xff]
    %v1220 = vld [vmem:[#allocation9 + $0x18] sm:$0xff]
    %v1221 = vld [vmem:[#allocation9 + $0x20] sm:$0xff]
    %v1222 = vld [vmem:[#allocation9 + $0x28] sm:$0xff]
    %v1223 = vld [vmem:[#allocation9 + $0x30] sm:$0xff]
    %v1224 = vld [vmem:[#allocation9 + $0x38] sm:$0xff]
    %v1225 = vld [vmem:[#allocation9 + $0x40] sm:$0xff]
    %v1226 = vld [vmem:[#allocation9 + $0x48] sm:$0xff]
    %v1227 = vld [vmem:[#allocation9 + $0x50] sm:$0xff]
    %v1228 = vld [vmem:[#allocation9 + $0x58] sm:$0xff]
    %v1229 = vld [vmem:[#allocation9 + $0x60] sm:$0xff]
    %v1230 = vld [vmem:[#allocation9 + $0x68] sm:$0xff]
    %v1231 = vld [vmem:[#allocation9 + $0x70] sm:$0xff]
    %v1232 = vld [vmem:[#allocation9 + $0x78] sm:$0xff]
    %v1233 = vld [vmem:[#allocation9 + $0x80] sm:$0xff]
    %v1234 = vld [vmem:[#allocation9 + $0x88] sm:$0xff]
    %v1235 = vld [vmem:[#allocation9 + $0x90] sm:$0xff]
    %v1236 = vld [vmem:[#allocation9 + $0x98] sm:$0xff]
    %v1237 = vld [vmem:[#allocation9 + $0xa0] sm:$0xff]
    %v1238 = vld [vmem:[#allocation9 + $0xa8] sm:$0xff]
    %v1239 = vld [vmem:[#allocation9 + $0xb0] sm:$0xff]
    %v1240 = vld [vmem:[#allocation9 + $0xb8] sm:$0xff]
    %v1241 = vld [vmem:[#allocation9 + $0xc0] sm:$0xff]
    %v1242 = vld [vmem:[#allocation9 + $0xc8] sm:$0xff]
    %v1243 = vld [vmem:[#allocation9 + $0xd0] sm:$0xff]
    %v1244 = vld [vmem:[#allocation9 + $0xd8] sm:$0xff]
    %v1245 = vld [vmem:[#allocation9 + $0xe0] sm:$0xff]
    %v1246 = vld [vmem:[#allocation9 + $0xe8] sm:$0xff]
    %v1247 = vld [vmem:[#allocation9 + $0xf0] sm:$0xff]
    %v1248 = vld [vmem:[#allocation9 + $0xf8] sm:$0xff]
    %v1281 = vunpack.c.l.b16 %v1217
    %v1282 = vunpack.c.h.b16 %v1217
    %v1283 = vunpack.c.l.b16 %v1218
    %v1284 = vunpack.c.h.b16 %v1218
    %v1285 = vunpack.c.l.b16 %v1219
    %v1286 = vunpack.c.h.b16 %v1219
    %v1287 = vunpack.c.l.b16 %v1220
    %v1288 = vunpack.c.h.b16 %v1220
    %v1289 = vunpack.c.l.b16 %v1221
    %v1290 = vunpack.c.h.b16 %v1221
    %v1291 = vunpack.c.l.b16 %v1222
    %v1292 = vunpack.c.h.b16 %v1222
    %v1293 = vunpack.c.l.b16 %v1223
    %v1294 = vunpack.c.h.b16 %v1223
    %v1295 = vunpack.c.l.b16 %v1224
    %v1296 = vunpack.c.h.b16 %v1224
    %v1297 = vunpack.c.l.b16 %v1225
    %v1298 = vunpack.c.h.b16 %v1225
    %v1299 = vunpack.c.l.b16 %v1226
    %v1300 = vunpack.c.h.b16 %v1226
    %v1301 = vunpack.c.l.b16 %v1227
    %v1302 = vunpack.c.h.b16 %v1227
    %v1303 = vunpack.c.l.b16 %v1228
    %v1304 = vunpack.c.h.b16 %v1228
    %v1305 = vunpack.c.l.b16 %v1229
    %v1306 = vunpack.c.h.b16 %v1229
    %v1307 = vunpack.c.l.b16 %v1230
    %v1308 = vunpack.c.h.b16 %v1230
    %v1309 = vunpack.c.l.b16 %v1231
    %v1310 = vunpack.c.h.b16 %v1231
    %v1311 = vunpack.c.l.b16 %v1232
    %v1312 = vunpack.c.h.b16 %v1232
    %v1313 = vunpack.c.l.b16 %v1233
    %v1314 = vunpack.c.h.b16 %v1233
    %v1315 = vunpack.c.l.b16 %v1234
    %v1316 = vunpack.c.h.b16 %v1234
    %v1317 = vunpack.c.l.b16 %v1235
    %v1318 = vunpack.c.h.b16 %v1235
    %v1319 = vunpack.c.l.b16 %v1236
    %v1320 = vunpack.c.h.b16 %v1236
    %v1321 = vunpack.c.l.b16 %v1237
    %v1322 = vunpack.c.h.b16 %v1237
    %v1323 = vunpack.c.l.b16 %v1238
    %v1324 = vunpack.c.h.b16 %v1238
    %v1325 = vunpack.c.l.b16 %v1239
    %v1326 = vunpack.c.h.b16 %v1239
    %v1327 = vunpack.c.l.b16 %v1240
    %v1328 = vunpack.c.h.b16 %v1240
    %v1329 = vunpack.c.l.b16 %v1241
    %v1330 = vunpack.c.h.b16 %v1241
    %v1331 = vunpack.c.l.b16 %v1242
    %v1332 = vunpack.c.h.b16 %v1242
    %v1333 = vunpack.c.l.b16 %v1243
    %v1334 = vunpack.c.h.b16 %v1243
    %v1335 = vunpack.c.l.b16 %v1244
    %v1336 = vunpack.c.h.b16 %v1244
    %v1337 = vunpack.c.l.b16 %v1245
    %v1338 = vunpack.c.h.b16 %v1245
    %v1339 = vunpack.c.l.b16 %v1246
    %v1340 = vunpack.c.h.b16 %v1246
    %v1341 = vunpack.c.l.b16 %v1247
    %v1342 = vunpack.c.h.b16 %v1247
    %v1343 = vunpack.c.l.b16 %v1248
    %v1344 = vunpack.c.h.b16 %v1248
    %v1345 = vpack.c.b16 %v1285, %v1281
    %v1346 = vpack.c.b16 %v1286, %v1282
    %v1347 = vpack.c.b16 %v1287, %v1283
    %v1348 = vpack.c.b16 %v1288, %v1284
    %v1349 = vpack.c.b16 %v1293, %v1289
    %v1350 = vpack.c.b16 %v1294, %v1290
    %v1351 = vpack.c.b16 %v1295, %v1291
    %v1352 = vpack.c.b16 %v1296, %v1292
    %v1353 = vpack.c.b16 %v1301, %v1297
    %v1354 = vpack.c.b16 %v1302, %v1298
    %v1355 = vpack.c.b16 %v1303, %v1299
    %v1356 = vpack.c.b16 %v1304, %v1300
    %v1357 = vpack.c.b16 %v1309, %v1305
    %v1358 = vpack.c.b16 %v1310, %v1306
    %v1359 = vpack.c.b16 %v1311, %v1307
    %v1360 = vpack.c.b16 %v1312, %v1308
    %v1361 = vpack.c.b16 %v1317, %v1313
    %v1362 = vpack.c.b16 %v1318, %v1314
    %v1363 = vpack.c.b16 %v1319, %v1315
    %v1364 = vpack.c.b16 %v1320, %v1316
    %v1365 = vpack.c.b16 %v1325, %v1321
    %v1366 = vpack.c.b16 %v1326, %v1322
    %v1367 = vpack.c.b16 %v1327, %v1323
    %v1368 = vpack.c.b16 %v1328, %v1324
    %v1369 = vpack.c.b16 %v1333, %v1329
    %v1370 = vpack.c.b16 %v1334, %v1330
    %v1371 = vpack.c.b16 %v1335, %v1331
    %v1372 = vpack.c.b16 %v1336, %v1332
    %v1373 = vpack.c.b16 %v1341, %v1337
    %v1374 = vpack.c.b16 %v1342, %v1338
    %v1375 = vpack.c.b16 %v1343, %v1339
    %v1376 = vpack.c.b16 %v1344, %v1340
    %1409 = vmatprep.subr.bf16.mxu0 %v1346
    %1410 = vmatpush1.bf16.msra.mxu0 %v1345
    %1411 = vmatprep.subr.bf16.mxu0 %v1350
    %1412 = vmatpush1.bf16.msra.mxu0 %v1349
    %1413 = vmatprep.subr.bf16.mxu0 %v1354
    %1414 = vmatpush1.bf16.msra.mxu0 %v1353
    %1415 = vmatprep.subr.bf16.mxu0 %v1358
    %1416 = vmatpush1.bf16.msra.mxu0 %v1357
    %1417 = vmatprep.subr.bf16.mxu0 %v1362
    %1418 = vmatpush1.bf16.msra.mxu0 %v1361
    %1419 = vmatprep.subr.bf16.mxu0 %v1366
    %1420 = vmatpush1.bf16.msra.mxu0 %v1365
    %1421 = vmatprep.subr.bf16.mxu0 %v1370
    %1422 = vmatpush1.bf16.msra.mxu0 %v1369
    %1423 = vmatprep.subr.bf16.mxu0 %v1374
    %1424 = vmatpush1.bf16.msra.mxu0 %v1373
    %1425 = vmatprep.subr.bf16.mxu0 0
    %1426 = vmatpush1.bf16.msra.mxu0 0
    %1427 = vmatprep.subr.bf16.mxu0 0
    %1428 = vmatpush1.bf16.msra.mxu0 0
    %1429 = vmatprep.subr.bf16.mxu0 0
    %1430 = vmatpush1.bf16.msra.mxu0 0
    %1431 = vmatprep.subr.bf16.mxu0 0
    %1432 = vmatpush1.bf16.msra.mxu0 0
    %1433 = vmatprep.subr.bf16.mxu0 0
    %1434 = vmatpush1.bf16.msra.mxu0 0
    %1435 = vmatprep.subr.bf16.mxu0 0
    %1436 = vmatpush1.bf16.msra.mxu0 0
    %1437 = vmatprep.subr.bf16.mxu0 0
    %1438 = vmatpush1.bf16.msra.mxu0 0
    %1439 = vmatprep.subr.bf16.mxu0 0
    %1440 = vmatpush1.bf16.msra.mxu0 0
    %1441 = vmatprep.mubr.bf16.mxu0 0
    %1442 = vmatmul.mubr.bf16.gmra.mrb[0].mxu0 %v1216
    %v1443 = vpop.f32.mrb[0].mxu0
    %v1444 = vadd.f32 0.0, %v1443
    %v1445 = vpop.f32.mrb[0].mxu0
    %v1446 = vadd.f32 0.0, %v1445
    %v1447 = vpop.f32.mrb[0].mxu0
    %v1448 = vpop.f32.mrb[0].mxu0
    %1449 = vdwg.mxu0
    %1450 = vmatprep.subr.bf16.mxu0 %v1348
    %1451 = vmatpush1.bf16.msra.mxu0 %v1347
    %1452 = vmatprep.subr.bf16.mxu0 %v1352
    %1453 = vmatpush1.bf16.msra.mxu0 %v1351
    %1454 = vmatprep.subr.bf16.mxu0 %v1356
    %1455 = vmatpush1.bf16.msra.mxu0 %v1355
    %1456 = vmatprep.subr.bf16.mxu0 %v1360
    %1457 = vmatpush1.bf16.msra.mxu0 %v1359
    %1458 = vmatprep.subr.bf16.mxu0 %v1364
    %1459 = vmatpush1.bf16.msra.mxu0 %v1363
    %1460 = vmatprep.subr.bf16.mxu0 %v1368
    %1461 = vmatpush1.bf16.msra.mxu0 %v1367
    %1462 = vmatprep.subr.bf16.mxu0 %v1372
    %1463 = vmatpush1.bf16.msra.mxu0 %v1371
    %1464 = vmatprep.subr.bf16.mxu0 %v1376
    %1465 = vmatpush1.bf16.msra.mxu0 %v1375
    %1466 = vmatprep.subr.bf16.mxu0 0
    %1467 = vmatpush1.bf16.msra.mxu0 0
    %1468 = vmatprep.subr.bf16.mxu0 0
    %1469 = vmatpush1.bf16.msra.mxu0 0
    %1470 = vmatprep.subr.bf16.mxu0 0
    %1471 = vmatpush1.bf16.msra.mxu0 0
    %1472 = vmatprep.subr.bf16.mxu0 0
    %1473 = vmatpush1.bf16.msra.mxu0 0
    %1474 = vmatprep.subr.bf16.mxu0 0
    %1475 = vmatpush1.bf16.msra.mxu0 0
    %1476 = vmatprep.subr.bf16.mxu0 0
    %1477 = vmatpush1.bf16.msra.mxu0 0
    %1478 = vmatprep.subr.bf16.mxu0 0
    %1479 = vmatpush1.bf16.msra.mxu0 0
    %1480 = vmatprep.subr.bf16.mxu0 0
    %1481 = vmatpush1.bf16.msra.mxu0 0
    %1482 = vmatprep.mubr.bf16.mxu0 0
    %1483 = vmatmul.mubr.bf16.gmra.mrb[0].mxu0 %v1216
    %v1484 = vpop.f32.mrb[0].mxu0
    %v1485 = vadd.f32 0.0, %v1484
    %v1486 = vpop.f32.mrb[0].mxu0
    %v1487 = vadd.f32 0.0, %v1486
    %v1488 = vpop.f32.mrb[0].mxu0
    %v1489 = vpop.f32.mrb[0].mxu0
    %1490 = vdwg.mxu0
    %v1491 = vadd.f32 %v1212, %v1444
    %v1492 = vadd.f32 %v1213, %v1446
    %v1493 = vadd.f32 %v1214, %v1485
    %v1494 = vadd.f32 %v1215, %v1487
    %v1495 = vxor.u32 %v1491, 2147483648
    %v1496 = vmul.f32 %v1495, 1.442695
    %v1497 = vpow.pop %v1496
    %v1498 = vadd.f32 %v1497, 1.0
    %v1499 = vrcp.pop %v1498
    %v1500 = vmul.f32 1.0, %v1499
    %v1501 = vxor.u32 %v1492, 2147483648
    %v1502 = vmul.f32 %v1501, 1.442695
    %v1503 = vpow.pop %v1502
    %v1504 = vadd.f32 %v1503, 1.0
    %v1505 = vrcp.pop %v1504
    %v1506 = vmul.f32 1.0, %v1505
    %v1507 = vtanh.pop %v1493
    %v1508 = vxor.u32 %v1494, 2147483648
    %v1509 = vmul.f32 %v1508, 1.442695
    %v1510 = vpow.pop %v1509
    %v1511 = vadd.f32 %v1510, 1.0
    %v1512 = vrcp.pop %v1511
    %v1513 = vmul.f32 1.0, %v1512
    %v1514 = vmul.f32 %v1506, %v1206
    %v1515 = vmul.f32 %v1500, %v1507
    %v1516 = vadd.f32 %v1514, %v1515
    %v1517 = vtanh.pop %v1516
    %v1518 = vmul.f32 %v1513, %v1517
    %s1519 = scalar_lea.vmem [#allocation3], 16
    %1520 = vst [vmem:[%s1519] sm:$0xff] %v1518
    %s1521 = scalar_lea.vmem [#allocation2], 96
    %v1522 = vld [vmem:[%s1521] sm:$0xff]
    %v1523 = vld [vmem:[%s1521 + $0x8] sm:$0xff]
    %v1524 = vld [vmem:[%s1521 + $0x10] sm:$0xff]
    %v1525 = vld [vmem:[%s1521 + $0x18] sm:$0xff]
    %v1526 = vpack.c.bf16 %v1518, %v1518
    %v1527 = vld [vmem:[#allocation9] sm:$0xff]
    %v1528 = vld [vmem:[#allocation9 + $0x8] sm:$0xff]
    %v1529 = vld [vmem:[#allocation9 + $0x10] sm:$0xff]
    %v1530 = vld [vmem:[#allocation9 + $0x18] sm:$0xff]
    %v1531 = vld [vmem:[#allocation9 + $0x20] sm:$0xff]
    %v1532 = vld [vmem:[#allocation9 + $0x28] sm:$0xff]
    %v1533 = vld [vmem:[#allocation9 + $0x30] sm:$0xff]
    %v1534 = vld [vmem:[#allocation9 + $0x38] sm:$0xff]
    %v1535 = vld [vmem:[#allocation9 + $0x40] sm:$0xff]
    %v1536 = vld [vmem:[#allocation9 + $0x48] sm:$0xff]
    %v1537 = vld [vmem:[#allocation9 + $0x50] sm:$0xff]
    %v1538 = vld [vmem:[#allocation9 + $0x58] sm:$0xff]
    %v1539 = vld [vmem:[#allocation9 + $0x60] sm:$0xff]
    %v1540 = vld [vmem:[#allocation9 + $0x68] sm:$0xff]
    %v1541 = vld [vmem:[#allocation9 + $0x70] sm:$0xff]
    %v1542 = vld [vmem:[#allocation9 + $0x78] sm:$0xff]
    %v1543 = vld [vmem:[#allocation9 + $0x80] sm:$0xff]
    %v1544 = vld [vmem:[#allocation9 + $0x88] sm:$0xff]
    %v1545 = vld [vmem:[#allocation9 + $0x90] sm:$0xff]
    %v1546 = vld [vmem:[#allocation9 + $0x98] sm:$0xff]
    %v1547 = vld [vmem:[#allocation9 + $0xa0] sm:$0xff]
    %v1548 = vld [vmem:[#allocation9 + $0xa8] sm:$0xff]
    %v1549 = vld [vmem:[#allocation9 + $0xb0] sm:$0xff]
    %v1550 = vld [vmem:[#allocation9 + $0xb8] sm:$0xff]
    %v1551 = vld [vmem:[#allocation9 + $0xc0] sm:$0xff]
    %v1552 = vld [vmem:[#allocation9 + $0xc8] sm:$0xff]
    %v1553 = vld [vmem:[#allocation9 + $0xd0] sm:$0xff]
    %v1554 = vld [vmem:[#allocation9 + $0xd8] sm:$0xff]
    %v1555 = vld [vmem:[#allocation9 + $0xe0] sm:$0xff]
    %v1556 = vld [vmem:[#allocation9 + $0xe8] sm:$0xff]
    %v1557 = vld [vmem:[#allocation9 + $0xf0] sm:$0xff]
    %v1558 = vld [vmem:[#allocation9 + $0xf8] sm:$0xff]
    %v1591 = vunpack.c.l.b16 %v1527
    %v1592 = vunpack.c.h.b16 %v1527
    %v1593 = vunpack.c.l.b16 %v1528
    %v1594 = vunpack.c.h.b16 %v1528
    %v1595 = vunpack.c.l.b16 %v1529
    %v1596 = vunpack.c.h.b16 %v1529
    %v1597 = vunpack.c.l.b16 %v1530
    %v1598 = vunpack.c.h.b16 %v1530
    %v1599 = vunpack.c.l.b16 %v1531
    %v1600 = vunpack.c.h.b16 %v1531
    %v1601 = vunpack.c.l.b16 %v1532
    %v1602 = vunpack.c.h.b16 %v1532
    %v1603 = vunpack.c.l.b16 %v1533
    %v1604 = vunpack.c.h.b16 %v1533
    %v1605 = vunpack.c.l.b16 %v1534
    %v1606 = vunpack.c.h.b16 %v1534
    %v1607 = vunpack.c.l.b16 %v1535
    %v1608 = vunpack.c.h.b16 %v1535
    %v1609 = vunpack.c.l.b16 %v1536
    %v1610 = vunpack.c.h.b16 %v1536
    %v1611 = vunpack.c.l.b16 %v1537
    %v1612 = vunpack.c.h.b16 %v1537
    %v1613 = vunpack.c.l.b16 %v1538
    %v1614 = vunpack.c.h.b16 %v1538
    %v1615 = vunpack.c.l.b16 %v1539
    %v1616 = vunpack.c.h.b16 %v1539
    %v1617 = vunpack.c.l.b16 %v1540
    %v1618 = vunpack.c.h.b16 %v1540
    %v1619 = vunpack.c.l.b16 %v1541
    %v1620 = vunpack.c.h.b16 %v1541
    %v1621 = vunpack.c.l.b16 %v1542
    %v1622 = vunpack.c.h.b16 %v1542
    %v1623 = vunpack.c.l.b16 %v1543
    %v1624 = vunpack.c.h.b16 %v1543
    %v1625 = vunpack.c.l.b16 %v1544
    %v1626 = vunpack.c.h.b16 %v1544
    %v1627 = vunpack.c.l.b16 %v1545
    %v1628 = vunpack.c.h.b16 %v1545
    %v1629 = vunpack.c.l.b16 %v1546
    %v1630 = vunpack.c.h.b16 %v1546
    %v1631 = vunpack.c.l.b16 %v1547
    %v1632 = vunpack.c.h.b16 %v1547
    %v1633 = vunpack.c.l.b16 %v1548
    %v1634 = vunpack.c.h.b16 %v1548
    %v1635 = vunpack.c.l.b16 %v1549
    %v1636 = vunpack.c.h.b16 %v1549
    %v1637 = vunpack.c.l.b16 %v1550
    %v1638 = vunpack.c.h.b16 %v1550
    %v1639 = vunpack.c.l.b16 %v1551
    %v1640 = vunpack.c.h.b16 %v1551
    %v1641 = vunpack.c.l.b16 %v1552
    %v1642 = vunpack.c.h.b16 %v1552
    %v1643 = vunpack.c.l.b16 %v1553
    %v1644 = vunpack.c.h.b16 %v1553
    %v1645 = vunpack.c.l.b16 %v1554
    %v1646 = vunpack.c.h.b16 %v1554
    %v1647 = vunpack.c.l.b16 %v1555
    %v1648 = vunpack.c.h.b16 %v1555
    %v1649 = vunpack.c.l.b16 %v1556
    %v1650 = vunpack.c.h.b16 %v1556
    %v1651 = vunpack.c.l.b16 %v1557
    %v1652 = vunpack.c.h.b16 %v1557
    %v1653 = vunpack.c.l.b16 %v1558
    %v1654 = vunpack.c.h.b16 %v1558
    %v1655 = vpack.c.b16 %v1595, %v1591
    %v1656 = vpack.c.b16 %v1596, %v1592
    %v1657 = vpack.c.b16 %v1597, %v1593
    %v1658 = vpack.c.b16 %v1598, %v1594
    %v1659 = vpack.c.b16 %v1603, %v1599
    %v1660 = vpack.c.b16 %v1604, %v1600
    %v1661 = vpack.c.b16 %v1605, %v1601
    %v1662 = vpack.c.b16 %v1606, %v1602
    %v1663 = vpack.c.b16 %v1611, %v1607
    %v1664 = vpack.c.b16 %v1612, %v1608
    %v1665 = vpack.c.b16 %v1613, %v1609
    %v1666 = vpack.c.b16 %v1614, %v1610
    %v1667 = vpack.c.b16 %v1619, %v1615
    %v1668 = vpack.c.b16 %v1620, %v1616
    %v1669 = vpack.c.b16 %v1621, %v1617
    %v1670 = vpack.c.b16 %v1622, %v1618
    %v1671 = vpack.c.b16 %v1627, %v1623
    %v1672 = vpack.c.b16 %v1628, %v1624
    %v1673 = vpack.c.b16 %v1629, %v1625
    %v1674 = vpack.c.b16 %v1630, %v1626
    %v1675 = vpack.c.b16 %v1635, %v1631
    %v1676 = vpack.c.b16 %v1636, %v1632
    %v1677 = vpack.c.b16 %v1637, %v1633
    %v1678 = vpack.c.b16 %v1638, %v1634
    %v1679 = vpack.c.b16 %v1643, %v1639
    %v1680 = vpack.c.b16 %v1644, %v1640
    %v1681 = vpack.c.b16 %v1645, %v1641
    %v1682 = vpack.c.b16 %v1646, %v1642
    %v1683 = vpack.c.b16 %v1651, %v1647
    %v1684 = vpack.c.b16 %v1652, %v1648
    %v1685 = vpack.c.b16 %v1653, %v1649
    %v1686 = vpack.c.b16 %v1654, %v1650
    %1719 = vmatprep.subr.bf16.mxu0 %v1656
    %1720 = vmatpush1.bf16.msra.mxu0 %v1655
    %1721 = vmatprep.subr.bf16.mxu0 %v1660
    %1722 = vmatpush1.bf16.msra.mxu0 %v1659
    %1723 = vmatprep.subr.bf16.mxu0 %v1664
    %1724 = vmatpush1.bf16.msra.mxu0 %v1663
    %1725 = vmatprep.subr.bf16.mxu0 %v1668
    %1726 = vmatpush1.bf16.msra.mxu0 %v1667
    %1727 = vmatprep.subr.bf16.mxu0 %v1672
    %1728 = vmatpush1.bf16.msra.mxu0 %v1671
    %1729 = vmatprep.subr.bf16.mxu0 %v1676
    %1730 = vmatpush1.bf16.msra.mxu0 %v1675
    %1731 = vmatprep.subr.bf16.mxu0 %v1680
    %1732 = vmatpush1.bf16.msra.mxu0 %v1679
    %1733 = vmatprep.subr.bf16.mxu0 %v1684
    %1734 = vmatpush1.bf16.msra.mxu0 %v1683
    %1735 = vmatprep.subr.bf16.mxu0 0
    %1736 = vmatpush1.bf16.msra.mxu0 0
    %1737 = vmatprep.subr.bf16.mxu0 0
    %1738 = vmatpush1.bf16.msra.mxu0 0
    %1739 = vmatprep.subr.bf16.mxu0 0
    %1740 = vmatpush1.bf16.msra.mxu0 0
    %1741 = vmatprep.subr.bf16.mxu0 0
    %1742 = vmatpush1.bf16.msra.mxu0 0
    %1743 = vmatprep.subr.bf16.mxu0 0
    %1744 = vmatpush1.bf16.msra.mxu0 0
    %1745 = vmatprep.subr.bf16.mxu0 0
    %1746 = vmatpush1.bf16.msra.mxu0 0
    %1747 = vmatprep.subr.bf16.mxu0 0
    %1748 = vmatpush1.bf16.msra.mxu0 0
    %1749 = vmatprep.subr.bf16.mxu0 0
    %1750 = vmatpush1.bf16.msra.mxu0 0
    %1751 = vmatprep.mubr.bf16.mxu0 0
    %1752 = vmatmul.mubr.bf16.gmra.mrb[0].mxu0 %v1526
    %v1753 = vpop.f32.mrb[0].mxu0
    %v1754 = vadd.f32 0.0, %v1753
    %v1755 = vpop.f32.mrb[0].mxu0
    %v1756 = vadd.f32 0.0, %v1755
    %v1757 = vpop.f32.mrb[0].mxu0
    %v1758 = vpop.f32.mrb[0].mxu0
    %1759 = vdwg.mxu0
    %1760 = vmatprep.subr.bf16.mxu0 %v1658
    %1761 = vmatpush1.bf16.msra.mxu0 %v1657
    %1762 = vmatprep.subr.bf16.mxu0 %v1662
    %1763 = vmatpush1.bf16.msra.mxu0 %v1661
    %1764 = vmatprep.subr.bf16.mxu0 %v1666
    %1765 = vmatpush1.bf16.msra.mxu0 %v1665
    %1766 = vmatprep.subr.bf16.mxu0 %v1670
    %1767 = vmatpush1.bf16.msra.mxu0 %v1669
    %1768 = vmatprep.subr.bf16.mxu0 %v1674
    %1769 = vmatpush1.bf16.msra.mxu0 %v1673
    %1770 = vmatprep.subr.bf16.mxu0 %v1678
    %1771 = vmatpush1.bf16.msra.mxu0 %v1677
    %1772 = vmatprep.subr.bf16.mxu0 %v1682
    %1773 = vmatpush1.bf16.msra.mxu0 %v1681
    %1774 = vmatprep.subr.bf16.mxu0 %v1686
    %1775 = vmatpush1.bf16.msra.mxu0 %v1685
    %1776 = vmatprep.subr.bf16.mxu0 0
    %1777 = vmatpush1.bf16.msra.mxu0 0
    %1778 = vmatprep.subr.bf16.mxu0 0
    %1779 = vmatpush1.bf16.msra.mxu0 0
    %1780 = vmatprep.subr.bf16.mxu0 0
    %1781 = vmatpush1.bf16.msra.mxu0 0
    %1782 = vmatprep.subr.bf16.mxu0 0
    %1783 = vmatpush1.bf16.msra.mxu0 0
    %1784 = vmatprep.subr.bf16.mxu0 0
    %1785 = vmatpush1.bf16.msra.mxu0 0
    %1786 = vmatprep.subr.bf16.mxu0 0
    %1787 = vmatpush1.bf16.msra.mxu0 0
    %1788 = vmatprep.subr.bf16.mxu0 0
    %1789 = vmatpush1.bf16.msra.mxu0 0
    %1790 = vmatprep.subr.bf16.mxu0 0
    %1791 = vmatpush1.bf16.msra.mxu0 0
    %1792 = vmatprep.mubr.bf16.mxu0 0
    %1793 = vmatmul.mubr.bf16.gmra.mrb[0].mxu0 %v1526
    %v1794 = vpop.f32.mrb[0].mxu0
    %v1795 = vadd.f32 0.0, %v1794
    %v1796 = vpop.f32.mrb[0].mxu0
    %v1797 = vadd.f32 0.0, %v1796
    %v1798 = vpop.f32.mrb[0].mxu0
    %v1799 = vpop.f32.mrb[0].mxu0
    %1800 = vdwg.mxu0
    %v1801 = vadd.f32 %v1522, %v1754
    %v1802 = vadd.f32 %v1523, %v1756
    %v1803 = vadd.f32 %v1524, %v1795
    %v1804 = vadd.f32 %v1525, %v1797
    %v1805 = vxor.u32 %v1801, 2147483648
    %v1806 = vmul.f32 %v1805, 1.442695
    %v1807 = vpow.pop %v1806
    %v1808 = vadd.f32 %v1807, 1.0
    %v1809 = vrcp.pop %v1808
    %v1810 = vmul.f32 1.0, %v1809
    %v1811 = vxor.u32 %v1802, 2147483648
    %v1812 = vmul.f32 %v1811, 1.442695
    %v1813 = vpow.pop %v1812
    %v1814 = vadd.f32 %v1813, 1.0
    %v1815 = vrcp.pop %v1814
    %v1816 = vmul.f32 1.0, %v1815
    %v1817 = vtanh.pop %v1803
    %v1818 = vxor.u32 %v1804, 2147483648
    %v1819 = vmul.f32 %v1818, 1.442695
    %v1820 = vpow.pop %v1819
    %v1821 = vadd.f32 %v1820, 1.0
    %v1822 = vrcp.pop %v1821
    %v1823 = vmul.f32 1.0, %v1822
    %v1824 = vmul.f32 %v1816, %v1516
    %v1825 = vmul.f32 %v1810, %v1817
    %v1826 = vadd.f32 %v1824, %v1825
    %v1827 = vtanh.pop %v1826
    %v1828 = vmul.f32 %v1823, %v1827
    %s1829 = scalar_lea.vmem [#allocation3], 24
    %1830 = vst [vmem:[%s1829] sm:$0xff] %v1828
    %s1831 = scalar_lea.vmem [#allocation2], 128
    %v1832 = vld [vmem:[%s1831] sm:$0xff]
    %v1833 = vld [vmem:[%s1831 + $0x8] sm:$0xff]
    %v1834 = vld [vmem:[%s1831 + $0x10] sm:$0xff]
    %v1835 = vld [vmem:[%s1831 + $0x18] sm:$0xff]
    %v1836 = vpack.c.bf16 %v1828, %v1828
    %v1837 = vld [vmem:[#allocation9] sm:$0xff]
    %v1838 = vld [vmem:[#allocation9 + $0x8] sm:$0xff]
    %v1839 = vld [vmem:[#allocation9 + $0x10] sm:$0xff]
    %v1840 = vld [vmem:[#allocation9 + $0x18] sm:$0xff]
    %v1841 = vld [vmem:[#allocation9 + $0x20] sm:$0xff]
    %v1842 = vld [vmem:[#allocation9 + $0x28] sm:$0xff]
    %v1843 = vld [vmem:[#allocation9 + $0x30] sm:$0xff]
    %v1844 = vld [vmem:[#allocation9 + $0x38] sm:$0xff]
    %v1845 = vld [vmem:[#allocation9 + $0x40] sm:$0xff]
    %v1846 = vld [vmem:[#allocation9 + $0x48] sm:$0xff]
    %v1847 = vld [vmem:[#allocation9 + $0x50] sm:$0xff]
    %v1848 = vld [vmem:[#allocation9 + $0x58] sm:$0xff]
    %v1849 = vld [vmem:[#allocation9 + $0x60] sm:$0xff]
    %v1850 = vld [vmem:[#allocation9 + $0x68] sm:$0xff]
    %v1851 = vld [vmem:[#allocation9 + $0x70] sm:$0xff]
    %v1852 = vld [vmem:[#allocation9 + $0x78] sm:$0xff]
    %v1853 = vld [vmem:[#allocation9 + $0x80] sm:$0xff]
    %v1854 = vld [vmem:[#allocation9 + $0x88] sm:$0xff]
    %v1855 = vld [vmem:[#allocation9 + $0x90] sm:$0xff]
    %v1856 = vld [vmem:[#allocation9 + $0x98] sm:$0xff]
    %v1857 = vld [vmem:[#allocation9 + $0xa0] sm:$0xff]
    %v1858 = vld [vmem:[#allocation9 + $0xa8] sm:$0xff]
    %v1859 = vld [vmem:[#allocation9 + $0xb0] sm:$0xff]
    %v1860 = vld [vmem:[#allocation9 + $0xb8] sm:$0xff]
    %v1861 = vld [vmem:[#allocation9 + $0xc0] sm:$0xff]
    %v1862 = vld [vmem:[#allocation9 + $0xc8] sm:$0xff]
    %v1863 = vld [vmem:[#allocation9 + $0xd0] sm:$0xff]
    %v1864 = vld [vmem:[#allocation9 + $0xd8] sm:$0xff]
    %v1865 = vld [vmem:[#allocation9 + $0xe0] sm:$0xff]
    %v1866 = vld [vmem:[#allocation9 + $0xe8] sm:$0xff]
    %v1867 = vld [vmem:[#allocation9 + $0xf0] sm:$0xff]
    %v1868 = vld [vmem:[#allocation9 + $0xf8] sm:$0xff]
    %v1901 = vunpack.c.l.b16 %v1837
    %v1902 = vunpack.c.h.b16 %v1837
    %v1903 = vunpack.c.l.b16 %v1838
    %v1904 = vunpack.c.h.b16 %v1838
    %v1905 = vunpack.c.l.b16 %v1839
    %v1906 = vunpack.c.h.b16 %v1839
    %v1907 = vunpack.c.l.b16 %v1840
    %v1908 = vunpack.c.h.b16 %v1840
    %v1909 = vunpack.c.l.b16 %v1841
    %v1910 = vunpack.c.h.b16 %v1841
    %v1911 = vunpack.c.l.b16 %v1842
    %v1912 = vunpack.c.h.b16 %v1842
    %v1913 = vunpack.c.l.b16 %v1843
    %v1914 = vunpack.c.h.b16 %v1843
    %v1915 = vunpack.c.l.b16 %v1844
    %v1916 = vunpack.c.h.b16 %v1844
    %v1917 = vunpack.c.l.b16 %v1845
    %v1918 = vunpack.c.h.b16 %v1845
    %v1919 = vunpack.c.l.b16 %v1846
    %v1920 = vunpack.c.h.b16 %v1846
    %v1921 = vunpack.c.l.b16 %v1847
    %v1922 = vunpack.c.h.b16 %v1847
    %v1923 = vunpack.c.l.b16 %v1848
    %v1924 = vunpack.c.h.b16 %v1848
    %v1925 = vunpack.c.l.b16 %v1849
    %v1926 = vunpack.c.h.b16 %v1849
    %v1927 = vunpack.c.l.b16 %v1850
    %v1928 = vunpack.c.h.b16 %v1850
    %v1929 = vunpack.c.l.b16 %v1851
    %v1930 = vunpack.c.h.b16 %v1851
    %v1931 = vunpack.c.l.b16 %v1852
    %v1932 = vunpack.c.h.b16 %v1852
    %v1933 = vunpack.c.l.b16 %v1853
    %v1934 = vunpack.c.h.b16 %v1853
    %v1935 = vunpack.c.l.b16 %v1854
    %v1936 = vunpack.c.h.b16 %v1854
    %v1937 = vunpack.c.l.b16 %v1855
    %v1938 = vunpack.c.h.b16 %v1855
    %v1939 = vunpack.c.l.b16 %v1856
    %v1940 = vunpack.c.h.b16 %v1856
    %v1941 = vunpack.c.l.b16 %v1857
    %v1942 = vunpack.c.h.b16 %v1857
    %v1943 = vunpack.c.l.b16 %v1858
    %v1944 = vunpack.c.h.b16 %v1858
    %v1945 = vunpack.c.l.b16 %v1859
    %v1946 = vunpack.c.h.b16 %v1859
    %v1947 = vunpack.c.l.b16 %v1860
    %v1948 = vunpack.c.h.b16 %v1860
    %v1949 = vunpack.c.l.b16 %v1861
    %v1950 = vunpack.c.h.b16 %v1861
    %v1951 = vunpack.c.l.b16 %v1862
    %v1952 = vunpack.c.h.b16 %v1862
    %v1953 = vunpack.c.l.b16 %v1863
    %v1954 = vunpack.c.h.b16 %v1863
    %v1955 = vunpack.c.l.b16 %v1864
    %v1956 = vunpack.c.h.b16 %v1864
    %v1957 = vunpack.c.l.b16 %v1865
    %v1958 = vunpack.c.h.b16 %v1865
    %v1959 = vunpack.c.l.b16 %v1866
    %v1960 = vunpack.c.h.b16 %v1866
    %v1961 = vunpack.c.l.b16 %v1867
    %v1962 = vunpack.c.h.b16 %v1867
    %v1963 = vunpack.c.l.b16 %v1868
    %v1964 = vunpack.c.h.b16 %v1868
    %v1965 = vpack.c.b16 %v1905, %v1901
    %v1966 = vpack.c.b16 %v1906, %v1902
    %v1967 = vpack.c.b16 %v1907, %v1903
    %v1968 = vpack.c.b16 %v1908, %v1904
    %v1969 = vpack.c.b16 %v1913, %v1909
    %v1970 = vpack.c.b16 %v1914, %v1910
    %v1971 = vpack.c.b16 %v1915, %v1911
    %v1972 = vpack.c.b16 %v1916, %v1912
    %v1973 = vpack.c.b16 %v1921, %v1917
    %v1974 = vpack.c.b16 %v1922, %v1918
    %v1975 = vpack.c.b16 %v1923, %v1919
    %v1976 = vpack.c.b16 %v1924, %v1920
    %v1977 = vpack.c.b16 %v1929, %v1925
    %v1978 = vpack.c.b16 %v1930, %v1926
    %v1979 = vpack.c.b16 %v1931, %v1927
    %v1980 = vpack.c.b16 %v1932, %v1928
    %v1981 = vpack.c.b16 %v1937, %v1933
    %v1982 = vpack.c.b16 %v1938, %v1934
    %v1983 = vpack.c.b16 %v1939, %v1935
    %v1984 = vpack.c.b16 %v1940, %v1936
    %v1985 = vpack.c.b16 %v1945, %v1941
    %v1986 = vpack.c.b16 %v1946, %v1942
    %v1987 = vpack.c.b16 %v1947, %v1943
    %v1988 = vpack.c.b16 %v1948, %v1944
    %v1989 = vpack.c.b16 %v1953, %v1949
    %v1990 = vpack.c.b16 %v1954, %v1950
    %v1991 = vpack.c.b16 %v1955, %v1951
    %v1992 = vpack.c.b16 %v1956, %v1952
    %v1993 = vpack.c.b16 %v1961, %v1957
    %v1994 = vpack.c.b16 %v1962, %v1958
    %v1995 = vpack.c.b16 %v1963, %v1959
    %v1996 = vpack.c.b16 %v1964, %v1960
    %2029 = vmatprep.subr.bf16.mxu0 %v1966
    %2030 = vmatpush1.bf16.msra.mxu0 %v1965
    %2031 = vmatprep.subr.bf16.mxu0 %v1970
    %2032 = vmatpush1.bf16.msra.mxu0 %v1969
    %2033 = vmatprep.subr.bf16.mxu0 %v1974
    %2034 = vmatpush1.bf16.msra.mxu0 %v1973
    %2035 = vmatprep.subr.bf16.mxu0 %v1978
    %2036 = vmatpush1.bf16.msra.mxu0 %v1977
    %2037 = vmatprep.subr.bf16.mxu0 %v1982
    %2038 = vmatpush1.bf16.msra.mxu0 %v1981
    %2039 = vmatprep.subr.bf16.mxu0 %v1986
    %2040 = vmatpush1.bf16.msra.mxu0 %v1985
    %2041 = vmatprep.subr.bf16.mxu0 %v1990
    %2042 = vmatpush1.bf16.msra.mxu0 %v1989
    %2043 = vmatprep.subr.bf16.mxu0 %v1994
    %2044 = vmatpush1.bf16.msra.mxu0 %v1993
    %2045 = vmatprep.subr.bf16.mxu0 0
    %2046 = vmatpush1.bf16.msra.mxu0 0
    %2047 = vmatprep.subr.bf16.mxu0 0
    %2048 = vmatpush1.bf16.msra.mxu0 0
    %2049 = vmatprep.subr.bf16.mxu0 0
    %2050 = vmatpush1.bf16.msra.mxu0 0
    %2051 = vmatprep.subr.bf16.mxu0 0
    %2052 = vmatpush1.bf16.msra.mxu0 0
    %2053 = vmatprep.subr.bf16.mxu0 0
    %2054 = vmatpush1.bf16.msra.mxu0 0
    %2055 = vmatprep.subr.bf16.mxu0 0
    %2056 = vmatpush1.bf16.msra.mxu0 0
    %2057 = vmatprep.subr.bf16.mxu0 0
    %2058 = vmatpush1.bf16.msra.mxu0 0
    %2059 = vmatprep.subr.bf16.mxu0 0
    %2060 = vmatpush1.bf16.msra.mxu0 0
    %2061 = vmatprep.mubr.bf16.mxu0 0
    %2062 = vmatmul.mubr.bf16.gmra.mrb[0].mxu0 %v1836
    %v2063 = vpop.f32.mrb[0].mxu0
    %v2064 = vadd.f32 0.0, %v2063
    %v2065 = vpop.f32.mrb[0].mxu0
    %v2066 = vadd.f32 0.0, %v2065
    %v2067 = vpop.f32.mrb[0].mxu0
    %v2068 = vpop.f32.mrb[0].mxu0
    %2069 = vdwg.mxu0
    %2070 = vmatprep.subr.bf16.mxu0 %v1968
    %2071 = vmatpush1.bf16.msra.mxu0 %v1967
    %2072 = vmatprep.subr.bf16.mxu0 %v1972
    %2073 = vmatpush1.bf16.msra.mxu0 %v1971
    %2074 = vmatprep.subr.bf16.mxu0 %v1976
    %2075 = vmatpush1.bf16.msra.mxu0 %v1975
    %2076 = vmatprep.subr.bf16.mxu0 %v1980
    %2077 = vmatpush1.bf16.msra.mxu0 %v1979
    %2078 = vmatprep.subr.bf16.mxu0 %v1984
    %2079 = vmatpush1.bf16.msra.mxu0 %v1983
    %2080 = vmatprep.subr.bf16.mxu0 %v1988
    %2081 = vmatpush1.bf16.msra.mxu0 %v1987
    %2082 = vmatprep.subr.bf16.mxu0 %v1992
    %2083 = vmatpush1.bf16.msra.mxu0 %v1991
    %2084 = vmatprep.subr.bf16.mxu0 %v1996
    %2085 = vmatpush1.bf16.msra.mxu0 %v1995
    %2086 = vmatprep.subr.bf16.mxu0 0
    %2087 = vmatpush1.bf16.msra.mxu0 0
    %2088 = vmatprep.subr.bf16.mxu0 0
    %2089 = vmatpush1.bf16.msra.mxu0 0
    %2090 = vmatprep.subr.bf16.mxu0 0
    %2091 = vmatpush1.bf16.msra.mxu0 0
    %2092 = vmatprep.subr.bf16.mxu0 0
    %2093 = vmatpush1.bf16.msra.mxu0 0
    %2094 = vmatprep.subr.bf16.mxu0 0
    %2095 = vmatpush1.bf16.msra.mxu0 0
    %2096 = vmatprep.subr.bf16.mxu0 0
    %2097 = vmatpush1.bf16.msra.mxu0 0
    %2098 = vmatprep.subr.bf16.mxu0 0
    %2099 = vmatpush1.bf16.msra.mxu0 0
    %2100 = vmatprep.subr.bf16.mxu0 0
    %2101 = vmatpush1.bf16.msra.mxu0 0
    %2102 = vmatprep.mubr.bf16.mxu0 0
    %2103 = vmatmul.mubr.bf16.gmra.mrb[0].mxu0 %v1836
    %v2104 = vpop.f32.mrb[0].mxu0
    %v2105 = vadd.f32 0.0, %v2104
    %v2106 = vpop.f32.mrb[0].mxu0
    %v2107 = vadd.f32 0.0, %v2106
    %v2108 = vpop.f32.mrb[0].mxu0
    %v2109 = vpop.f32.mrb[0].mxu0
    %2110 = vdwg.mxu0
    %v2111 = vadd.f32 %v1832, %v2064
    %v2112 = vadd.f32 %v1833, %v2066
    %v2113 = vadd.f32 %v1834, %v2105
    %v2114 = vadd.f32 %v1835, %v2107
    %v2115 = vxor.u32 %v2111, 2147483648
    %v2116 = vmul.f32 %v2115, 1.442695
    %v2117 = vpow.pop %v2116
    %v2118 = vadd.f32 %v2117, 1.0
    %v2119 = vrcp.pop %v2118
    %v2120 = vmul.f32 1.0, %v2119
    %v2121 = vxor.u32 %v2112, 2147483648
    %v2122 = vmul.f32 %v2121, 1.442695
    %v2123 = vpow.pop %v2122
    %v2124 = vadd.f32 %v2123, 1.0
    %v2125 = vrcp.pop %v2124
    %v2126 = vmul.f32 1.0, %v2125
    %v2127 = vtanh.pop %v2113
    %v2128 = vxor.u32 %v2114, 2147483648
    %v2129 = vmul.f32 %v2128, 1.442695
    %v2130 = vpow.pop %v2129
    %v2131 = vadd.f32 %v2130, 1.0
    %v2132 = vrcp.pop %v2131
    %v2133 = vmul.f32 1.0, %v2132
    %v2134 = vmul.f32 %v2126, %v1826
    %v2135 = vmul.f32 %v2120, %v2127
    %v2136 = vadd.f32 %v2134, %v2135
    %v2137 = vtanh.pop %v2136
    %v2138 = vmul.f32 %v2133, %v2137
    %s2139 = scalar_lea.vmem [#allocation3], 32
    %2140 = vst [vmem:[%s2139] sm:$0xff] %v2138
    %s2141 = scalar_lea.vmem [#allocation2], 160
    %v2142 = vld [vmem:[%s2141] sm:$0xff]
    %v2143 = vld [vmem:[%s2141 + $0x8] sm:$0xff]
    %v2144 = vld [vmem:[%s2141 + $0x10] sm:$0xff]
    %v2145 = vld [vmem:[%s2141 + $0x18] sm:$0xff]
    %v2146 = vpack.c.bf16 %v2138, %v2138
    %v2147 = vld [vmem:[#allocation9] sm:$0xff]
    %v2148 = vld [vmem:[#allocation9 + $0x8] sm:$0xff]
    %v2149 = vld [vmem:[#allocation9 + $0x10] sm:$0xff]
    %v2150 = vld [vmem:[#allocation9 + $0x18] sm:$0xff]
    %v2151 = vld [vmem:[#allocation9 + $0x20] sm:$0xff]
    %v2152 = vld [vmem:[#allocation9 + $0x28] sm:$0xff]
    %v2153 = vld [vmem:[#allocation9 + $0x30] sm:$0xff]
    %v2154 = vld [vmem:[#allocation9 + $0x38] sm:$0xff]
    %v2155 = vld [vmem:[#allocation9 + $0x40] sm:$0xff]
    %v2156 = vld [vmem:[#allocation9 + $0x48] sm:$0xff]
    %v2157 = vld [vmem:[#allocation9 + $0x50] sm:$0xff]
    %v2158 = vld [vmem:[#allocation9 + $0x58] sm:$0xff]
    %v2159 = vld [vmem:[#allocation9 + $0x60] sm:$0xff]
    %v2160 = vld [vmem:[#allocation9 + $0x68] sm:$0xff]
    %v2161 = vld [vmem:[#allocation9 + $0x70] sm:$0xff]
    %v2162 = vld [vmem:[#allocation9 + $0x78] sm:$0xff]
    %v2163 = vld [vmem:[#allocation9 + $0x80] sm:$0xff]
    %v2164 = vld [vmem:[#allocation9 + $0x88] sm:$0xff]
    %v2165 = vld [vmem:[#allocation9 + $0x90] sm:$0xff]
    %v2166 = vld [vmem:[#allocation9 + $0x98] sm:$0xff]
    %v2167 = vld [vmem:[#allocation9 + $0xa0] sm:$0xff]
    %v2168 = vld [vmem:[#allocation9 + $0xa8] sm:$0xff]
    %v2169 = vld [vmem:[#allocation9 + $0xb0] sm:$0xff]
    %v2170 = vld [vmem:[#allocation9 + $0xb8] sm:$0xff]
    %v2171 = vld [vmem:[#allocation9 + $0xc0] sm:$0xff]
    %v2172 = vld [vmem:[#allocation9 + $0xc8] sm:$0xff]
    %v2173 = vld [vmem:[#allocation9 + $0xd0] sm:$0xff]
    %v2174 = vld [vmem:[#allocation9 + $0xd8] sm:$0xff]
    %v2175 = vld [vmem:[#allocation9 + $0xe0] sm:$0xff]
    %v2176 = vld [vmem:[#allocation9 + $0xe8] sm:$0xff]
    %v2177 = vld [vmem:[#allocation9 + $0xf0] sm:$0xff]
    %v2178 = vld [vmem:[#allocation9 + $0xf8] sm:$0xff]
    %v2211 = vunpack.c.l.b16 %v2147
    %v2212 = vunpack.c.h.b16 %v2147
    %v2213 = vunpack.c.l.b16 %v2148
    %v2214 = vunpack.c.h.b16 %v2148
    %v2215 = vunpack.c.l.b16 %v2149
    %v2216 = vunpack.c.h.b16 %v2149
    %v2217 = vunpack.c.l.b16 %v2150
    %v2218 = vunpack.c.h.b16 %v2150
    %v2219 = vunpack.c.l.b16 %v2151
    %v2220 = vunpack.c.h.b16 %v2151
    %v2221 = vunpack.c.l.b16 %v2152
    %v2222 = vunpack.c.h.b16 %v2152
    %v2223 = vunpack.c.l.b16 %v2153
    %v2224 = vunpack.c.h.b16 %v2153
    %v2225 = vunpack.c.l.b16 %v2154
    %v2226 = vunpack.c.h.b16 %v2154
    %v2227 = vunpack.c.l.b16 %v2155
    %v2228 = vunpack.c.h.b16 %v2155
    %v2229 = vunpack.c.l.b16 %v2156
    %v2230 = vunpack.c.h.b16 %v2156
    %v2231 = vunpack.c.l.b16 %v2157
    %v2232 = vunpack.c.h.b16 %v2157
    %v2233 = vunpack.c.l.b16 %v2158
    %v2234 = vunpack.c.h.b16 %v2158
    %v2235 = vunpack.c.l.b16 %v2159
    %v2236 = vunpack.c.h.b16 %v2159
    %v2237 = vunpack.c.l.b16 %v2160
    %v2238 = vunpack.c.h.b16 %v2160
    %v2239 = vunpack.c.l.b16 %v2161
    %v2240 = vunpack.c.h.b16 %v2161
    %v2241 = vunpack.c.l.b16 %v2162
    %v2242 = vunpack.c.h.b16 %v2162
    %v2243 = vunpack.c.l.b16 %v2163
    %v2244 = vunpack.c.h.b16 %v2163
    %v2245 = vunpack.c.l.b16 %v2164
    %v2246 = vunpack.c.h.b16 %v2164
    %v2247 = vunpack.c.l.b16 %v2165
    %v2248 = vunpack.c.h.b16 %v2165
    %v2249 = vunpack.c.l.b16 %v2166
    %v2250 = vunpack.c.h.b16 %v2166
    %v2251 = vunpack.c.l.b16 %v2167
    %v2252 = vunpack.c.h.b16 %v2167
    %v2253 = vunpack.c.l.b16 %v2168
    %v2254 = vunpack.c.h.b16 %v2168
    %v2255 = vunpack.c.l.b16 %v2169
    %v2256 = vunpack.c.h.b16 %v2169
    %v2257 = vunpack.c.l.b16 %v2170
    %v2258 = vunpack.c.h.b16 %v2170
    %v2259 = vunpack.c.l.b16 %v2171
    %v2260 = vunpack.c.h.b16 %v2171
    %v2261 = vunpack.c.l.b16 %v2172
    %v2262 = vunpack.c.h.b16 %v2172
    %v2263 = vunpack.c.l.b16 %v2173
    %v2264 = vunpack.c.h.b16 %v2173
    %v2265 = vunpack.c.l.b16 %v2174
    %v2266 = vunpack.c.h.b16 %v2174
    %v2267 = vunpack.c.l.b16 %v2175
    %v2268 = vunpack.c.h.b16 %v2175
    %v2269 = vunpack.c.l.b16 %v2176
    %v2270 = vunpack.c.h.b16 %v2176
    %v2271 = vunpack.c.l.b16 %v2177
    %v2272 = vunpack.c.h.b16 %v2177
    %v2273 = vunpack.c.l.b16 %v2178
    %v2274 = vunpack.c.h.b16 %v2178
    %v2275 = vpack.c.b16 %v2215, %v2211
    %v2276 = vpack.c.b16 %v2216, %v2212
    %v2277 = vpack.c.b16 %v2217, %v2213
    %v2278 = vpack.c.b16 %v2218, %v2214
    %v2279 = vpack.c.b16 %v2223, %v2219
    %v2280 = vpack.c.b16 %v2224, %v2220
    %v2281 = vpack.c.b16 %v2225, %v2221
    %v2282 = vpack.c.b16 %v2226, %v2222
    %v2283 = vpack.c.b16 %v2231, %v2227
    %v2284 = vpack.c.b16 %v2232, %v2228
    %v2285 = vpack.c.b16 %v2233, %v2229
    %v2286 = vpack.c.b16 %v2234, %v2230
    %v2287 = vpack.c.b16 %v2239, %v2235
    %v2288 = vpack.c.b16 %v2240, %v2236
    %v2289 = vpack.c.b16 %v2241, %v2237
    %v2290 = vpack.c.b16 %v2242, %v2238
    %v2291 = vpack.c.b16 %v2247, %v2243
    %v2292 = vpack.c.b16 %v2248, %v2244
    %v2293 = vpack.c.b16 %v2249, %v2245
    %v2294 = vpack.c.b16 %v2250, %v2246
    %v2295 = vpack.c.b16 %v2255, %v2251
    %v2296 = vpack.c.b16 %v2256, %v2252
    %v2297 = vpack.c.b16 %v2257, %v2253
    %v2298 = vpack.c.b16 %v2258, %v2254
    %v2299 = vpack.c.b16 %v2263, %v2259
    %v2300 = vpack.c.b16 %v2264, %v2260
    %v2301 = vpack.c.b16 %v2265, %v2261
    %v2302 = vpack.c.b16 %v2266, %v2262
    %v2303 = vpack.c.b16 %v2271, %v2267
    %v2304 = vpack.c.b16 %v2272, %v2268
    %v2305 = vpack.c.b16 %v2273, %v2269
    %v2306 = vpack.c.b16 %v2274, %v2270
    %2339 = vmatprep.subr.bf16.mxu0 %v2276
    %2340 = vmatpush1.bf16.msra.mxu0 %v2275
    %2341 = vmatprep.subr.bf16.mxu0 %v2280
    %2342 = vmatpush1.bf16.msra.mxu0 %v2279
    %2343 = vmatprep.subr.bf16.mxu0 %v2284
    %2344 = vmatpush1.bf16.msra.mxu0 %v2283
    %2345 = vmatprep.subr.bf16.mxu0 %v2288
    %2346 = vmatpush1.bf16.msra.mxu0 %v2287
    %2347 = vmatprep.subr.bf16.mxu0 %v2292
    %2348 = vmatpush1.bf16.msra.mxu0 %v2291
    %2349 = vmatprep.subr.bf16.mxu0 %v2296
    %2350 = vmatpush1.bf16.msra.mxu0 %v2295
    %2351 = vmatprep.subr.bf16.mxu0 %v2300
    %2352 = vmatpush1.bf16.msra.mxu0 %v2299
    %2353 = vmatprep.subr.bf16.mxu0 %v2304
    %2354 = vmatpush1.bf16.msra.mxu0 %v2303
    %2355 = vmatprep.subr.bf16.mxu0 0
    %2356 = vmatpush1.bf16.msra.mxu0 0
    %2357 = vmatprep.subr.bf16.mxu0 0
    %2358 = vmatpush1.bf16.msra.mxu0 0
    %2359 = vmatprep.subr.bf16.mxu0 0
    %2360 = vmatpush1.bf16.msra.mxu0 0
    %2361 = vmatprep.subr.bf16.mxu0 0
    %2362 = vmatpush1.bf16.msra.mxu0 0
    %2363 = vmatprep.subr.bf16.mxu0 0
    %2364 = vmatpush1.bf16.msra.mxu0 0
    %2365 = vmatprep.subr.bf16.mxu0 0
    %2366 = vmatpush1.bf16.msra.mxu0 0
    %2367 = vmatprep.subr.bf16.mxu0 0
    %2368 = vmatpush1.bf16.msra.mxu0 0
    %2369 = vmatprep.subr.bf16.mxu0 0
    %2370 = vmatpush1.bf16.msra.mxu0 0
    %2371 = vmatprep.mubr.bf16.mxu0 0
    %2372 = vmatmul.mubr.bf16.gmra.mrb[0].mxu0 %v2146
    %v2373 = vpop.f32.mrb[0].mxu0
    %v2374 = vadd.f32 0.0, %v2373
    %v2375 = vpop.f32.mrb[0].mxu0
    %v2376 = vadd.f32 0.0, %v2375
    %v2377 = vpop.f32.mrb[0].mxu0
    %v2378 = vpop.f32.mrb[0].mxu0
    %2379 = vdwg.mxu0
    %2380 = vmatprep.subr.bf16.mxu0 %v2278
    %2381 = vmatpush1.bf16.msra.mxu0 %v2277
    %2382 = vmatprep.subr.bf16.mxu0 %v2282
    %2383 = vmatpush1.bf16.msra.mxu0 %v2281
    %2384 = vmatprep.subr.bf16.mxu0 %v2286
    %2385 = vmatpush1.bf16.msra.mxu0 %v2285
    %2386 = vmatprep.subr.bf16.mxu0 %v2290
    %2387 = vmatpush1.bf16.msra.mxu0 %v2289
    %2388 = vmatprep.subr.bf16.mxu0 %v2294
    %2389 = vmatpush1.bf16.msra.mxu0 %v2293
    %2390 = vmatprep.subr.bf16.mxu0 %v2298
    %2391 = vmatpush1.bf16.msra.mxu0 %v2297
    %2392 = vmatprep.subr.bf16.mxu0 %v2302
    %2393 = vmatpush1.bf16.msra.mxu0 %v2301
    %2394 = vmatprep.subr.bf16.mxu0 %v2306
    %2395 = vmatpush1.bf16.msra.mxu0 %v2305
    %2396 = vmatprep.subr.bf16.mxu0 0
    %2397 = vmatpush1.bf16.msra.mxu0 0
    %2398 = vmatprep.subr.bf16.mxu0 0
    %2399 = vmatpush1.bf16.msra.mxu0 0
    %2400 = vmatprep.subr.bf16.mxu0 0
    %2401 = vmatpush1.bf16.msra.mxu0 0
    %2402 = vmatprep.subr.bf16.mxu0 0
    %2403 = vmatpush1.bf16.msra.mxu0 0
    %2404 = vmatprep.subr.bf16.mxu0 0
    %2405 = vmatpush1.bf16.msra.mxu0 0
    %2406 = vmatprep.subr.bf16.mxu0 0
    %2407 = vmatpush1.bf16.msra.mxu0 0
    %2408 = vmatprep.subr.bf16.mxu0 0
    %2409 = vmatpush1.bf16.msra.mxu0 0
    %2410 = vmatprep.subr.bf16.mxu0 0
    %2411 = vmatpush1.bf16.msra.mxu0 0
    %2412 = vmatprep.mubr.bf16.mxu0 0
    %2413 = vmatmul.mubr.bf16.gmra.mrb[0].mxu0 %v2146
    %v2414 = vpop.f32.mrb[0].mxu0
    %v2415 = vadd.f32 0.0, %v2414
    %v2416 = vpop.f32.mrb[0].mxu0
    %v2417 = vadd.f32 0.0, %v2416
    %v2418 = vpop.f32.mrb[0].mxu0
    %v2419 = vpop.f32.mrb[0].mxu0
    %2420 = vdwg.mxu0
    %v2421 = vadd.f32 %v2142, %v2374
    %v2422 = vadd.f32 %v2143, %v2376
    %v2423 = vadd.f32 %v2144, %v2415
    %v2424 = vadd.f32 %v2145, %v2417
    %v2425 = vxor.u32 %v2421, 2147483648
    %v2426 = vmul.f32 %v2425, 1.442695
    %v2427 = vpow.pop %v2426
    %v2428 = vadd.f32 %v2427, 1.0
    %v2429 = vrcp.pop %v2428
    %v2430 = vmul.f32 1.0, %v2429
    %v2431 = vxor.u32 %v2422, 2147483648
    %v2432 = vmul.f32 %v2431, 1.442695
    %v2433 = vpow.pop %v2432
    %v2434 = vadd.f32 %v2433, 1.0
    %v2435 = vrcp.pop %v2434
    %v2436 = vmul.f32 1.0, %v2435
    %v2437 = vtanh.pop %v2423
    %v2438 = vxor.u32 %v2424, 2147483648
    %v2439 = vmul.f32 %v2438, 1.442695
    %v2440 = vpow.pop %v2439
    %v2441 = vadd.f32 %v2440, 1.0
    %v2442 = vrcp.pop %v2441
    %v2443 = vmul.f32 1.0, %v2442
    %v2444 = vmul.f32 %v2436, %v2136
    %v2445 = vmul.f32 %v2430, %v2437
    %v2446 = vadd.f32 %v2444, %v2445
    %v2447 = vtanh.pop %v2446
    %v2448 = vmul.f32 %v2443, %v2447
    %s2449 = scalar_lea.vmem [#allocation3], 40
    %2450 = vst [vmem:[%s2449] sm:$0xff] %v2448
    %s2451 = scalar_lea.vmem [#allocation2], 192
    %v2452 = vld [vmem:[%s2451] sm:$0xff]
    %v2453 = vld [vmem:[%s2451 + $0x8] sm:$0xff]
    %v2454 = vld [vmem:[%s2451 + $0x10] sm:$0xff]
    %v2455 = vld [vmem:[%s2451 + $0x18] sm:$0xff]
    %v2456 = vpack.c.bf16 %v2448, %v2448
    %v2457 = vld [vmem:[#allocation9] sm:$0xff]
    %v2458 = vld [vmem:[#allocation9 + $0x8] sm:$0xff]
    %v2459 = vld [vmem:[#allocation9 + $0x10] sm:$0xff]
    %v2460 = vld [vmem:[#allocation9 + $0x18] sm:$0xff]
    %v2461 = vld [vmem:[#allocation9 + $0x20] sm:$0xff]
    %v2462 = vld [vmem:[#allocation9 + $0x28] sm:$0xff]
    %v2463 = vld [vmem:[#allocation9 + $0x30] sm:$0xff]
    %v2464 = vld [vmem:[#allocation9 + $0x38] sm:$0xff]
    %v2465 = vld [vmem:[#allocation9 + $0x40] sm:$0xff]
    %v2466 = vld [vmem:[#allocation9 + $0x48] sm:$0xff]
    %v2467 = vld [vmem:[#allocation9 + $0x50] sm:$0xff]
    %v2468 = vld [vmem:[#allocation9 + $0x58] sm:$0xff]
    %v2469 = vld [vmem:[#allocation9 + $0x60] sm:$0xff]
    %v2470 = vld [vmem:[#allocation9 + $0x68] sm:$0xff]
    %v2471 = vld [vmem:[#allocation9 + $0x70] sm:$0xff]
    %v2472 = vld [vmem:[#allocation9 + $0x78] sm:$0xff]
    %v2473 = vld [vmem:[#allocation9 + $0x80] sm:$0xff]
    %v2474 = vld [vmem:[#allocation9 + $0x88] sm:$0xff]
    %v2475 = vld [vmem:[#allocation9 + $0x90] sm:$0xff]
    %v2476 = vld [vmem:[#allocation9 + $0x98] sm:$0xff]
    %v2477 = vld [vmem:[#allocation9 + $0xa0] sm:$0xff]
    %v2478 = vld [vmem:[#allocation9 + $0xa8] sm:$0xff]
    %v2479 = vld [vmem:[#allocation9 + $0xb0] sm:$0xff]
    %v2480 = vld [vmem:[#allocation9 + $0xb8] sm:$0xff]
    %v2481 = vld [vmem:[#allocation9 + $0xc0] sm:$0xff]
    %v2482 = vld [vmem:[#allocation9 + $0xc8] sm:$0xff]
    %v2483 = vld [vmem:[#allocation9 + $0xd0] sm:$0xff]
    %v2484 = vld [vmem:[#allocation9 + $0xd8] sm:$0xff]
    %v2485 = vld [vmem:[#allocation9 + $0xe0] sm:$0xff]
    %v2486 = vld [vmem:[#allocation9 + $0xe8] sm:$0xff]
    %v2487 = vld [vmem:[#allocation9 + $0xf0] sm:$0xff]
    %v2488 = vld [vmem:[#allocation9 + $0xf8] sm:$0xff]
    %v2521 = vunpack.c.l.b16 %v2457
    %v2522 = vunpack.c.h.b16 %v2457
    %v2523 = vunpack.c.l.b16 %v2458
    %v2524 = vunpack.c.h.b16 %v2458
    %v2525 = vunpack.c.l.b16 %v2459
    %v2526 = vunpack.c.h.b16 %v2459
    %v2527 = vunpack.c.l.b16 %v2460
    %v2528 = vunpack.c.h.b16 %v2460
    %v2529 = vunpack.c.l.b16 %v2461
    %v2530 = vunpack.c.h.b16 %v2461
    %v2531 = vunpack.c.l.b16 %v2462
    %v2532 = vunpack.c.h.b16 %v2462
    %v2533 = vunpack.c.l.b16 %v2463
    %v2534 = vunpack.c.h.b16 %v2463
    %v2535 = vunpack.c.l.b16 %v2464
    %v2536 = vunpack.c.h.b16 %v2464
    %v2537 = vunpack.c.l.b16 %v2465
    %v2538 = vunpack.c.h.b16 %v2465
    %v2539 = vunpack.c.l.b16 %v2466
    %v2540 = vunpack.c.h.b16 %v2466
    %v2541 = vunpack.c.l.b16 %v2467
    %v2542 = vunpack.c.h.b16 %v2467
    %v2543 = vunpack.c.l.b16 %v2468
    %v2544 = vunpack.c.h.b16 %v2468
    %v2545 = vunpack.c.l.b16 %v2469
    %v2546 = vunpack.c.h.b16 %v2469
    %v2547 = vunpack.c.l.b16 %v2470
    %v2548 = vunpack.c.h.b16 %v2470
    %v2549 = vunpack.c.l.b16 %v2471
    %v2550 = vunpack.c.h.b16 %v2471
    %v2551 = vunpack.c.l.b16 %v2472
    %v2552 = vunpack.c.h.b16 %v2472
    %v2553 = vunpack.c.l.b16 %v2473
    %v2554 = vunpack.c.h.b16 %v2473
    %v2555 = vunpack.c.l.b16 %v2474
    %v2556 = vunpack.c.h.b16 %v2474
    %v2557 = vunpack.c.l.b16 %v2475
    %v2558 = vunpack.c.h.b16 %v2475
    %v2559 = vunpack.c.l.b16 %v2476
    %v2560 = vunpack.c.h.b16 %v2476
    %v2561 = vunpack.c.l.b16 %v2477
    %v2562 = vunpack.c.h.b16 %v2477
    %v2563 = vunpack.c.l.b16 %v2478
    %v2564 = vunpack.c.h.b16 %v2478
    %v2565 = vunpack.c.l.b16 %v2479
    %v2566 = vunpack.c.h.b16 %v2479
    %v2567 = vunpack.c.l.b16 %v2480
    %v2568 = vunpack.c.h.b16 %v2480
    %v2569 = vunpack.c.l.b16 %v2481
    %v2570 = vunpack.c.h.b16 %v2481
    %v2571 = vunpack.c.l.b16 %v2482
    %v2572 = vunpack.c.h.b16 %v2482
    %v2573 = vunpack.c.l.b16 %v2483
    %v2574 = vunpack.c.h.b16 %v2483
    %v2575 = vunpack.c.l.b16 %v2484
    %v2576 = vunpack.c.h.b16 %v2484
    %v2577 = vunpack.c.l.b16 %v2485
    %v2578 = vunpack.c.h.b16 %v2485
    %v2579 = vunpack.c.l.b16 %v2486
    %v2580 = vunpack.c.h.b16 %v2486
    %v2581 = vunpack.c.l.b16 %v2487
    %v2582 = vunpack.c.h.b16 %v2487
    %v2583 = vunpack.c.l.b16 %v2488
    %v2584 = vunpack.c.h.b16 %v2488
    %v2585 = vpack.c.b16 %v2525, %v2521
    %v2586 = vpack.c.b16 %v2526, %v2522
    %v2587 = vpack.c.b16 %v2527, %v2523
    %v2588 = vpack.c.b16 %v2528, %v2524
    %v2589 = vpack.c.b16 %v2533, %v2529
    %v2590 = vpack.c.b16 %v2534, %v2530
    %v2591 = vpack.c.b16 %v2535, %v2531
    %v2592 = vpack.c.b16 %v2536, %v2532
    %v2593 = vpack.c.b16 %v2541, %v2537
    %v2594 = vpack.c.b16 %v2542, %v2538
    %v2595 = vpack.c.b16 %v2543, %v2539
    %v2596 = vpack.c.b16 %v2544, %v2540
    %v2597 = vpack.c.b16 %v2549, %v2545
    %v2598 = vpack.c.b16 %v2550, %v2546
    %v2599 = vpack.c.b16 %v2551, %v2547
    %v2600 = vpack.c.b16 %v2552, %v2548
    %v2601 = vpack.c.b16 %v2557, %v2553
    %v2602 = vpack.c.b16 %v2558, %v2554
    %v2603 = vpack.c.b16 %v2559, %v2555
    %v2604 = vpack.c.b16 %v2560, %v2556
    %v2605 = vpack.c.b16 %v2565, %v2561
    %v2606 = vpack.c.b16 %v2566, %v2562
    %v2607 = vpack.c.b16 %v2567, %v2563
    %v2608 = vpack.c.b16 %v2568, %v2564
    %v2609 = vpack.c.b16 %v2573, %v2569
    %v2610 = vpack.c.b16 %v2574, %v2570
    %v2611 = vpack.c.b16 %v2575, %v2571
    %v2612 = vpack.c.b16 %v2576, %v2572
    %v2613 = vpack.c.b16 %v2581, %v2577
    %v2614 = vpack.c.b16 %v2582, %v2578
    %v2615 = vpack.c.b16 %v2583, %v2579
    %v2616 = vpack.c.b16 %v2584, %v2580
    %2649 = vmatprep.subr.bf16.mxu0 %v2586
    %2650 = vmatpush1.bf16.msra.mxu0 %v2585
    %2651 = vmatprep.subr.bf16.mxu0 %v2590
    %2652 = vmatpush1.bf16.msra.mxu0 %v2589
    %2653 = vmatprep.subr.bf16.mxu0 %v2594
    %2654 = vmatpush1.bf16.msra.mxu0 %v2593
    %2655 = vmatprep.subr.bf16.mxu0 %v2598
    %2656 = vmatpush1.bf16.msra.mxu0 %v2597
    %2657 = vmatprep.subr.bf16.mxu0 %v2602
    %2658 = vmatpush1.bf16.msra.mxu0 %v2601
    %2659 = vmatprep.subr.bf16.mxu0 %v2606
    %2660 = vmatpush1.bf16.msra.mxu0 %v2605
    %2661 = vmatprep.subr.bf16.mxu0 %v2610
    %2662 = vmatpush1.bf16.msra.mxu0 %v2609
    %2663 = vmatprep.subr.bf16.mxu0 %v2614
    %2664 = vmatpush1.bf16.msra.mxu0 %v2613
    %2665 = vmatprep.subr.bf16.mxu0 0
    %2666 = vmatpush1.bf16.msra.mxu0 0
    %2667 = vmatprep.subr.bf16.mxu0 0
    %2668 = vmatpush1.bf16.msra.mxu0 0
    %2669 = vmatprep.subr.bf16.mxu0 0
    %2670 = vmatpush1.bf16.msra.mxu0 0
    %2671 = vmatprep.subr.bf16.mxu0 0
    %2672 = vmatpush1.bf16.msra.mxu0 0
    %2673 = vmatprep.subr.bf16.mxu0 0
    %2674 = vmatpush1.bf16.msra.mxu0 0
    %2675 = vmatprep.subr.bf16.mxu0 0
    %2676 = vmatpush1.bf16.msra.mxu0 0
    %2677 = vmatprep.subr.bf16.mxu0 0
    %2678 = vmatpush1.bf16.msra.mxu0 0
    %2679 = vmatprep.subr.bf16.mxu0 0
    %2680 = vmatpush1.bf16.msra.mxu0 0
    %2681 = vmatprep.mubr.bf16.mxu0 0
    %2682 = vmatmul.mubr.bf16.gmra.mrb[0].mxu0 %v2456
    %v2683 = vpop.f32.mrb[0].mxu0
    %v2684 = vadd.f32 0.0, %v2683
    %v2685 = vpop.f32.mrb[0].mxu0
    %v2686 = vadd.f32 0.0, %v2685
    %v2687 = vpop.f32.mrb[0].mxu0
    %v2688 = vpop.f32.mrb[0].mxu0
    %2689 = vdwg.mxu0
    %2690 = vmatprep.subr.bf16.mxu0 %v2588
    %2691 = vmatpush1.bf16.msra.mxu0 %v2587
    %2692 = vmatprep.subr.bf16.mxu0 %v2592
    %2693 = vmatpush1.bf16.msra.mxu0 %v2591
    %2694 = vmatprep.subr.bf16.mxu0 %v2596
    %2695 = vmatpush1.bf16.msra.mxu0 %v2595
    %2696 = vmatprep.subr.bf16.mxu0 %v2600
    %2697 = vmatpush1.bf16.msra.mxu0 %v2599
    %2698 = vmatprep.subr.bf16.mxu0 %v2604
    %2699 = vmatpush1.bf16.msra.mxu0 %v2603
    %2700 = vmatprep.subr.bf16.mxu0 %v2608
    %2701 = vmatpush1.bf16.msra.mxu0 %v2607
    %2702 = vmatprep.subr.bf16.mxu0 %v2612
    %2703 = vmatpush1.bf16.msra.mxu0 %v2611
    %2704 = vmatprep.subr.bf16.mxu0 %v2616
    %2705 = vmatpush1.bf16.msra.mxu0 %v2615
    %2706 = vmatprep.subr.bf16.mxu0 0
    %2707 = vmatpush1.bf16.msra.mxu0 0
    %2708 = vmatprep.subr.bf16.mxu0 0
    %2709 = vmatpush1.bf16.msra.mxu0 0
    %2710 = vmatprep.subr.bf16.mxu0 0
    %2711 = vmatpush1.bf16.msra.mxu0 0
    %2712 = vmatprep.subr.bf16.mxu0 0
    %2713 = vmatpush1.bf16.msra.mxu0 0
    %2714 = vmatprep.subr.bf16.mxu0 0
    %2715 = vmatpush1.bf16.msra.mxu0 0
    %2716 = vmatprep.subr.bf16.mxu0 0
    %2717 = vmatpush1.bf16.msra.mxu0 0
    %2718 = vmatprep.subr.bf16.mxu0 0
    %2719 = vmatpush1.bf16.msra.mxu0 0
    %2720 = vmatprep.subr.bf16.mxu0 0
    %2721 = vmatpush1.bf16.msra.mxu0 0
    %2722 = vmatprep.mubr.bf16.mxu0 0
    %2723 = vmatmul.mubr.bf16.gmra.mrb[0].mxu0 %v2456
    %v2724 = vpop.f32.mrb[0].mxu0
    %v2725 = vadd.f32 0.0, %v2724
    %v2726 = vpop.f32.mrb[0].mxu0
    %v2727 = vadd.f32 0.0, %v2726
    %v2728 = vpop.f32.mrb[0].mxu0
    %v2729 = vpop.f32.mrb[0].mxu0
    %2730 = vdwg.mxu0
    %v2731 = vadd.f32 %v2452, %v2684
    %v2732 = vadd.f32 %v2453, %v2686
    %v2733 = vadd.f32 %v2454, %v2725
    %v2734 = vadd.f32 %v2455, %v2727
    %v2735 = vxor.u32 %v2731, 2147483648
    %v2736 = vmul.f32 %v2735, 1.442695
    %v2737 = vpow.pop %v2736
    %v2738 = vadd.f32 %v2737, 1.0
    %v2739 = vrcp.pop %v2738
    %v2740 = vmul.f32 1.0, %v2739
    %v2741 = vxor.u32 %v2732, 2147483648
    %v2742 = vmul.f32 %v2741, 1.442695
    %v2743 = vpow.pop %v2742
    %v2744 = vadd.f32 %v2743, 1.0
    %v2745 = vrcp.pop %v2744
    %v2746 = vmul.f32 1.0, %v2745
    %v2747 = vtanh.pop %v2733
    %v2748 = vxor.u32 %v2734, 2147483648
    %v2749 = vmul.f32 %v2748, 1.442695
    %v2750 = vpow.pop %v2749
    %v2751 = vadd.f32 %v2750, 1.0
    %v2752 = vrcp.pop %v2751
    %v2753 = vmul.f32 1.0, %v2752
    %v2754 = vmul.f32 %v2746, %v2446
    %v2755 = vmul.f32 %v2740, %v2747
    %v2756 = vadd.f32 %v2754, %v2755
    %v2757 = vtanh.pop %v2756
    %v2758 = vmul.f32 %v2753, %v2757
    %s2759 = scalar_lea.vmem [#allocation3], 48
    %2760 = vst [vmem:[%s2759] sm:$0xff] %v2758
    %s2761 = scalar_lea.vmem [#allocation2], 224
    %v2762 = vld [vmem:[%s2761] sm:$0xff]
    %v2763 = vld [vmem:[%s2761 + $0x8] sm:$0xff]
    %v2764 = vld [vmem:[%s2761 + $0x10] sm:$0xff]
    %v2765 = vld [vmem:[%s2761 + $0x18] sm:$0xff]
    %v2766 = vpack.c.bf16 %v2758, %v2758
    %v2767 = vld [vmem:[#allocation9] sm:$0xff]
    %v2768 = vld [vmem:[#allocation9 + $0x8] sm:$0xff]
    %v2769 = vld [vmem:[#allocation9 + $0x10] sm:$0xff]
    %v2770 = vld [vmem:[#allocation9 + $0x18] sm:$0xff]
    %v2771 = vld [vmem:[#allocation9 + $0x20] sm:$0xff]
    %v2772 = vld [vmem:[#allocation9 + $0x28] sm:$0xff]
    %v2773 = vld [vmem:[#allocation9 + $0x30] sm:$0xff]
    %v2774 = vld [vmem:[#allocation9 + $0x38] sm:$0xff]
    %v2775 = vld [vmem:[#allocation9 + $0x40] sm:$0xff]
    %v2776 = vld [vmem:[#allocation9 + $0x48] sm:$0xff]
    %v2777 = vld [vmem:[#allocation9 + $0x50] sm:$0xff]
    %v2778 = vld [vmem:[#allocation9 + $0x58] sm:$0xff]
    %v2779 = vld [vmem:[#allocation9 + $0x60] sm:$0xff]
    %v2780 = vld [vmem:[#allocation9 + $0x68] sm:$0xff]
    %v2781 = vld [vmem:[#allocation9 + $0x70] sm:$0xff]
    %v2782 = vld [vmem:[#allocation9 + $0x78] sm:$0xff]
    %v2783 = vld [vmem:[#allocation9 + $0x80] sm:$0xff]
    %v2784 = vld [vmem:[#allocation9 + $0x88] sm:$0xff]
    %v2785 = vld [vmem:[#allocation9 + $0x90] sm:$0xff]
    %v2786 = vld [vmem:[#allocation9 + $0x98] sm:$0xff]
    %v2787 = vld [vmem:[#allocation9 + $0xa0] sm:$0xff]
    %v2788 = vld [vmem:[#allocation9 + $0xa8] sm:$0xff]
    %v2789 = vld [vmem:[#allocation9 + $0xb0] sm:$0xff]
    %v2790 = vld [vmem:[#allocation9 + $0xb8] sm:$0xff]
    %v2791 = vld [vmem:[#allocation9 + $0xc0] sm:$0xff]
    %v2792 = vld [vmem:[#allocation9 + $0xc8] sm:$0xff]
    %v2793 = vld [vmem:[#allocation9 + $0xd0] sm:$0xff]
    %v2794 = vld [vmem:[#allocation9 + $0xd8] sm:$0xff]
    %v2795 = vld [vmem:[#allocation9 + $0xe0] sm:$0xff]
    %v2796 = vld [vmem:[#allocation9 + $0xe8] sm:$0xff]
    %v2797 = vld [vmem:[#allocation9 + $0xf0] sm:$0xff]
    %v2798 = vld [vmem:[#allocation9 + $0xf8] sm:$0xff]
    %v2831 = vunpack.c.l.b16 %v2767
    %v2832 = vunpack.c.h.b16 %v2767
    %v2833 = vunpack.c.l.b16 %v2768
    %v2834 = vunpack.c.h.b16 %v2768
    %v2835 = vunpack.c.l.b16 %v2769
    %v2836 = vunpack.c.h.b16 %v2769
    %v2837 = vunpack.c.l.b16 %v2770
    %v2838 = vunpack.c.h.b16 %v2770
    %v2839 = vunpack.c.l.b16 %v2771
    %v2840 = vunpack.c.h.b16 %v2771
    %v2841 = vunpack.c.l.b16 %v2772
    %v2842 = vunpack.c.h.b16 %v2772
    %v2843 = vunpack.c.l.b16 %v2773
    %v2844 = vunpack.c.h.b16 %v2773
    %v2845 = vunpack.c.l.b16 %v2774
    %v2846 = vunpack.c.h.b16 %v2774
    %v2847 = vunpack.c.l.b16 %v2775
    %v2848 = vunpack.c.h.b16 %v2775
    %v2849 = vunpack.c.l.b16 %v2776
    %v2850 = vunpack.c.h.b16 %v2776
    %v2851 = vunpack.c.l.b16 %v2777
    %v2852 = vunpack.c.h.b16 %v2777
    %v2853 = vunpack.c.l.b16 %v2778
    %v2854 = vunpack.c.h.b16 %v2778
    %v2855 = vunpack.c.l.b16 %v2779
    %v2856 = vunpack.c.h.b16 %v2779
    %v2857 = vunpack.c.l.b16 %v2780
    %v2858 = vunpack.c.h.b16 %v2780
    %v2859 = vunpack.c.l.b16 %v2781
    %v2860 = vunpack.c.h.b16 %v2781
    %v2861 = vunpack.c.l.b16 %v2782
    %v2862 = vunpack.c.h.b16 %v2782
    %v2863 = vunpack.c.l.b16 %v2783
    %v2864 = vunpack.c.h.b16 %v2783
    %v2865 = vunpack.c.l.b16 %v2784
    %v2866 = vunpack.c.h.b16 %v2784
    %v2867 = vunpack.c.l.b16 %v2785
    %v2868 = vunpack.c.h.b16 %v2785
    %v2869 = vunpack.c.l.b16 %v2786
    %v2870 = vunpack.c.h.b16 %v2786
    %v2871 = vunpack.c.l.b16 %v2787
    %v2872 = vunpack.c.h.b16 %v2787
    %v2873 = vunpack.c.l.b16 %v2788
    %v2874 = vunpack.c.h.b16 %v2788
    %v2875 = vunpack.c.l.b16 %v2789
    %v2876 = vunpack.c.h.b16 %v2789
    %v2877 = vunpack.c.l.b16 %v2790
    %v2878 = vunpack.c.h.b16 %v2790
    %v2879 = vunpack.c.l.b16 %v2791
    %v2880 = vunpack.c.h.b16 %v2791
    %v2881 = vunpack.c.l.b16 %v2792
    %v2882 = vunpack.c.h.b16 %v2792
    %v2883 = vunpack.c.l.b16 %v2793
    %v2884 = vunpack.c.h.b16 %v2793
    %v2885 = vunpack.c.l.b16 %v2794
    %v2886 = vunpack.c.h.b16 %v2794
    %v2887 = vunpack.c.l.b16 %v2795
    %v2888 = vunpack.c.h.b16 %v2795
    %v2889 = vunpack.c.l.b16 %v2796
    %v2890 = vunpack.c.h.b16 %v2796
    %v2891 = vunpack.c.l.b16 %v2797
    %v2892 = vunpack.c.h.b16 %v2797
    %v2893 = vunpack.c.l.b16 %v2798
    %v2894 = vunpack.c.h.b16 %v2798
    %v2895 = vpack.c.b16 %v2835, %v2831
    %v2896 = vpack.c.b16 %v2836, %v2832
    %v2897 = vpack.c.b16 %v2837, %v2833
    %v2898 = vpack.c.b16 %v2838, %v2834
    %v2899 = vpack.c.b16 %v2843, %v2839
    %v2900 = vpack.c.b16 %v2844, %v2840
    %v2901 = vpack.c.b16 %v2845, %v2841
    %v2902 = vpack.c.b16 %v2846, %v2842
    %v2903 = vpack.c.b16 %v2851, %v2847
    %v2904 = vpack.c.b16 %v2852, %v2848
    %v2905 = vpack.c.b16 %v2853, %v2849
    %v2906 = vpack.c.b16 %v2854, %v2850
    %v2907 = vpack.c.b16 %v2859, %v2855
    %v2908 = vpack.c.b16 %v2860, %v2856
    %v2909 = vpack.c.b16 %v2861, %v2857
    %v2910 = vpack.c.b16 %v2862, %v2858
    %v2911 = vpack.c.b16 %v2867, %v2863
    %v2912 = vpack.c.b16 %v2868, %v2864
    %v2913 = vpack.c.b16 %v2869, %v2865
    %v2914 = vpack.c.b16 %v2870, %v2866
    %v2915 = vpack.c.b16 %v2875, %v2871
    %v2916 = vpack.c.b16 %v2876, %v2872
    %v2917 = vpack.c.b16 %v2877, %v2873
    %v2918 = vpack.c.b16 %v2878, %v2874
    %v2919 = vpack.c.b16 %v2883, %v2879
    %v2920 = vpack.c.b16 %v2884, %v2880
    %v2921 = vpack.c.b16 %v2885, %v2881
    %v2922 = vpack.c.b16 %v2886, %v2882
    %v2923 = vpack.c.b16 %v2891, %v2887
    %v2924 = vpack.c.b16 %v2892, %v2888
    %v2925 = vpack.c.b16 %v2893, %v2889
    %v2926 = vpack.c.b16 %v2894, %v2890
    %2959 = vmatprep.subr.bf16.mxu0 %v2896
    %2960 = vmatpush1.bf16.msra.mxu0 %v2895
    %2961 = vmatprep.subr.bf16.mxu0 %v2900
    %2962 = vmatpush1.bf16.msra.mxu0 %v2899
    %2963 = vmatprep.subr.bf16.mxu0 %v2904
    %2964 = vmatpush1.bf16.msra.mxu0 %v2903
    %2965 = vmatprep.subr.bf16.mxu0 %v2908
    %2966 = vmatpush1.bf16.msra.mxu0 %v2907
    %2967 = vmatprep.subr.bf16.mxu0 %v2912
    %2968 = vmatpush1.bf16.msra.mxu0 %v2911
    %2969 = vmatprep.subr.bf16.mxu0 %v2916
    %2970 = vmatpush1.bf16.msra.mxu0 %v2915
    %2971 = vmatprep.subr.bf16.mxu0 %v2920
    %2972 = vmatpush1.bf16.msra.mxu0 %v2919
    %2973 = vmatprep.subr.bf16.mxu0 %v2924
    %2974 = vmatpush1.bf16.msra.mxu0 %v2923
    %2975 = vmatprep.subr.bf16.mxu0 0
    %2976 = vmatpush1.bf16.msra.mxu0 0
    %2977 = vmatprep.subr.bf16.mxu0 0
    %2978 = vmatpush1.bf16.msra.mxu0 0
    %2979 = vmatprep.subr.bf16.mxu0 0
    %2980 = vmatpush1.bf16.msra.mxu0 0
    %2981 = vmatprep.subr.bf16.mxu0 0
    %2982 = vmatpush1.bf16.msra.mxu0 0
    %2983 = vmatprep.subr.bf16.mxu0 0
    %2984 = vmatpush1.bf16.msra.mxu0 0
    %2985 = vmatprep.subr.bf16.mxu0 0
    %2986 = vmatpush1.bf16.msra.mxu0 0
    %2987 = vmatprep.subr.bf16.mxu0 0
    %2988 = vmatpush1.bf16.msra.mxu0 0
    %2989 = vmatprep.subr.bf16.mxu0 0
    %2990 = vmatpush1.bf16.msra.mxu0 0
    %2991 = vmatprep.mubr.bf16.mxu0 0
    %2992 = vmatmul.mubr.bf16.gmra.mrb[0].mxu0 %v2766
    %v2993 = vpop.f32.mrb[0].mxu0
    %v2994 = vadd.f32 0.0, %v2993
    %v2995 = vpop.f32.mrb[0].mxu0
    %v2996 = vadd.f32 0.0, %v2995
    %v2997 = vpop.f32.mrb[0].mxu0
    %v2998 = vpop.f32.mrb[0].mxu0
    %2999 = vdwg.mxu0
    %3000 = vmatprep.subr.bf16.mxu0 %v2898
    %3001 = vmatpush1.bf16.msra.mxu0 %v2897
    %3002 = vmatprep.subr.bf16.mxu0 %v2902
    %3003 = vmatpush1.bf16.msra.mxu0 %v2901
    %3004 = vmatprep.subr.bf16.mxu0 %v2906
    %3005 = vmatpush1.bf16.msra.mxu0 %v2905
    %3006 = vmatprep.subr.bf16.mxu0 %v2910
    %3007 = vmatpush1.bf16.msra.mxu0 %v2909
    %3008 = vmatprep.subr.bf16.mxu0 %v2914
    %3009 = vmatpush1.bf16.msra.mxu0 %v2913
    %3010 = vmatprep.subr.bf16.mxu0 %v2918
    %3011 = vmatpush1.bf16.msra.mxu0 %v2917
    %3012 = vmatprep.subr.bf16.mxu0 %v2922
    %3013 = vmatpush1.bf16.msra.mxu0 %v2921
    %3014 = vmatprep.subr.bf16.mxu0 %v2926
    %3015 = vmatpush1.bf16.msra.mxu0 %v2925
    %3016 = vmatprep.subr.bf16.mxu0 0
    %3017 = vmatpush1.bf16.msra.mxu0 0
    %3018 = vmatprep.subr.bf16.mxu0 0
    %3019 = vmatpush1.bf16.msra.mxu0 0
    %3020 = vmatprep.subr.bf16.mxu0 0
    %3021 = vmatpush1.bf16.msra.mxu0 0
    %3022 = vmatprep.subr.bf16.mxu0 0
    %3023 = vmatpush1.bf16.msra.mxu0 0
    %3024 = vmatprep.subr.bf16.mxu0 0
    %3025 = vmatpush1.bf16.msra.mxu0 0
    %3026 = vmatprep.subr.bf16.mxu0 0
    %3027 = vmatpush1.bf16.msra.mxu0 0
    %3028 = vmatprep.subr.bf16.mxu0 0
    %3029 = vmatpush1.bf16.msra.mxu0 0
    %3030 = vmatprep.subr.bf16.mxu0 0
    %3031 = vmatpush1.bf16.msra.mxu0 0
    %3032 = vmatprep.mubr.bf16.mxu0 0
    %3033 = vmatmul.mubr.bf16.gmra.mrb[0].mxu0 %v2766
    %v3034 = vpop.f32.mrb[0].mxu0
    %v3035 = vadd.f32 0.0, %v3034
    %v3036 = vpop.f32.mrb[0].mxu0
    %v3037 = vadd.f32 0.0, %v3036
    %v3038 = vpop.f32.mrb[0].mxu0
    %v3039 = vpop.f32.mrb[0].mxu0
    %3040 = vdwg.mxu0
    %v3041 = vadd.f32 %v2762, %v2994
    %v3042 = vadd.f32 %v2763, %v2996
    %v3043 = vadd.f32 %v2764, %v3035
    %v3044 = vadd.f32 %v2765, %v3037
    %v3045 = vxor.u32 %v3041, 2147483648
    %v3046 = vmul.f32 %v3045, 1.442695
    %v3047 = vpow.pop %v3046
    %v3048 = vadd.f32 %v3047, 1.0
    %v3049 = vrcp.pop %v3048
    %v3050 = vmul.f32 1.0, %v3049
    %v3051 = vxor.u32 %v3042, 2147483648
    %v3052 = vmul.f32 %v3051, 1.442695
    %v3053 = vpow.pop %v3052
    %v3054 = vadd.f32 %v3053, 1.0
    %v3055 = vrcp.pop %v3054
    %v3056 = vmul.f32 1.0, %v3055
    %v3057 = vtanh.pop %v3043
    %v3058 = vxor.u32 %v3044, 2147483648
    %v3059 = vmul.f32 %v3058, 1.442695
    %v3060 = vpow.pop %v3059
    %v3061 = vadd.f32 %v3060, 1.0
    %v3062 = vrcp.pop %v3061
    %v3063 = vmul.f32 1.0, %v3062
    %v3064 = vmul.f32 %v3056, %v2756
    %v3065 = vmul.f32 %v3050, %v3057
    %v3066 = vadd.f32 %v3064, %v3065
    %v3067 = vtanh.pop %v3066
    %v3068 = vmul.f32 %v3063, %v3067
    %s3069 = scalar_lea.vmem [#allocation3], 56
    %3070 = vst [vmem:[%s3069] sm:$0xff] %v3068
    %3071 = vst [vmem:[#allocation11] sm:$0xff] %v3068
    %3072 = vst [vmem:[#allocation13] sm:$0xff] %v3066
    %v3073 = vld [vmem:[#allocation3] sm:$0xff]
    %v3074 = vld [vmem:[#allocation3 + $0x8] sm:$0xff]
    %v3075 = vld [vmem:[#allocation3 + $0x10] sm:$0xff]
    %v3076 = vld [vmem:[#allocation3 + $0x18] sm:$0xff]
    %v3077 = vld [vmem:[#allocation3 + $0x20] sm:$0xff]
    %v3078 = vld [vmem:[#allocation3 + $0x28] sm:$0xff]
    %v3079 = vld [vmem:[#allocation3 + $0x30] sm:$0xff]
    %v3080 = vld [vmem:[#allocation3 + $0x38] sm:$0xff]
    %v3081 = vcombine.low %v3073, %v3075
    %v3082 = vcombine.high %v3073, %v3075
    %v3084 = vunpack.c.l.s4 1983009808
    %v3085 = vunpack.c.0.s8 %v3084
    %v3086 = vlaneseq
    %v3087 = vshrl.u32 %v3086, 7
    %v3088 = vsub.s32 %v3085, %v3087
    %v3089 = vrot.slane %v3081, %v3088
    %v3091 = vunpack.c.l.s4 1983009808
    %v3092 = vunpack.c.0.s8 %v3091
    %v3093 = vlaneseq
    %v3094 = vshrl.u32 %v3093, 7
    %v3095 = vsub.s32 %v3092, %v3094
    %v3096 = vrot.slane %v3082, %v3095
    %v3097 = vcombine.low %v3074, %v3076
    %v3098 = vcombine.high %v3074, %v3076
    %v3100 = vunpack.c.l.s4 1983009808
    %v3101 = vunpack.c.0.s8 %v3100
    %v3102 = vlaneseq
    %v3103 = vshrl.u32 %v3102, 7
    %v3104 = vsub.s32 %v3101, %v3103
    %v3105 = vrot.slane %v3097, %v3104
    %v3107 = vunpack.c.l.s4 1983009808
    %v3108 = vunpack.c.0.s8 %v3107
    %v3109 = vlaneseq
    %v3110 = vshrl.u32 %v3109, 7
    %v3111 = vsub.s32 %v3108, %v3110
    %v3112 = vrot.slane %v3098, %v3111
    %v3113 = vcombine.low %v3077, %v3079
    %v3114 = vcombine.high %v3077, %v3079
    %v3116 = vunpack.c.l.s4 1983009808
    %v3117 = vunpack.c.0.s8 %v3116
    %v3118 = vlaneseq
    %v3119 = vshrl.u32 %v3118, 7
    %v3120 = vsub.s32 %v3117, %v3119
    %v3121 = vrot.slane %v3113, %v3120
    %v3123 = vunpack.c.l.s4 1983009808
    %v3124 = vunpack.c.0.s8 %v3123
    %v3125 = vlaneseq
    %v3126 = vshrl.u32 %v3125, 7
    %v3127 = vsub.s32 %v3124, %v3126
    %v3128 = vrot.slane %v3114, %v3127
    %v3129 = vcombine.low %v3078, %v3080
    %v3130 = vcombine.high %v3078, %v3080
    %v3132 = vunpack.c.l.s4 1983009808
    %v3133 = vunpack.c.0.s8 %v3132
    %v3134 = vlaneseq
    %v3135 = vshrl.u32 %v3134, 7
    %v3136 = vsub.s32 %v3133, %v3135
    %v3137 = vrot.slane %v3129, %v3136
    %v3139 = vunpack.c.l.s4 1983009808
    %v3140 = vunpack.c.0.s8 %v3139
    %v3141 = vlaneseq
    %v3142 = vshrl.u32 %v3141, 7
    %v3143 = vsub.s32 %v3140, %v3142
    %v3144 = vrot.slane %v3130, %v3143
    %v3145 = vcombine.low %v3089, %v3105
    %v3146 = vcombine.high %v3089, %v3105
    %v3148 = vunpack.c.l.s4 1934713408
    %v3149 = vunpack.c.0.s8 %v3148
    %v3150 = vlaneseq
    %v3151 = vshrl.u32 %v3150, 7
    %v3152 = vsub.s32 %v3149, %v3151
    %v3153 = vrot.slane %v3145, %v3152
    %v3155 = vunpack.c.l.s4 1934713408
    %v3156 = vunpack.c.0.s8 %v3155
    %v3157 = vlaneseq
    %v3158 = vshrl.u32 %v3157, 7
    %v3159 = vsub.s32 %v3156, %v3158
    %v3160 = vrot.slane %v3146, %v3159
    %v3161 = vcombine.low %v3096, %v3112
    %v3162 = vcombine.high %v3096, %v3112
    %v3164 = vunpack.c.l.s4 1934713408
    %v3165 = vunpack.c.0.s8 %v3164
    %v3166 = vlaneseq
    %v3167 = vshrl.u32 %v3166, 7
    %v3168 = vsub.s32 %v3165, %v3167
    %v3169 = vrot.slane %v3161, %v3168
    %v3171 = vunpack.c.l.s4 1934713408
    %v3172 = vunpack.c.0.s8 %v3171
    %v3173 = vlaneseq
    %v3174 = vshrl.u32 %v3173, 7
    %v3175 = vsub.s32 %v3172, %v3174
    %v3176 = vrot.slane %v3162, %v3175
    %v3177 = vcombine.low %v3121, %v3137
    %v3178 = vcombine.high %v3121, %v3137
    %v3180 = vunpack.c.l.s4 1934713408
    %v3181 = vunpack.c.0.s8 %v3180
    %v3182 = vlaneseq
    %v3183 = vshrl.u32 %v3182, 7
    %v3184 = vsub.s32 %v3181, %v3183
    %v3185 = vrot.slane %v3177, %v3184
    %v3187 = vunpack.c.l.s4 1934713408
    %v3188 = vunpack.c.0.s8 %v3187
    %v3189 = vlaneseq
    %v3190 = vshrl.u32 %v3189, 7
    %v3191 = vsub.s32 %v3188, %v3190
    %v3192 = vrot.slane %v3178, %v3191
    %v3193 = vcombine.low %v3128, %v3144
    %v3194 = vcombine.high %v3128, %v3144
    %v3196 = vunpack.c.l.s4 1934713408
    %v3197 = vunpack.c.0.s8 %v3196
    %v3198 = vlaneseq
    %v3199 = vshrl.u32 %v3198, 7
    %v3200 = vsub.s32 %v3197, %v3199
    %v3201 = vrot.slane %v3193, %v3200
    %v3203 = vunpack.c.l.s4 1934713408
    %v3204 = vunpack.c.0.s8 %v3203
    %v3205 = vlaneseq
    %v3206 = vshrl.u32 %v3205, 7
    %v3207 = vsub.s32 %v3204, %v3206
    %v3208 = vrot.slane %v3194, %v3207
    %v3209 = vcombine.low %v3153, %v3185
    %v3210 = vcombine.high %v3153, %v3185
    %v3211 = vcombine.low %v3160, %v3192
    %v3212 = vcombine.high %v3160, %v3192
    %v3213 = vcombine.low %v3169, %v3201
    %v3214 = vcombine.high %v3169, %v3201
    %v3215 = vcombine.low %v3176, %v3208
    %v3216 = vcombine.high %v3176, %v3208
    %3217 = vst [vmem:[#allocation10] sm:$0xff] %v3209
    %3218 = vst [vmem:[#allocation10 + $0x8] sm:$0xff] %v3210
    %3219 = vst [vmem:[#allocation10 + $0x10] sm:$0xff] %v3211
    %3220 = vst [vmem:[#allocation10 + $0x18] sm:$0xff] %v3212
    %3221 = vst [vmem:[#allocation10 + $0x20] sm:$0xff] %v3213
    %3222 = vst [vmem:[#allocation10 + $0x28] sm:$0xff] %v3214
    %3223 = vst [vmem:[#allocation10 + $0x30] sm:$0xff] %v3215
    %3224 = vst [vmem:[#allocation10 + $0x38] sm:$0xff] %v3216
    // Predicated region
    $region30: #{tpu_custom_call.1} parent=1 // pred_check
      _
    $region31: #{tpu_custom_call.1} parent=1 // pred_check_branch
      %3226 = sbr.rel (0) target = $region33
    $region32: #{tpu_custom_call.1} parent=1 // pred_region
      %s3228 = ssub.s32 1024, 1024
      %3229 = vsyncadd [#allocation6], %s3228
      %s3230 = sshll.u32 [#allocation10], 4
      %s3231 = int_to_ptr.vmem [resolvable:$true] %s3230
      %3236 = dma.vmem_to_hbm [thread:$0]  %s3231, 1024, %s4, [#allocation6], 128, 128, 8
    $region33: #{tpu_custom_call.1} parent=1 // pred_fallthru
      _
    // Predicated region
    $region34: #{tpu_custom_call.1} parent=1 // pred_check
      _
    $region35: #{tpu_custom_call.1} parent=1 // pred_check_branch
      %3238 = sbr.rel (0) target = $region37
    $region36: #{tpu_custom_call.1} parent=1 // pred_region
      %s3240 = ssub.s32 128, 128
      %3241 = vsyncadd [#allocation12], %s3240
      %s3243 = sshll.u32 [#allocation11], 4
      %s3244 = int_to_ptr.vmem [resolvable:$true] %s3243
      %3246 = dma.vmem_to_hbm [thread:$0]  %s3244, 128, %s5, [#allocation12]
    $region37: #{tpu_custom_call.1} parent=1 // pred_fallthru
      _
    // Predicated region
    $region38: #{tpu_custom_call.1} parent=1 // pred_check
      _
    $region39: #{tpu_custom_call.1} parent=1 // pred_check_branch
      %3248 = sbr.rel (0) target = $region41
    $region40: #{tpu_custom_call.1} parent=1 // pred_region
      %s3250 = ssub.s32 128, 128
      %3251 = vsyncadd [#allocation12], %s3250
      %s3253 = sshll.u32 [#allocation13], 4
      %s3254 = int_to_ptr.vmem [resolvable:$true] %s3253
      %3256 = dma.vmem_to_hbm [thread:$0]  %s3254, 128, %s6, [#allocation12]
    $region41: #{tpu_custom_call.1} parent=1 // pred_fallthru
      _
    // Predicated region
    $region42: #{tpu_custom_call.1} parent=1 // pred_check
      _
    $region43: #{tpu_custom_call.1} parent=1 // pred_check_branch
      %3258 = sbr.rel (0) target = $region45
    $region44: #{tpu_custom_call.1} parent=1 // pred_region
      %3259 = dma.done [#allocation6], 1024
    $region45: #{tpu_custom_call.1} parent=1 // pred_fallthru
      _
    // Predicated region
    $region46: #{tpu_custom_call.1} parent=1 // pred_check
      _
    $region47: #{tpu_custom_call.1} parent=1 // pred_check_branch
      %3261 = sbr.rel (0) target = $region49
    $region48: #{tpu_custom_call.1} parent=1 // pred_region
      %3262 = dma.done [#allocation12], 128
    $region49: #{tpu_custom_call.1} parent=1 // pred_fallthru
      _
    // Predicated region
    $region50: #{tpu_custom_call.1} parent=1 // pred_check
      _
    $region51: #{tpu_custom_call.1} parent=1 // pred_check_branch
      %3264 = sbr.rel (0) target = $region53
    $region52: #{tpu_custom_call.1} parent=1 // pred_region
      %3265 = dma.done [#allocation12], 128
    $region53: #{tpu_custom_call.1} parent=1 // pred_fallthru
      _
    %3266 = vsyncpa [#allocation5], 1
    %3267 = vsyncpa [#allocation8], 1
    %3268 = vsyncpa [#allocation6], 1
    %3269 = vsyncpa [#allocation12], 1

</llo_original>
